<compile_context>
chip_gen: v7x
topology: tpu7x:2x2x1
jax: 0.10.0
libtpu: 0.0.40
codegen_flags: <defaults>
</compile_context>

<pallas_src>
import jax
import jax.numpy as jnp
from jax.experimental import pallas as pl
from jax.experimental.pallas import tpu as pltpu

SEQ = 8          # sequence length
IN = 768         # input_size
H1 = 256         # fc hidden width
H2 = 128         # output_features (RNN input size)
NC = 16          # num_classes == RNN hidden size
B_TILE = 8       # sequences per grid step (one TensorCore work unit)
PACK_ROWS = 8 + NC  # packed small-operand array: 3 bias rows (+pad) + W_hh rows


def _tree_sum(terms):
    # balanced add tree (depth ~log2) to keep dependent-add latency short
    while len(terms) > 1:
        nxt = [terms[i] + terms[i + 1] for i in range(0, len(terms) - 1, 2)]
        if len(terms) % 2:
            nxt.append(terms[-1])
        terms = nxt
    return terms[0]


def rnn_model_kernel(x_ref, wfc_ref, wfc1_ref, wih_ref, pack_ref, o_ref):
    # ---- unpack the single small-operand block (one DMA instead of several) --
    bfc = pack_ref[0:1, :H1]          # (1, 256) fc bias
    bfc1 = pack_ref[1:2, :H2]         # (1, 128) fc1 bias
    b_rnn = pack_ref[2:3, :NC]        # (1, 16)  b_ih + b_hh (fused at init)
    whh = pack_ref[8:8 + NC, :NC]     # (16, 16) recurrent weight (h_prev @ whh)

    # ---- fc -> ReLU -> fc1 -> ReLU -> RNN input projection, M = SEQ*B_TILE ---
    # x rows are time-major within the block: row = t*B_TILE + b.
    a1 = jnp.dot(x_ref[...], wfc_ref[...],
                 preferred_element_type=jnp.float32) + bfc
    a1 = jnp.maximum(a1, 0.0)
    a2 = jnp.dot(a1.astype(jnp.bfloat16), wfc1_ref[...],
                 preferred_element_type=jnp.float32) + bfc1
    a2 = jnp.maximum(a2, 0.0)
    pre = jnp.dot(a2.astype(jnp.bfloat16), wih_ref[...],
                  preferred_element_type=jnp.float32) + b_rnn     # (SEQ*B_TILE, NC)

    # Loop-invariant: W_hh rows broadcast over the batch sublanes (hoisted once).
    whh_bc = [jnp.broadcast_to(whh[k:k + 1, :], (B_TILE, NC)) for k in range(NC)]

    # ---- Elman recurrence, batched over B_TILE sequences, h_0 = 0 ----
    # h @ W_hh computed as sum_k h[:, k] * W_hh[k, :] on the VPU only:
    # no MXU push/pop and no transposes on the 8-step serial chain.
    h = jnp.zeros((B_TILE, NC), jnp.float32)
    hs = []
    for t in range(SEQ):                       # tiny static trip count, unrolled
        terms = [h[:, k:k + 1] * whh_bc[k] for k in range(NC)]
        rec = _tree_sum(terms)                                    # (B_TILE, NC)
        h = jnp.tanh(pre[t * B_TILE:(t + 1) * B_TILE, :] + rec)   # f32 EUP
        hs.append(h)

    hs_all = jnp.concatenate(hs, axis=0)       # (SEQ*B_TILE, NC), time-major rows

    # ---- LogSoftmax over the class axis ----
    mx = jnp.max(hs_all, axis=1, keepdims=True)
    z = hs_all - mx
    lse = jnp.log(jnp.sum(jnp.exp(z), axis=1, keepdims=True))
    o_ref[...] = z - lse


def prepare_params(wfc, bfc, wfc1, bfc1, wih, bih, whh, bhh):
    """One-time parameter prep (NOT per forward): bf16 MXU operands, fused RNN
    bias, and all small f32 operands packed into a single array (one DMA)."""
    pack = jnp.zeros((PACK_ROWS, H1), jnp.float32)
    pack = pack.at[0, :H1].set(bfc)
    pack = pack.at[1, :H2].set(bfc1)
    pack = pack.at[2, :NC].set(bih + bhh)
    pack = pack.at[8:8 + NC, :NC].set(whh)
    return (wfc.astype(jnp.bfloat16), wfc1.astype(jnp.bfloat16),
            wih.astype(jnp.bfloat16), pack)


def rnn_model_forward(x, wfc_bf16, wfc1_bf16, wih_bf16, pack):
    """x: (SEQ, B, IN) time-major batched input (nn.RNN convention); each
    sequence is processed exactly like the unbatched module. Returns
    (SEQ, B, NC) log-probabilities (softmax over the class axis)."""
    seq, batch, in_sz = x.shape
    assert seq == SEQ and in_sz == IN and batch % B_TILE == 0
    nb = batch // B_TILE
    m = SEQ * B_TILE

    # bf16 activations, rows time-major within each batch block so the kernel
    # never reshapes or transposes: global row = block*m + t*B_TILE + b.
    x2 = (x.astype(jnp.bfloat16)
            .reshape(SEQ, nb, B_TILE, IN)
            .transpose(1, 0, 2, 3)
            .reshape(nb * m, IN))

    out = pl.pallas_call(
        rnn_model_kernel,
        out_shape=jax.ShapeDtypeStruct((nb * m, NC), jnp.float32),
        grid=(nb,),
        in_specs=[
            pl.BlockSpec((m, IN), lambda i: (i, 0)),      # activations per block
            pl.BlockSpec((IN, H1), lambda i: (0, 0)),     # weights: constant block
            pl.BlockSpec((H1, H2), lambda i: (0, 0)),     #  index -> DMA'd once,
            pl.BlockSpec((H2, NC), lambda i: (0, 0)),     #  reused across blocks
            pl.BlockSpec((PACK_ROWS, H1), lambda i: (0, 0)),
        ],
        out_specs=pl.BlockSpec((m, NC), lambda i: (i, 0)),
        compiler_params=pltpu.CompilerParams(
            dimension_semantics=("parallel",)),           # v7x: shard over 2 TCs
    )(x2, wfc_bf16, wfc1_bf16, wih_bf16, pack)

    return (out.reshape(nb, SEQ, B_TILE, NC)
               .transpose(1, 0, 2, 3)
               .reshape(SEQ, batch, NC))


def _uniform(key, shape, bound):
    return jax.random.uniform(key, shape, jnp.float32, -bound, bound)


def init_params(key):
    # PyTorch-style uniform(-1/sqrt(fan_in), 1/sqrt(fan_in)) init; weights laid
    # out (in, out) so y = x @ W + b (equivalent to nn.Linear / nn.RNN math).
    ks = jax.random.split(key, 8)
    b_fc = 1.0 / float(jnp.sqrt(IN))
    b_fc1 = 1.0 / float(jnp.sqrt(H1))
    b_rnn = 1.0 / float(jnp.sqrt(NC))
    wfc = _uniform(ks[0], (IN, H1), b_fc)
    bfc = _uniform(ks[1], (H1,), b_fc)
    wfc1 = _uniform(ks[2], (H1, H2), b_fc1)
    bfc1 = _uniform(ks[3], (H2,), b_fc1)
    wih = _uniform(ks[4], (H2, NC), b_rnn)
    bih = _uniform(ks[5], (NC,), b_rnn)
    whh = _uniform(ks[6], (NC, NC), b_rnn)
    bhh = _uniform(ks[7], (NC,), b_rnn)
    return wfc, bfc, wfc1, bfc1, wih, bih, whh, bhh


def reference_forward(x, wfc, bfc, wfc1, bfc1, wih, bih, whh, bhh):
    # Pure-JAX reference applying the same bf16 rounding of MXU operands as the
    # kernel; recurrence and elementwise math in f32.
    xb = x.astype(jnp.bfloat16)
    a1 = jnp.maximum(jnp.dot(xb, wfc.astype(jnp.bfloat16),
                             preferred_element_type=jnp.float32) + bfc, 0.0)
    a2 = jnp.maximum(jnp.dot(a1.astype(jnp.bfloat16), wfc1.astype(jnp.bfloat16),
                             preferred_element_type=jnp.float32) + bfc1, 0.0)
    pre = (jnp.dot(a2.astype(jnp.bfloat16), wih.astype(jnp.bfloat16),
                   preferred_element_type=jnp.float32) + bih + bhh)   # (SEQ,B,NC)
    h = jnp.zeros((x.shape[1], NC), jnp.float32)
    outs = []
    for t in range(SEQ):
        h = jnp.tanh(pre[t] + jnp.dot(h, whh, precision=jax.lax.Precision.HIGHEST))
        outs.append(h)
    hs = jnp.stack(outs, axis=0)                                      # (SEQ,B,NC)
    return jax.nn.log_softmax(hs, axis=-1)


if __name__ == "__main__":
    B = 16                                   # 2 batch blocks -> 2-step parallel grid
    key = jax.random.PRNGKey(0)
    kx, kp = jax.random.split(key)
    x = jax.random.normal(kx, (SEQ, B, IN), jnp.float32)

    raw = init_params(kp)
    params = prepare_params(*raw)            # one-time prep, not per forward

    out = rnn_model_forward(x, *params)
    out = jax.block_until_ready(out)

    ref = reference_forward(x, *raw)
    assert out.shape == (SEQ, B, NC)
    assert bool(jnp.all(jnp.isfinite(out)))
    assert bool(jnp.allclose(out, ref, atol=5e-4, rtol=5e-4))
    print("KERNEL_OK")
</pallas_src>

<mosaic_0001>
module attributes {stable_mosaic.version = 11 : i64} {
  func.func @rnn_model_kernel(%arg0: i32, %arg1: memref<64x768xbf16, #tpu.memory_space<vmem>>, %arg2: memref<768x256xbf16, #tpu.memory_space<vmem>>, %arg3: memref<256x128xbf16, #tpu.memory_space<vmem>>, %arg4: memref<128x16xbf16, #tpu.memory_space<vmem>>, %arg5: memref<24x256xf32, #tpu.memory_space<vmem>>, %arg6: memref<64x16xf32, #tpu.memory_space<vmem>>) attributes {dimension_semantics = [#tpu.dimension_semantics<parallel>], iteration_bounds = array<i64: 2>, scalar_prefetch = 0 : i64, scratch_operands = 0 : i64, tpu.core_type = #tpu.core_type<tc>, window_params = [{transform_indices = @transform_0, window_bounds = array<i64: 64, 768>}, {pipeline_mode = #tpu.pipeline_mode<synchronous>, transform_indices = @transform_1, window_bounds = array<i64: 768, 256>}, {pipeline_mode = #tpu.pipeline_mode<synchronous>, transform_indices = @transform_2, window_bounds = array<i64: 256, 128>}, {pipeline_mode = #tpu.pipeline_mode<synchronous>, transform_indices = @transform_3, window_bounds = array<i64: 128, 16>}, {pipeline_mode = #tpu.pipeline_mode<synchronous>, transform_indices = @transform_4, window_bounds = array<i64: 24, 256>}, {transform_indices = @transform_5, window_bounds = array<i64: 64, 16>}]} {
    %c0 = arith.constant 0 : index
    %c0_0 = arith.constant 0 : index
    %0 = vector.load %arg5[%c0, %c0_0] : memref<24x256xf32, #tpu.memory_space<vmem>>, vector<1x256xf32>
    %c1 = arith.constant 1 : index
    %c0_1 = arith.constant 0 : index
    %1 = vector.load %arg5[%c1, %c0_1] : memref<24x256xf32, #tpu.memory_space<vmem>>, vector<1x128xf32>
    %c2 = arith.constant 2 : index
    %c0_2 = arith.constant 0 : index
    %2 = vector.load %arg5[%c2, %c0_2] : memref<24x256xf32, #tpu.memory_space<vmem>>, vector<1x16xf32>
    %c8 = arith.constant 8 : index
    %c0_3 = arith.constant 0 : index
    %3 = vector.load %arg5[%c8, %c0_3] : memref<24x256xf32, #tpu.memory_space<vmem>>, vector<16x16xf32>
    %c0_4 = arith.constant 0 : index
    %c0_5 = arith.constant 0 : index
    %4 = vector.load %arg1[%c0_4, %c0_5] : memref<64x768xbf16, #tpu.memory_space<vmem>>, vector<64x768xbf16>
    %c0_6 = arith.constant 0 : index
    %c0_7 = arith.constant 0 : index
    %5 = vector.load %arg2[%c0_6, %c0_7] : memref<768x256xbf16, #tpu.memory_space<vmem>>, vector<768x256xbf16>
    %cst = arith.constant dense<0.000000e+00> : vector<64x256xf32>
    %6 = tpu.matmul %4, %5, %cst {dimension_numbers = #tpu.dot_dimension_numbers<[1], [0], [0], [1], [0, 0, 1, 1], [], []>} : vector<64x768xbf16>, vector<768x256xbf16>, vector<64x256xf32> -> vector<64x256xf32>
    %7 = vector.broadcast %0 : vector<1x256xf32> to vector<64x256xf32>
    %8 = arith.addf %6, %7 : vector<64x256xf32>
    %cst_8 = arith.constant 0.000000e+00 : f32
    %9 = vector.broadcast %cst_8 : f32 to vector<64x256xf32>
    %10 = arith.maximumf %8, %9 : vector<64x256xf32>
    %11 = arith.truncf %10 : vector<64x256xf32> to vector<64x256xbf16>
    %c0_9 = arith.constant 0 : index
    %c0_10 = arith.constant 0 : index
    %12 = vector.load %arg3[%c0_9, %c0_10] : memref<256x128xbf16, #tpu.memory_space<vmem>>, vector<256x128xbf16>
    %cst_11 = arith.constant dense<0.000000e+00> : vector<64x128xf32>
    %13 = tpu.matmul %11, %12, %cst_11 {dimension_numbers = #tpu.dot_dimension_numbers<[1], [0], [0], [1], [0, 0, 1, 1], [], []>} : vector<64x256xbf16>, vector<256x128xbf16>, vector<64x128xf32> -> vector<64x128xf32>
    %14 = vector.broadcast %1 : vector<1x128xf32> to vector<64x128xf32>
    %15 = arith.addf %13, %14 : vector<64x128xf32>
    %cst_12 = arith.constant 0.000000e+00 : f32
    %16 = vector.broadcast %cst_12 : f32 to vector<64x128xf32>
    %17 = arith.maximumf %15, %16 : vector<64x128xf32>
    %18 = arith.truncf %17 : vector<64x128xf32> to vector<64x128xbf16>
    %c0_13 = arith.constant 0 : index
    %c0_14 = arith.constant 0 : index
    %19 = vector.load %arg4[%c0_13, %c0_14] : memref<128x16xbf16, #tpu.memory_space<vmem>>, vector<128x16xbf16>
    %cst_15 = arith.constant dense<0.000000e+00> : vector<64x16xf32>
    %20 = tpu.matmul %18, %19, %cst_15 {dimension_numbers = #tpu.dot_dimension_numbers<[1], [0], [0], [1], [0, 0, 1, 1], [], []>} : vector<64x128xbf16>, vector<128x16xbf16>, vector<64x16xf32> -> vector<64x16xf32>
    %21 = vector.broadcast %2 : vector<1x16xf32> to vector<64x16xf32>
    %22 = arith.addf %20, %21 : vector<64x16xf32>
    %23 = vector.extract_strided_slice %3 {offsets = [0, 0], sizes = [1, 16], strides = [1, 1]} : vector<16x16xf32> to vector<1x16xf32>
    %24 = vector.shape_cast %23 : vector<1x16xf32> to vector<1x16xf32>
    %25 = vector.broadcast %24 : vector<1x16xf32> to vector<8x16xf32>
    %26 = vector.extract_strided_slice %3 {offsets = [1, 0], sizes = [1, 16], strides = [1, 1]} : vector<16x16xf32> to vector<1x16xf32>
    %27 = vector.shape_cast %26 : vector<1x16xf32> to vector<1x16xf32>
    %28 = vector.broadcast %27 : vector<1x16xf32> to vector<8x16xf32>
    %29 = vector.extract_strided_slice %3 {offsets = [2, 0], sizes = [1, 16], strides = [1, 1]} : vector<16x16xf32> to vector<1x16xf32>
    %30 = vector.shape_cast %29 : vector<1x16xf32> to vector<1x16xf32>
    %31 = vector.broadcast %30 : vector<1x16xf32> to vector<8x16xf32>
    %32 = vector.extract_strided_slice %3 {offsets = [3, 0], sizes = [1, 16], strides = [1, 1]} : vector<16x16xf32> to vector<1x16xf32>
    %33 = vector.shape_cast %32 : vector<1x16xf32> to vector<1x16xf32>
    %34 = vector.broadcast %33 : vector<1x16xf32> to vector<8x16xf32>
    %35 = vector.extract_strided_slice %3 {offsets = [4, 0], sizes = [1, 16], strides = [1, 1]} : vector<16x16xf32> to vector<1x16xf32>
    %36 = vector.shape_cast %35 : vector<1x16xf32> to vector<1x16xf32>
    %37 = vector.broadcast %36 : vector<1x16xf32> to vector<8x16xf32>
    %38 = vector.extract_strided_slice %3 {offsets = [5, 0], sizes = [1, 16], strides = [1, 1]} : vector<16x16xf32> to vector<1x16xf32>
    %39 = vector.shape_cast %38 : vector<1x16xf32> to vector<1x16xf32>
    %40 = vector.broadcast %39 : vector<1x16xf32> to vector<8x16xf32>
    %41 = vector.extract_strided_slice %3 {offsets = [6, 0], sizes = [1, 16], strides = [1, 1]} : vector<16x16xf32> to vector<1x16xf32>
    %42 = vector.shape_cast %41 : vector<1x16xf32> to vector<1x16xf32>
    %43 = vector.broadcast %42 : vector<1x16xf32> to vector<8x16xf32>
    %44 = vector.extract_strided_slice %3 {offsets = [7, 0], sizes = [1, 16], strides = [1, 1]} : vector<16x16xf32> to vector<1x16xf32>
    %45 = vector.shape_cast %44 : vector<1x16xf32> to vector<1x16xf32>
    %46 = vector.broadcast %45 : vector<1x16xf32> to vector<8x16xf32>
    %47 = vector.extract_strided_slice %3 {offsets = [8, 0], sizes = [1, 16], strides = [1, 1]} : vector<16x16xf32> to vector<1x16xf32>
    %48 = vector.shape_cast %47 : vector<1x16xf32> to vector<1x16xf32>
    %49 = vector.broadcast %48 : vector<1x16xf32> to vector<8x16xf32>
    %50 = vector.extract_strided_slice %3 {offsets = [9, 0], sizes = [1, 16], strides = [1, 1]} : vector<16x16xf32> to vector<1x16xf32>
    %51 = vector.shape_cast %50 : vector<1x16xf32> to vector<1x16xf32>
    %52 = vector.broadcast %51 : vector<1x16xf32> to vector<8x16xf32>
    %53 = vector.extract_strided_slice %3 {offsets = [10, 0], sizes = [1, 16], strides = [1, 1]} : vector<16x16xf32> to vector<1x16xf32>
    %54 = vector.shape_cast %53 : vector<1x16xf32> to vector<1x16xf32>
    %55 = vector.broadcast %54 : vector<1x16xf32> to vector<8x16xf32>
    %56 = vector.extract_strided_slice %3 {offsets = [11, 0], sizes = [1, 16], strides = [1, 1]} : vector<16x16xf32> to vector<1x16xf32>
    %57 = vector.shape_cast %56 : vector<1x16xf32> to vector<1x16xf32>
    %58 = vector.broadcast %57 : vector<1x16xf32> to vector<8x16xf32>
    %59 = vector.extract_strided_slice %3 {offsets = [12, 0], sizes = [1, 16], strides = [1, 1]} : vector<16x16xf32> to vector<1x16xf32>
    %60 = vector.shape_cast %59 : vector<1x16xf32> to vector<1x16xf32>
    %61 = vector.broadcast %60 : vector<1x16xf32> to vector<8x16xf32>
    %62 = vector.extract_strided_slice %3 {offsets = [13, 0], sizes = [1, 16], strides = [1, 1]} : vector<16x16xf32> to vector<1x16xf32>
    %63 = vector.shape_cast %62 : vector<1x16xf32> to vector<1x16xf32>
    %64 = vector.broadcast %63 : vector<1x16xf32> to vector<8x16xf32>
    %65 = vector.extract_strided_slice %3 {offsets = [14, 0], sizes = [1, 16], strides = [1, 1]} : vector<16x16xf32> to vector<1x16xf32>
    %66 = vector.shape_cast %65 : vector<1x16xf32> to vector<1x16xf32>
    %67 = vector.broadcast %66 : vector<1x16xf32> to vector<8x16xf32>
    %68 = vector.extract_strided_slice %3 {offsets = [15, 0], sizes = [1, 16], strides = [1, 1]} : vector<16x16xf32> to vector<1x16xf32>
    %69 = vector.shape_cast %68 : vector<1x16xf32> to vector<1x16xf32>
    %70 = vector.broadcast %69 : vector<1x16xf32> to vector<8x16xf32>
    %cst_16 = arith.constant 0.000000e+00 : f32
    %71 = vector.broadcast %cst_16 : f32 to vector<8x16xf32>
    %72 = vector.extract_strided_slice %71 {offsets = [0, 0], sizes = [8, 1], strides = [1, 1]} : vector<8x16xf32> to vector<8x1xf32>
    %73 = vector.broadcast %72 : vector<8x1xf32> to vector<8x16xf32>
    %74 = arith.mulf %73, %25 : vector<8x16xf32>
    %75 = vector.extract_strided_slice %71 {offsets = [0, 1], sizes = [8, 1], strides = [1, 1]} : vector<8x16xf32> to vector<8x1xf32>
    %76 = vector.broadcast %75 : vector<8x1xf32> to vector<8x16xf32>
    %77 = arith.mulf %76, %28 : vector<8x16xf32>
    %78 = vector.extract_strided_slice %71 {offsets = [0, 2], sizes = [8, 1], strides = [1, 1]} : vector<8x16xf32> to vector<8x1xf32>
    %79 = vector.broadcast %78 : vector<8x1xf32> to vector<8x16xf32>
    %80 = arith.mulf %79, %31 : vector<8x16xf32>
    %81 = vector.extract_strided_slice %71 {offsets = [0, 3], sizes = [8, 1], strides = [1, 1]} : vector<8x16xf32> to vector<8x1xf32>
    %82 = vector.broadcast %81 : vector<8x1xf32> to vector<8x16xf32>
    %83 = arith.mulf %82, %34 : vector<8x16xf32>
    %84 = vector.extract_strided_slice %71 {offsets = [0, 4], sizes = [8, 1], strides = [1, 1]} : vector<8x16xf32> to vector<8x1xf32>
    %85 = vector.broadcast %84 : vector<8x1xf32> to vector<8x16xf32>
    %86 = arith.mulf %85, %37 : vector<8x16xf32>
    %87 = vector.extract_strided_slice %71 {offsets = [0, 5], sizes = [8, 1], strides = [1, 1]} : vector<8x16xf32> to vector<8x1xf32>
    %88 = vector.broadcast %87 : vector<8x1xf32> to vector<8x16xf32>
    %89 = arith.mulf %88, %40 : vector<8x16xf32>
    %90 = vector.extract_strided_slice %71 {offsets = [0, 6], sizes = [8, 1], strides = [1, 1]} : vector<8x16xf32> to vector<8x1xf32>
    %91 = vector.broadcast %90 : vector<8x1xf32> to vector<8x16xf32>
    %92 = arith.mulf %91, %43 : vector<8x16xf32>
    %93 = vector.extract_strided_slice %71 {offsets = [0, 7], sizes = [8, 1], strides = [1, 1]} : vector<8x16xf32> to vector<8x1xf32>
    %94 = vector.broadcast %93 : vector<8x1xf32> to vector<8x16xf32>
    %95 = arith.mulf %94, %46 : vector<8x16xf32>
    %96 = vector.extract_strided_slice %71 {offsets = [0, 8], sizes = [8, 1], strides = [1, 1]} : vector<8x16xf32> to vector<8x1xf32>
    %97 = vector.broadcast %96 : vector<8x1xf32> to vector<8x16xf32>
    %98 = arith.mulf %97, %49 : vector<8x16xf32>
    %99 = vector.extract_strided_slice %71 {offsets = [0, 9], sizes = [8, 1], strides = [1, 1]} : vector<8x16xf32> to vector<8x1xf32>
    %100 = vector.broadcast %99 : vector<8x1xf32> to vector<8x16xf32>
    %101 = arith.mulf %100, %52 : vector<8x16xf32>
    %102 = vector.extract_strided_slice %71 {offsets = [0, 10], sizes = [8, 1], strides = [1, 1]} : vector<8x16xf32> to vector<8x1xf32>
    %103 = vector.broadcast %102 : vector<8x1xf32> to vector<8x16xf32>
    %104 = arith.mulf %103, %55 : vector<8x16xf32>
    %105 = vector.extract_strided_slice %71 {offsets = [0, 11], sizes = [8, 1], strides = [1, 1]} : vector<8x16xf32> to vector<8x1xf32>
    %106 = vector.broadcast %105 : vector<8x1xf32> to vector<8x16xf32>
    %107 = arith.mulf %106, %58 : vector<8x16xf32>
    %108 = vector.extract_strided_slice %71 {offsets = [0, 12], sizes = [8, 1], strides = [1, 1]} : vector<8x16xf32> to vector<8x1xf32>
    %109 = vector.broadcast %108 : vector<8x1xf32> to vector<8x16xf32>
    %110 = arith.mulf %109, %61 : vector<8x16xf32>
    %111 = vector.extract_strided_slice %71 {offsets = [0, 13], sizes = [8, 1], strides = [1, 1]} : vector<8x16xf32> to vector<8x1xf32>
    %112 = vector.broadcast %111 : vector<8x1xf32> to vector<8x16xf32>
    %113 = arith.mulf %112, %64 : vector<8x16xf32>
    %114 = vector.extract_strided_slice %71 {offsets = [0, 14], sizes = [8, 1], strides = [1, 1]} : vector<8x16xf32> to vector<8x1xf32>
    %115 = vector.broadcast %114 : vector<8x1xf32> to vector<8x16xf32>
    %116 = arith.mulf %115, %67 : vector<8x16xf32>
    %117 = vector.extract_strided_slice %71 {offsets = [0, 15], sizes = [8, 1], strides = [1, 1]} : vector<8x16xf32> to vector<8x1xf32>
    %118 = vector.broadcast %117 : vector<8x1xf32> to vector<8x16xf32>
    %119 = arith.mulf %118, %70 : vector<8x16xf32>
    %120 = arith.addf %74, %77 : vector<8x16xf32>
    %121 = arith.addf %80, %83 : vector<8x16xf32>
    %122 = arith.addf %86, %89 : vector<8x16xf32>
    %123 = arith.addf %92, %95 : vector<8x16xf32>
    %124 = arith.addf %98, %101 : vector<8x16xf32>
    %125 = arith.addf %104, %107 : vector<8x16xf32>
    %126 = arith.addf %110, %113 : vector<8x16xf32>
    %127 = arith.addf %116, %119 : vector<8x16xf32>
    %128 = arith.addf %120, %121 : vector<8x16xf32>
    %129 = arith.addf %122, %123 : vector<8x16xf32>
    %130 = arith.addf %124, %125 : vector<8x16xf32>
    %131 = arith.addf %126, %127 : vector<8x16xf32>
    %132 = arith.addf %128, %129 : vector<8x16xf32>
    %133 = arith.addf %130, %131 : vector<8x16xf32>
    %134 = arith.addf %132, %133 : vector<8x16xf32>
    %135 = vector.extract_strided_slice %22 {offsets = [0, 0], sizes = [8, 16], strides = [1, 1]} : vector<64x16xf32> to vector<8x16xf32>
    %136 = arith.addf %135, %134 : vector<8x16xf32>
    %137 = math.tanh %136 : vector<8x16xf32>
    %138 = vector.extract_strided_slice %137 {offsets = [0, 0], sizes = [8, 1], strides = [1, 1]} : vector<8x16xf32> to vector<8x1xf32>
    %139 = vector.broadcast %138 : vector<8x1xf32> to vector<8x16xf32>
    %140 = arith.mulf %139, %25 : vector<8x16xf32>
    %141 = vector.extract_strided_slice %137 {offsets = [0, 1], sizes = [8, 1], strides = [1, 1]} : vector<8x16xf32> to vector<8x1xf32>
    %142 = vector.broadcast %141 : vector<8x1xf32> to vector<8x16xf32>
    %143 = arith.mulf %142, %28 : vector<8x16xf32>
    %144 = vector.extract_strided_slice %137 {offsets = [0, 2], sizes = [8, 1], strides = [1, 1]} : vector<8x16xf32> to vector<8x1xf32>
    %145 = vector.broadcast %144 : vector<8x1xf32> to vector<8x16xf32>
    %146 = arith.mulf %145, %31 : vector<8x16xf32>
    %147 = vector.extract_strided_slice %137 {offsets = [0, 3], sizes = [8, 1], strides = [1, 1]} : vector<8x16xf32> to vector<8x1xf32>
    %148 = vector.broadcast %147 : vector<8x1xf32> to vector<8x16xf32>
    %149 = arith.mulf %148, %34 : vector<8x16xf32>
    %150 = vector.extract_strided_slice %137 {offsets = [0, 4], sizes = [8, 1], strides = [1, 1]} : vector<8x16xf32> to vector<8x1xf32>
    %151 = vector.broadcast %150 : vector<8x1xf32> to vector<8x16xf32>
    %152 = arith.mulf %151, %37 : vector<8x16xf32>
    %153 = vector.extract_strided_slice %137 {offsets = [0, 5], sizes = [8, 1], strides = [1, 1]} : vector<8x16xf32> to vector<8x1xf32>
    %154 = vector.broadcast %153 : vector<8x1xf32> to vector<8x16xf32>
    %155 = arith.mulf %154, %40 : vector<8x16xf32>
    %156 = vector.extract_strided_slice %137 {offsets = [0, 6], sizes = [8, 1], strides = [1, 1]} : vector<8x16xf32> to vector<8x1xf32>
    %157 = vector.broadcast %156 : vector<8x1xf32> to vector<8x16xf32>
    %158 = arith.mulf %157, %43 : vector<8x16xf32>
    %159 = vector.extract_strided_slice %137 {offsets = [0, 7], sizes = [8, 1], strides = [1, 1]} : vector<8x16xf32> to vector<8x1xf32>
    %160 = vector.broadcast %159 : vector<8x1xf32> to vector<8x16xf32>
    %161 = arith.mulf %160, %46 : vector<8x16xf32>
    %162 = vector.extract_strided_slice %137 {offsets = [0, 8], sizes = [8, 1], strides = [1, 1]} : vector<8x16xf32> to vector<8x1xf32>
    %163 = vector.broadcast %162 : vector<8x1xf32> to vector<8x16xf32>
    %164 = arith.mulf %163, %49 : vector<8x16xf32>
    %165 = vector.extract_strided_slice %137 {offsets = [0, 9], sizes = [8, 1], strides = [1, 1]} : vector<8x16xf32> to vector<8x1xf32>
    %166 = vector.broadcast %165 : vector<8x1xf32> to vector<8x16xf32>
    %167 = arith.mulf %166, %52 : vector<8x16xf32>
    %168 = vector.extract_strided_slice %137 {offsets = [0, 10], sizes = [8, 1], strides = [1, 1]} : vector<8x16xf32> to vector<8x1xf32>
    %169 = vector.broadcast %168 : vector<8x1xf32> to vector<8x16xf32>
    %170 = arith.mulf %169, %55 : vector<8x16xf32>
    %171 = vector.extract_strided_slice %137 {offsets = [0, 11], sizes = [8, 1], strides = [1, 1]} : vector<8x16xf32> to vector<8x1xf32>
    %172 = vector.broadcast %171 : vector<8x1xf32> to vector<8x16xf32>
    %173 = arith.mulf %172, %58 : vector<8x16xf32>
    %174 = vector.extract_strided_slice %137 {offsets = [0, 12], sizes = [8, 1], strides = [1, 1]} : vector<8x16xf32> to vector<8x1xf32>
    %175 = vector.broadcast %174 : vector<8x1xf32> to vector<8x16xf32>
    %176 = arith.mulf %175, %61 : vector<8x16xf32>
    %177 = vector.extract_strided_slice %137 {offsets = [0, 13], sizes = [8, 1], strides = [1, 1]} : vector<8x16xf32> to vector<8x1xf32>
    %178 = vector.broadcast %177 : vector<8x1xf32> to vector<8x16xf32>
    %179 = arith.mulf %178, %64 : vector<8x16xf32>
    %180 = vector.extract_strided_slice %137 {offsets = [0, 14], sizes = [8, 1], strides = [1, 1]} : vector<8x16xf32> to vector<8x1xf32>
    %181 = vector.broadcast %180 : vector<8x1xf32> to vector<8x16xf32>
    %182 = arith.mulf %181, %67 : vector<8x16xf32>
    %183 = vector.extract_strided_slice %137 {offsets = [0, 15], sizes = [8, 1], strides = [1, 1]} : vector<8x16xf32> to vector<8x1xf32>
    %184 = vector.broadcast %183 : vector<8x1xf32> to vector<8x16xf32>
    %185 = arith.mulf %184, %70 : vector<8x16xf32>
    %186 = arith.addf %140, %143 : vector<8x16xf32>
    %187 = arith.addf %146, %149 : vector<8x16xf32>
    %188 = arith.addf %152, %155 : vector<8x16xf32>
    %189 = arith.addf %158, %161 : vector<8x16xf32>
    %190 = arith.addf %164, %167 : vector<8x16xf32>
    %191 = arith.addf %170, %173 : vector<8x16xf32>
    %192 = arith.addf %176, %179 : vector<8x16xf32>
    %193 = arith.addf %182, %185 : vector<8x16xf32>
    %194 = arith.addf %186, %187 : vector<8x16xf32>
    %195 = arith.addf %188, %189 : vector<8x16xf32>
    %196 = arith.addf %190, %191 : vector<8x16xf32>
    %197 = arith.addf %192, %193 : vector<8x16xf32>
    %198 = arith.addf %194, %195 : vector<8x16xf32>
    %199 = arith.addf %196, %197 : vector<8x16xf32>
    %200 = arith.addf %198, %199 : vector<8x16xf32>
    %201 = vector.extract_strided_slice %22 {offsets = [8, 0], sizes = [8, 16], strides = [1, 1]} : vector<64x16xf32> to vector<8x16xf32>
    %202 = arith.addf %201, %200 : vector<8x16xf32>
    %203 = math.tanh %202 : vector<8x16xf32>
    %204 = vector.extract_strided_slice %203 {offsets = [0, 0], sizes = [8, 1], strides = [1, 1]} : vector<8x16xf32> to vector<8x1xf32>
    %205 = vector.broadcast %204 : vector<8x1xf32> to vector<8x16xf32>
    %206 = arith.mulf %205, %25 : vector<8x16xf32>
    %207 = vector.extract_strided_slice %203 {offsets = [0, 1], sizes = [8, 1], strides = [1, 1]} : vector<8x16xf32> to vector<8x1xf32>
    %208 = vector.broadcast %207 : vector<8x1xf32> to vector<8x16xf32>
    %209 = arith.mulf %208, %28 : vector<8x16xf32>
    %210 = vector.extract_strided_slice %203 {offsets = [0, 2], sizes = [8, 1], strides = [1, 1]} : vector<8x16xf32> to vector<8x1xf32>
    %211 = vector.broadcast %210 : vector<8x1xf32> to vector<8x16xf32>
    %212 = arith.mulf %211, %31 : vector<8x16xf32>
    %213 = vector.extract_strided_slice %203 {offsets = [0, 3], sizes = [8, 1], strides = [1, 1]} : vector<8x16xf32> to vector<8x1xf32>
    %214 = vector.broadcast %213 : vector<8x1xf32> to vector<8x16xf32>
    %215 = arith.mulf %214, %34 : vector<8x16xf32>
    %216 = vector.extract_strided_slice %203 {offsets = [0, 4], sizes = [8, 1], strides = [1, 1]} : vector<8x16xf32> to vector<8x1xf32>
    %217 = vector.broadcast %216 : vector<8x1xf32> to vector<8x16xf32>
    %218 = arith.mulf %217, %37 : vector<8x16xf32>
    %219 = vector.extract_strided_slice %203 {offsets = [0, 5], sizes = [8, 1], strides = [1, 1]} : vector<8x16xf32> to vector<8x1xf32>
    %220 = vector.broadcast %219 : vector<8x1xf32> to vector<8x16xf32>
    %221 = arith.mulf %220, %40 : vector<8x16xf32>
    %222 = vector.extract_strided_slice %203 {offsets = [0, 6], sizes = [8, 1], strides = [1, 1]} : vector<8x16xf32> to vector<8x1xf32>
    %223 = vector.broadcast %222 : vector<8x1xf32> to vector<8x16xf32>
    %224 = arith.mulf %223, %43 : vector<8x16xf32>
    %225 = vector.extract_strided_slice %203 {offsets = [0, 7], sizes = [8, 1], strides = [1, 1]} : vector<8x16xf32> to vector<8x1xf32>
    %226 = vector.broadcast %225 : vector<8x1xf32> to vector<8x16xf32>
    %227 = arith.mulf %226, %46 : vector<8x16xf32>
    %228 = vector.extract_strided_slice %203 {offsets = [0, 8], sizes = [8, 1], strides = [1, 1]} : vector<8x16xf32> to vector<8x1xf32>
    %229 = vector.broadcast %228 : vector<8x1xf32> to vector<8x16xf32>
    %230 = arith.mulf %229, %49 : vector<8x16xf32>
    %231 = vector.extract_strided_slice %203 {offsets = [0, 9], sizes = [8, 1], strides = [1, 1]} : vector<8x16xf32> to vector<8x1xf32>
    %232 = vector.broadcast %231 : vector<8x1xf32> to vector<8x16xf32>
    %233 = arith.mulf %232, %52 : vector<8x16xf32>
    %234 = vector.extract_strided_slice %203 {offsets = [0, 10], sizes = [8, 1], strides = [1, 1]} : vector<8x16xf32> to vector<8x1xf32>
    %235 = vector.broadcast %234 : vector<8x1xf32> to vector<8x16xf32>
    %236 = arith.mulf %235, %55 : vector<8x16xf32>
    %237 = vector.extract_strided_slice %203 {offsets = [0, 11], sizes = [8, 1], strides = [1, 1]} : vector<8x16xf32> to vector<8x1xf32>
    %238 = vector.broadcast %237 : vector<8x1xf32> to vector<8x16xf32>
    %239 = arith.mulf %238, %58 : vector<8x16xf32>
    %240 = vector.extract_strided_slice %203 {offsets = [0, 12], sizes = [8, 1], strides = [1, 1]} : vector<8x16xf32> to vector<8x1xf32>
    %241 = vector.broadcast %240 : vector<8x1xf32> to vector<8x16xf32>
    %242 = arith.mulf %241, %61 : vector<8x16xf32>
    %243 = vector.extract_strided_slice %203 {offsets = [0, 13], sizes = [8, 1], strides = [1, 1]} : vector<8x16xf32> to vector<8x1xf32>
    %244 = vector.broadcast %243 : vector<8x1xf32> to vector<8x16xf32>
    %245 = arith.mulf %244, %64 : vector<8x16xf32>
    %246 = vector.extract_strided_slice %203 {offsets = [0, 14], sizes = [8, 1], strides = [1, 1]} : vector<8x16xf32> to vector<8x1xf32>
    %247 = vector.broadcast %246 : vector<8x1xf32> to vector<8x16xf32>
    %248 = arith.mulf %247, %67 : vector<8x16xf32>
    %249 = vector.extract_strided_slice %203 {offsets = [0, 15], sizes = [8, 1], strides = [1, 1]} : vector<8x16xf32> to vector<8x1xf32>
    %250 = vector.broadcast %249 : vector<8x1xf32> to vector<8x16xf32>
    %251 = arith.mulf %250, %70 : vector<8x16xf32>
    %252 = arith.addf %206, %209 : vector<8x16xf32>
    %253 = arith.addf %212, %215 : vector<8x16xf32>
    %254 = arith.addf %218, %221 : vector<8x16xf32>
    %255 = arith.addf %224, %227 : vector<8x16xf32>
    %256 = arith.addf %230, %233 : vector<8x16xf32>
    %257 = arith.addf %236, %239 : vector<8x16xf32>
    %258 = arith.addf %242, %245 : vector<8x16xf32>
    %259 = arith.addf %248, %251 : vector<8x16xf32>
    %260 = arith.addf %252, %253 : vector<8x16xf32>
    %261 = arith.addf %254, %255 : vector<8x16xf32>
    %262 = arith.addf %256, %257 : vector<8x16xf32>
    %263 = arith.addf %258, %259 : vector<8x16xf32>
    %264 = arith.addf %260, %261 : vector<8x16xf32>
    %265 = arith.addf %262, %263 : vector<8x16xf32>
    %266 = arith.addf %264, %265 : vector<8x16xf32>
    %267 = vector.extract_strided_slice %22 {offsets = [16, 0], sizes = [8, 16], strides = [1, 1]} : vector<64x16xf32> to vector<8x16xf32>
    %268 = arith.addf %267, %266 : vector<8x16xf32>
    %269 = math.tanh %268 : vector<8x16xf32>
    %270 = vector.extract_strided_slice %269 {offsets = [0, 0], sizes = [8, 1], strides = [1, 1]} : vector<8x16xf32> to vector<8x1xf32>
    %271 = vector.broadcast %270 : vector<8x1xf32> to vector<8x16xf32>
    %272 = arith.mulf %271, %25 : vector<8x16xf32>
    %273 = vector.extract_strided_slice %269 {offsets = [0, 1], sizes = [8, 1], strides = [1, 1]} : vector<8x16xf32> to vector<8x1xf32>
    %274 = vector.broadcast %273 : vector<8x1xf32> to vector<8x16xf32>
    %275 = arith.mulf %274, %28 : vector<8x16xf32>
    %276 = vector.extract_strided_slice %269 {offsets = [0, 2], sizes = [8, 1], strides = [1, 1]} : vector<8x16xf32> to vector<8x1xf32>
    %277 = vector.broadcast %276 : vector<8x1xf32> to vector<8x16xf32>
    %278 = arith.mulf %277, %31 : vector<8x16xf32>
    %279 = vector.extract_strided_slice %269 {offsets = [0, 3], sizes = [8, 1], strides = [1, 1]} : vector<8x16xf32> to vector<8x1xf32>
    %280 = vector.broadcast %279 : vector<8x1xf32> to vector<8x16xf32>
    %281 = arith.mulf %280, %34 : vector<8x16xf32>
    %282 = vector.extract_strided_slice %269 {offsets = [0, 4], sizes = [8, 1], strides = [1, 1]} : vector<8x16xf32> to vector<8x1xf32>
    %283 = vector.broadcast %282 : vector<8x1xf32> to vector<8x16xf32>
    %284 = arith.mulf %283, %37 : vector<8x16xf32>
    %285 = vector.extract_strided_slice %269 {offsets = [0, 5], sizes = [8, 1], strides = [1, 1]} : vector<8x16xf32> to vector<8x1xf32>
    %286 = vector.broadcast %285 : vector<8x1xf32> to vector<8x16xf32>
    %287 = arith.mulf %286, %40 : vector<8x16xf32>
    %288 = vector.extract_strided_slice %269 {offsets = [0, 6], sizes = [8, 1], strides = [1, 1]} : vector<8x16xf32> to vector<8x1xf32>
    %289 = vector.broadcast %288 : vector<8x1xf32> to vector<8x16xf32>
    %290 = arith.mulf %289, %43 : vector<8x16xf32>
    %291 = vector.extract_strided_slice %269 {offsets = [0, 7], sizes = [8, 1], strides = [1, 1]} : vector<8x16xf32> to vector<8x1xf32>
    %292 = vector.broadcast %291 : vector<8x1xf32> to vector<8x16xf32>
    %293 = arith.mulf %292, %46 : vector<8x16xf32>
    %294 = vector.extract_strided_slice %269 {offsets = [0, 8], sizes = [8, 1], strides = [1, 1]} : vector<8x16xf32> to vector<8x1xf32>
    %295 = vector.broadcast %294 : vector<8x1xf32> to vector<8x16xf32>
    %296 = arith.mulf %295, %49 : vector<8x16xf32>
    %297 = vector.extract_strided_slice %269 {offsets = [0, 9], sizes = [8, 1], strides = [1, 1]} : vector<8x16xf32> to vector<8x1xf32>
    %298 = vector.broadcast %297 : vector<8x1xf32> to vector<8x16xf32>
    %299 = arith.mulf %298, %52 : vector<8x16xf32>
    %300 = vector.extract_strided_slice %269 {offsets = [0, 10], sizes = [8, 1], strides = [1, 1]} : vector<8x16xf32> to vector<8x1xf32>
    %301 = vector.broadcast %300 : vector<8x1xf32> to vector<8x16xf32>
    %302 = arith.mulf %301, %55 : vector<8x16xf32>
    %303 = vector.extract_strided_slice %269 {offsets = [0, 11], sizes = [8, 1], strides = [1, 1]} : vector<8x16xf32> to vector<8x1xf32>
    %304 = vector.broadcast %303 : vector<8x1xf32> to vector<8x16xf32>
    %305 = arith.mulf %304, %58 : vector<8x16xf32>
    %306 = vector.extract_strided_slice %269 {offsets = [0, 12], sizes = [8, 1], strides = [1, 1]} : vector<8x16xf32> to vector<8x1xf32>
    %307 = vector.broadcast %306 : vector<8x1xf32> to vector<8x16xf32>
    %308 = arith.mulf %307, %61 : vector<8x16xf32>
    %309 = vector.extract_strided_slice %269 {offsets = [0, 13], sizes = [8, 1], strides = [1, 1]} : vector<8x16xf32> to vector<8x1xf32>
    %310 = vector.broadcast %309 : vector<8x1xf32> to vector<8x16xf32>
    %311 = arith.mulf %310, %64 : vector<8x16xf32>
    %312 = vector.extract_strided_slice %269 {offsets = [0, 14], sizes = [8, 1], strides = [1, 1]} : vector<8x16xf32> to vector<8x1xf32>
    %313 = vector.broadcast %312 : vector<8x1xf32> to vector<8x16xf32>
    %314 = arith.mulf %313, %67 : vector<8x16xf32>
    %315 = vector.extract_strided_slice %269 {offsets = [0, 15], sizes = [8, 1], strides = [1, 1]} : vector<8x16xf32> to vector<8x1xf32>
    %316 = vector.broadcast %315 : vector<8x1xf32> to vector<8x16xf32>
    %317 = arith.mulf %316, %70 : vector<8x16xf32>
    %318 = arith.addf %272, %275 : vector<8x16xf32>
    %319 = arith.addf %278, %281 : vector<8x16xf32>
    %320 = arith.addf %284, %287 : vector<8x16xf32>
    %321 = arith.addf %290, %293 : vector<8x16xf32>
    %322 = arith.addf %296, %299 : vector<8x16xf32>
    %323 = arith.addf %302, %305 : vector<8x16xf32>
    %324 = arith.addf %308, %311 : vector<8x16xf32>
    %325 = arith.addf %314, %317 : vector<8x16xf32>
    %326 = arith.addf %318, %319 : vector<8x16xf32>
    %327 = arith.addf %320, %321 : vector<8x16xf32>
    %328 = arith.addf %322, %323 : vector<8x16xf32>
    %329 = arith.addf %324, %325 : vector<8x16xf32>
    %330 = arith.addf %326, %327 : vector<8x16xf32>
    %331 = arith.addf %328, %329 : vector<8x16xf32>
    %332 = arith.addf %330, %331 : vector<8x16xf32>
    %333 = vector.extract_strided_slice %22 {offsets = [24, 0], sizes = [8, 16], strides = [1, 1]} : vector<64x16xf32> to vector<8x16xf32>
    %334 = arith.addf %333, %332 : vector<8x16xf32>
    %335 = math.tanh %334 : vector<8x16xf32>
    %336 = vector.extract_strided_slice %335 {offsets = [0, 0], sizes = [8, 1], strides = [1, 1]} : vector<8x16xf32> to vector<8x1xf32>
    %337 = vector.broadcast %336 : vector<8x1xf32> to vector<8x16xf32>
    %338 = arith.mulf %337, %25 : vector<8x16xf32>
    %339 = vector.extract_strided_slice %335 {offsets = [0, 1], sizes = [8, 1], strides = [1, 1]} : vector<8x16xf32> to vector<8x1xf32>
    %340 = vector.broadcast %339 : vector<8x1xf32> to vector<8x16xf32>
    %341 = arith.mulf %340, %28 : vector<8x16xf32>
    %342 = vector.extract_strided_slice %335 {offsets = [0, 2], sizes = [8, 1], strides = [1, 1]} : vector<8x16xf32> to vector<8x1xf32>
    %343 = vector.broadcast %342 : vector<8x1xf32> to vector<8x16xf32>
    %344 = arith.mulf %343, %31 : vector<8x16xf32>
    %345 = vector.extract_strided_slice %335 {offsets = [0, 3], sizes = [8, 1], strides = [1, 1]} : vector<8x16xf32> to vector<8x1xf32>
    %346 = vector.broadcast %345 : vector<8x1xf32> to vector<8x16xf32>
    %347 = arith.mulf %346, %34 : vector<8x16xf32>
    %348 = vector.extract_strided_slice %335 {offsets = [0, 4], sizes = [8, 1], strides = [1, 1]} : vector<8x16xf32> to vector<8x1xf32>
    %349 = vector.broadcast %348 : vector<8x1xf32> to vector<8x16xf32>
    %350 = arith.mulf %349, %37 : vector<8x16xf32>
    %351 = vector.extract_strided_slice %335 {offsets = [0, 5], sizes = [8, 1], strides = [1, 1]} : vector<8x16xf32> to vector<8x1xf32>
    %352 = vector.broadcast %351 : vector<8x1xf32> to vector<8x16xf32>
    %353 = arith.mulf %352, %40 : vector<8x16xf32>
    %354 = vector.extract_strided_slice %335 {offsets = [0, 6], sizes = [8, 1], strides = [1, 1]} : vector<8x16xf32> to vector<8x1xf32>
    %355 = vector.broadcast %354 : vector<8x1xf32> to vector<8x16xf32>
    %356 = arith.mulf %355, %43 : vector<8x16xf32>
    %357 = vector.extract_strided_slice %335 {offsets = [0, 7], sizes = [8, 1], strides = [1, 1]} : vector<8x16xf32> to vector<8x1xf32>
    %358 = vector.broadcast %357 : vector<8x1xf32> to vector<8x16xf32>
    %359 = arith.mulf %358, %46 : vector<8x16xf32>
    %360 = vector.extract_strided_slice %335 {offsets = [0, 8], sizes = [8, 1], strides = [1, 1]} : vector<8x16xf32> to vector<8x1xf32>
    %361 = vector.broadcast %360 : vector<8x1xf32> to vector<8x16xf32>
    %362 = arith.mulf %361, %49 : vector<8x16xf32>
    %363 = vector.extract_strided_slice %335 {offsets = [0, 9], sizes = [8, 1], strides = [1, 1]} : vector<8x16xf32> to vector<8x1xf32>
    %364 = vector.broadcast %363 : vector<8x1xf32> to vector<8x16xf32>
    %365 = arith.mulf %364, %52 : vector<8x16xf32>
    %366 = vector.extract_strided_slice %335 {offsets = [0, 10], sizes = [8, 1], strides = [1, 1]} : vector<8x16xf32> to vector<8x1xf32>
    %367 = vector.broadcast %366 : vector<8x1xf32> to vector<8x16xf32>
    %368 = arith.mulf %367, %55 : vector<8x16xf32>
    %369 = vector.extract_strided_slice %335 {offsets = [0, 11], sizes = [8, 1], strides = [1, 1]} : vector<8x16xf32> to vector<8x1xf32>
    %370 = vector.broadcast %369 : vector<8x1xf32> to vector<8x16xf32>
    %371 = arith.mulf %370, %58 : vector<8x16xf32>
    %372 = vector.extract_strided_slice %335 {offsets = [0, 12], sizes = [8, 1], strides = [1, 1]} : vector<8x16xf32> to vector<8x1xf32>
    %373 = vector.broadcast %372 : vector<8x1xf32> to vector<8x16xf32>
    %374 = arith.mulf %373, %61 : vector<8x16xf32>
    %375 = vector.extract_strided_slice %335 {offsets = [0, 13], sizes = [8, 1], strides = [1, 1]} : vector<8x16xf32> to vector<8x1xf32>
    %376 = vector.broadcast %375 : vector<8x1xf32> to vector<8x16xf32>
    %377 = arith.mulf %376, %64 : vector<8x16xf32>
    %378 = vector.extract_strided_slice %335 {offsets = [0, 14], sizes = [8, 1], strides = [1, 1]} : vector<8x16xf32> to vector<8x1xf32>
    %379 = vector.broadcast %378 : vector<8x1xf32> to vector<8x16xf32>
    %380 = arith.mulf %379, %67 : vector<8x16xf32>
    %381 = vector.extract_strided_slice %335 {offsets = [0, 15], sizes = [8, 1], strides = [1, 1]} : vector<8x16xf32> to vector<8x1xf32>
    %382 = vector.broadcast %381 : vector<8x1xf32> to vector<8x16xf32>
    %383 = arith.mulf %382, %70 : vector<8x16xf32>
    %384 = arith.addf %338, %341 : vector<8x16xf32>
    %385 = arith.addf %344, %347 : vector<8x16xf32>
    %386 = arith.addf %350, %353 : vector<8x16xf32>
    %387 = arith.addf %356, %359 : vector<8x16xf32>
    %388 = arith.addf %362, %365 : vector<8x16xf32>
    %389 = arith.addf %368, %371 : vector<8x16xf32>
    %390 = arith.addf %374, %377 : vector<8x16xf32>
    %391 = arith.addf %380, %383 : vector<8x16xf32>
    %392 = arith.addf %384, %385 : vector<8x16xf32>
    %393 = arith.addf %386, %387 : vector<8x16xf32>
    %394 = arith.addf %388, %389 : vector<8x16xf32>
    %395 = arith.addf %390, %391 : vector<8x16xf32>
    %396 = arith.addf %392, %393 : vector<8x16xf32>
    %397 = arith.addf %394, %395 : vector<8x16xf32>
    %398 = arith.addf %396, %397 : vector<8x16xf32>
    %399 = vector.extract_strided_slice %22 {offsets = [32, 0], sizes = [8, 16], strides = [1, 1]} : vector<64x16xf32> to vector<8x16xf32>
    %400 = arith.addf %399, %398 : vector<8x16xf32>
    %401 = math.tanh %400 : vector<8x16xf32>
    %402 = vector.extract_strided_slice %401 {offsets = [0, 0], sizes = [8, 1], strides = [1, 1]} : vector<8x16xf32> to vector<8x1xf32>
    %403 = vector.broadcast %402 : vector<8x1xf32> to vector<8x16xf32>
    %404 = arith.mulf %403, %25 : vector<8x16xf32>
    %405 = vector.extract_strided_slice %401 {offsets = [0, 1], sizes = [8, 1], strides = [1, 1]} : vector<8x16xf32> to vector<8x1xf32>
    %406 = vector.broadcast %405 : vector<8x1xf32> to vector<8x16xf32>
    %407 = arith.mulf %406, %28 : vector<8x16xf32>
    %408 = vector.extract_strided_slice %401 {offsets = [0, 2], sizes = [8, 1], strides = [1, 1]} : vector<8x16xf32> to vector<8x1xf32>
    %409 = vector.broadcast %408 : vector<8x1xf32> to vector<8x16xf32>
    %410 = arith.mulf %409, %31 : vector<8x16xf32>
    %411 = vector.extract_strided_slice %401 {offsets = [0, 3], sizes = [8, 1], strides = [1, 1]} : vector<8x16xf32> to vector<8x1xf32>
    %412 = vector.broadcast %411 : vector<8x1xf32> to vector<8x16xf32>
    %413 = arith.mulf %412, %34 : vector<8x16xf32>
    %414 = vector.extract_strided_slice %401 {offsets = [0, 4], sizes = [8, 1], strides = [1, 1]} : vector<8x16xf32> to vector<8x1xf32>
    %415 = vector.broadcast %414 : vector<8x1xf32> to vector<8x16xf32>
    %416 = arith.mulf %415, %37 : vector<8x16xf32>
    %417 = vector.extract_strided_slice %401 {offsets = [0, 5], sizes = [8, 1], strides = [1, 1]} : vector<8x16xf32> to vector<8x1xf32>
    %418 = vector.broadcast %417 : vector<8x1xf32> to vector<8x16xf32>
    %419 = arith.mulf %418, %40 : vector<8x16xf32>
    %420 = vector.extract_strided_slice %401 {offsets = [0, 6], sizes = [8, 1], strides = [1, 1]} : vector<8x16xf32> to vector<8x1xf32>
    %421 = vector.broadcast %420 : vector<8x1xf32> to vector<8x16xf32>
    %422 = arith.mulf %421, %43 : vector<8x16xf32>
    %423 = vector.extract_strided_slice %401 {offsets = [0, 7], sizes = [8, 1], strides = [1, 1]} : vector<8x16xf32> to vector<8x1xf32>
    %424 = vector.broadcast %423 : vector<8x1xf32> to vector<8x16xf32>
    %425 = arith.mulf %424, %46 : vector<8x16xf32>
    %426 = vector.extract_strided_slice %401 {offsets = [0, 8], sizes = [8, 1], strides = [1, 1]} : vector<8x16xf32> to vector<8x1xf32>
    %427 = vector.broadcast %426 : vector<8x1xf32> to vector<8x16xf32>
    %428 = arith.mulf %427, %49 : vector<8x16xf32>
    %429 = vector.extract_strided_slice %401 {offsets = [0, 9], sizes = [8, 1], strides = [1, 1]} : vector<8x16xf32> to vector<8x1xf32>
    %430 = vector.broadcast %429 : vector<8x1xf32> to vector<8x16xf32>
    %431 = arith.mulf %430, %52 : vector<8x16xf32>
    %432 = vector.extract_strided_slice %401 {offsets = [0, 10], sizes = [8, 1], strides = [1, 1]} : vector<8x16xf32> to vector<8x1xf32>
    %433 = vector.broadcast %432 : vector<8x1xf32> to vector<8x16xf32>
    %434 = arith.mulf %433, %55 : vector<8x16xf32>
    %435 = vector.extract_strided_slice %401 {offsets = [0, 11], sizes = [8, 1], strides = [1, 1]} : vector<8x16xf32> to vector<8x1xf32>
    %436 = vector.broadcast %435 : vector<8x1xf32> to vector<8x16xf32>
    %437 = arith.mulf %436, %58 : vector<8x16xf32>
    %438 = vector.extract_strided_slice %401 {offsets = [0, 12], sizes = [8, 1], strides = [1, 1]} : vector<8x16xf32> to vector<8x1xf32>
    %439 = vector.broadcast %438 : vector<8x1xf32> to vector<8x16xf32>
    %440 = arith.mulf %439, %61 : vector<8x16xf32>
    %441 = vector.extract_strided_slice %401 {offsets = [0, 13], sizes = [8, 1], strides = [1, 1]} : vector<8x16xf32> to vector<8x1xf32>
    %442 = vector.broadcast %441 : vector<8x1xf32> to vector<8x16xf32>
    %443 = arith.mulf %442, %64 : vector<8x16xf32>
    %444 = vector.extract_strided_slice %401 {offsets = [0, 14], sizes = [8, 1], strides = [1, 1]} : vector<8x16xf32> to vector<8x1xf32>
    %445 = vector.broadcast %444 : vector<8x1xf32> to vector<8x16xf32>
    %446 = arith.mulf %445, %67 : vector<8x16xf32>
    %447 = vector.extract_strided_slice %401 {offsets = [0, 15], sizes = [8, 1], strides = [1, 1]} : vector<8x16xf32> to vector<8x1xf32>
    %448 = vector.broadcast %447 : vector<8x1xf32> to vector<8x16xf32>
    %449 = arith.mulf %448, %70 : vector<8x16xf32>
    %450 = arith.addf %404, %407 : vector<8x16xf32>
    %451 = arith.addf %410, %413 : vector<8x16xf32>
    %452 = arith.addf %416, %419 : vector<8x16xf32>
    %453 = arith.addf %422, %425 : vector<8x16xf32>
    %454 = arith.addf %428, %431 : vector<8x16xf32>
    %455 = arith.addf %434, %437 : vector<8x16xf32>
    %456 = arith.addf %440, %443 : vector<8x16xf32>
    %457 = arith.addf %446, %449 : vector<8x16xf32>
    %458 = arith.addf %450, %451 : vector<8x16xf32>
    %459 = arith.addf %452, %453 : vector<8x16xf32>
    %460 = arith.addf %454, %455 : vector<8x16xf32>
    %461 = arith.addf %456, %457 : vector<8x16xf32>
    %462 = arith.addf %458, %459 : vector<8x16xf32>
    %463 = arith.addf %460, %461 : vector<8x16xf32>
    %464 = arith.addf %462, %463 : vector<8x16xf32>
    %465 = vector.extract_strided_slice %22 {offsets = [40, 0], sizes = [8, 16], strides = [1, 1]} : vector<64x16xf32> to vector<8x16xf32>
    %466 = arith.addf %465, %464 : vector<8x16xf32>
    %467 = math.tanh %466 : vector<8x16xf32>
    %468 = vector.extract_strided_slice %467 {offsets = [0, 0], sizes = [8, 1], strides = [1, 1]} : vector<8x16xf32> to vector<8x1xf32>
    %469 = vector.broadcast %468 : vector<8x1xf32> to vector<8x16xf32>
    %470 = arith.mulf %469, %25 : vector<8x16xf32>
    %471 = vector.extract_strided_slice %467 {offsets = [0, 1], sizes = [8, 1], strides = [1, 1]} : vector<8x16xf32> to vector<8x1xf32>
    %472 = vector.broadcast %471 : vector<8x1xf32> to vector<8x16xf32>
    %473 = arith.mulf %472, %28 : vector<8x16xf32>
    %474 = vector.extract_strided_slice %467 {offsets = [0, 2], sizes = [8, 1], strides = [1, 1]} : vector<8x16xf32> to vector<8x1xf32>
    %475 = vector.broadcast %474 : vector<8x1xf32> to vector<8x16xf32>
    %476 = arith.mulf %475, %31 : vector<8x16xf32>
    %477 = vector.extract_strided_slice %467 {offsets = [0, 3], sizes = [8, 1], strides = [1, 1]} : vector<8x16xf32> to vector<8x1xf32>
    %478 = vector.broadcast %477 : vector<8x1xf32> to vector<8x16xf32>
    %479 = arith.mulf %478, %34 : vector<8x16xf32>
    %480 = vector.extract_strided_slice %467 {offsets = [0, 4], sizes = [8, 1], strides = [1, 1]} : vector<8x16xf32> to vector<8x1xf32>
    %481 = vector.broadcast %480 : vector<8x1xf32> to vector<8x16xf32>
    %482 = arith.mulf %481, %37 : vector<8x16xf32>
    %483 = vector.extract_strided_slice %467 {offsets = [0, 5], sizes = [8, 1], strides = [1, 1]} : vector<8x16xf32> to vector<8x1xf32>
    %484 = vector.broadcast %483 : vector<8x1xf32> to vector<8x16xf32>
    %485 = arith.mulf %484, %40 : vector<8x16xf32>
    %486 = vector.extract_strided_slice %467 {offsets = [0, 6], sizes = [8, 1], strides = [1, 1]} : vector<8x16xf32> to vector<8x1xf32>
    %487 = vector.broadcast %486 : vector<8x1xf32> to vector<8x16xf32>
    %488 = arith.mulf %487, %43 : vector<8x16xf32>
    %489 = vector.extract_strided_slice %467 {offsets = [0, 7], sizes = [8, 1], strides = [1, 1]} : vector<8x16xf32> to vector<8x1xf32>
    %490 = vector.broadcast %489 : vector<8x1xf32> to vector<8x16xf32>
    %491 = arith.mulf %490, %46 : vector<8x16xf32>
    %492 = vector.extract_strided_slice %467 {offsets = [0, 8], sizes = [8, 1], strides = [1, 1]} : vector<8x16xf32> to vector<8x1xf32>
    %493 = vector.broadcast %492 : vector<8x1xf32> to vector<8x16xf32>
    %494 = arith.mulf %493, %49 : vector<8x16xf32>
    %495 = vector.extract_strided_slice %467 {offsets = [0, 9], sizes = [8, 1], strides = [1, 1]} : vector<8x16xf32> to vector<8x1xf32>
    %496 = vector.broadcast %495 : vector<8x1xf32> to vector<8x16xf32>
    %497 = arith.mulf %496, %52 : vector<8x16xf32>
    %498 = vector.extract_strided_slice %467 {offsets = [0, 10], sizes = [8, 1], strides = [1, 1]} : vector<8x16xf32> to vector<8x1xf32>
    %499 = vector.broadcast %498 : vector<8x1xf32> to vector<8x16xf32>
    %500 = arith.mulf %499, %55 : vector<8x16xf32>
    %501 = vector.extract_strided_slice %467 {offsets = [0, 11], sizes = [8, 1], strides = [1, 1]} : vector<8x16xf32> to vector<8x1xf32>
    %502 = vector.broadcast %501 : vector<8x1xf32> to vector<8x16xf32>
    %503 = arith.mulf %502, %58 : vector<8x16xf32>
    %504 = vector.extract_strided_slice %467 {offsets = [0, 12], sizes = [8, 1], strides = [1, 1]} : vector<8x16xf32> to vector<8x1xf32>
    %505 = vector.broadcast %504 : vector<8x1xf32> to vector<8x16xf32>
    %506 = arith.mulf %505, %61 : vector<8x16xf32>
    %507 = vector.extract_strided_slice %467 {offsets = [0, 13], sizes = [8, 1], strides = [1, 1]} : vector<8x16xf32> to vector<8x1xf32>
    %508 = vector.broadcast %507 : vector<8x1xf32> to vector<8x16xf32>
    %509 = arith.mulf %508, %64 : vector<8x16xf32>
    %510 = vector.extract_strided_slice %467 {offsets = [0, 14], sizes = [8, 1], strides = [1, 1]} : vector<8x16xf32> to vector<8x1xf32>
    %511 = vector.broadcast %510 : vector<8x1xf32> to vector<8x16xf32>
    %512 = arith.mulf %511, %67 : vector<8x16xf32>
    %513 = vector.extract_strided_slice %467 {offsets = [0, 15], sizes = [8, 1], strides = [1, 1]} : vector<8x16xf32> to vector<8x1xf32>
    %514 = vector.broadcast %513 : vector<8x1xf32> to vector<8x16xf32>
    %515 = arith.mulf %514, %70 : vector<8x16xf32>
    %516 = arith.addf %470, %473 : vector<8x16xf32>
    %517 = arith.addf %476, %479 : vector<8x16xf32>
    %518 = arith.addf %482, %485 : vector<8x16xf32>
    %519 = arith.addf %488, %491 : vector<8x16xf32>
    %520 = arith.addf %494, %497 : vector<8x16xf32>
    %521 = arith.addf %500, %503 : vector<8x16xf32>
    %522 = arith.addf %506, %509 : vector<8x16xf32>
    %523 = arith.addf %512, %515 : vector<8x16xf32>
    %524 = arith.addf %516, %517 : vector<8x16xf32>
    %525 = arith.addf %518, %519 : vector<8x16xf32>
    %526 = arith.addf %520, %521 : vector<8x16xf32>
    %527 = arith.addf %522, %523 : vector<8x16xf32>
    %528 = arith.addf %524, %525 : vector<8x16xf32>
    %529 = arith.addf %526, %527 : vector<8x16xf32>
    %530 = arith.addf %528, %529 : vector<8x16xf32>
    %531 = vector.extract_strided_slice %22 {offsets = [48, 0], sizes = [8, 16], strides = [1, 1]} : vector<64x16xf32> to vector<8x16xf32>
    %532 = arith.addf %531, %530 : vector<8x16xf32>
    %533 = math.tanh %532 : vector<8x16xf32>
    %534 = vector.extract_strided_slice %533 {offsets = [0, 0], sizes = [8, 1], strides = [1, 1]} : vector<8x16xf32> to vector<8x1xf32>
    %535 = vector.broadcast %534 : vector<8x1xf32> to vector<8x16xf32>
    %536 = arith.mulf %535, %25 : vector<8x16xf32>
    %537 = vector.extract_strided_slice %533 {offsets = [0, 1], sizes = [8, 1], strides = [1, 1]} : vector<8x16xf32> to vector<8x1xf32>
    %538 = vector.broadcast %537 : vector<8x1xf32> to vector<8x16xf32>
    %539 = arith.mulf %538, %28 : vector<8x16xf32>
    %540 = vector.extract_strided_slice %533 {offsets = [0, 2], sizes = [8, 1], strides = [1, 1]} : vector<8x16xf32> to vector<8x1xf32>
    %541 = vector.broadcast %540 : vector<8x1xf32> to vector<8x16xf32>
    %542 = arith.mulf %541, %31 : vector<8x16xf32>
    %543 = vector.extract_strided_slice %533 {offsets = [0, 3], sizes = [8, 1], strides = [1, 1]} : vector<8x16xf32> to vector<8x1xf32>
    %544 = vector.broadcast %543 : vector<8x1xf32> to vector<8x16xf32>
    %545 = arith.mulf %544, %34 : vector<8x16xf32>
    %546 = vector.extract_strided_slice %533 {offsets = [0, 4], sizes = [8, 1], strides = [1, 1]} : vector<8x16xf32> to vector<8x1xf32>
    %547 = vector.broadcast %546 : vector<8x1xf32> to vector<8x16xf32>
    %548 = arith.mulf %547, %37 : vector<8x16xf32>
    %549 = vector.extract_strided_slice %533 {offsets = [0, 5], sizes = [8, 1], strides = [1, 1]} : vector<8x16xf32> to vector<8x1xf32>
    %550 = vector.broadcast %549 : vector<8x1xf32> to vector<8x16xf32>
    %551 = arith.mulf %550, %40 : vector<8x16xf32>
    %552 = vector.extract_strided_slice %533 {offsets = [0, 6], sizes = [8, 1], strides = [1, 1]} : vector<8x16xf32> to vector<8x1xf32>
    %553 = vector.broadcast %552 : vector<8x1xf32> to vector<8x16xf32>
    %554 = arith.mulf %553, %43 : vector<8x16xf32>
    %555 = vector.extract_strided_slice %533 {offsets = [0, 7], sizes = [8, 1], strides = [1, 1]} : vector<8x16xf32> to vector<8x1xf32>
    %556 = vector.broadcast %555 : vector<8x1xf32> to vector<8x16xf32>
    %557 = arith.mulf %556, %46 : vector<8x16xf32>
    %558 = vector.extract_strided_slice %533 {offsets = [0, 8], sizes = [8, 1], strides = [1, 1]} : vector<8x16xf32> to vector<8x1xf32>
    %559 = vector.broadcast %558 : vector<8x1xf32> to vector<8x16xf32>
    %560 = arith.mulf %559, %49 : vector<8x16xf32>
    %561 = vector.extract_strided_slice %533 {offsets = [0, 9], sizes = [8, 1], strides = [1, 1]} : vector<8x16xf32> to vector<8x1xf32>
    %562 = vector.broadcast %561 : vector<8x1xf32> to vector<8x16xf32>
    %563 = arith.mulf %562, %52 : vector<8x16xf32>
    %564 = vector.extract_strided_slice %533 {offsets = [0, 10], sizes = [8, 1], strides = [1, 1]} : vector<8x16xf32> to vector<8x1xf32>
    %565 = vector.broadcast %564 : vector<8x1xf32> to vector<8x16xf32>
    %566 = arith.mulf %565, %55 : vector<8x16xf32>
    %567 = vector.extract_strided_slice %533 {offsets = [0, 11], sizes = [8, 1], strides = [1, 1]} : vector<8x16xf32> to vector<8x1xf32>
    %568 = vector.broadcast %567 : vector<8x1xf32> to vector<8x16xf32>
    %569 = arith.mulf %568, %58 : vector<8x16xf32>
    %570 = vector.extract_strided_slice %533 {offsets = [0, 12], sizes = [8, 1], strides = [1, 1]} : vector<8x16xf32> to vector<8x1xf32>
    %571 = vector.broadcast %570 : vector<8x1xf32> to vector<8x16xf32>
    %572 = arith.mulf %571, %61 : vector<8x16xf32>
    %573 = vector.extract_strided_slice %533 {offsets = [0, 13], sizes = [8, 1], strides = [1, 1]} : vector<8x16xf32> to vector<8x1xf32>
    %574 = vector.broadcast %573 : vector<8x1xf32> to vector<8x16xf32>
    %575 = arith.mulf %574, %64 : vector<8x16xf32>
    %576 = vector.extract_strided_slice %533 {offsets = [0, 14], sizes = [8, 1], strides = [1, 1]} : vector<8x16xf32> to vector<8x1xf32>
    %577 = vector.broadcast %576 : vector<8x1xf32> to vector<8x16xf32>
    %578 = arith.mulf %577, %67 : vector<8x16xf32>
    %579 = vector.extract_strided_slice %533 {offsets = [0, 15], sizes = [8, 1], strides = [1, 1]} : vector<8x16xf32> to vector<8x1xf32>
    %580 = vector.broadcast %579 : vector<8x1xf32> to vector<8x16xf32>
    %581 = arith.mulf %580, %70 : vector<8x16xf32>
    %582 = arith.addf %536, %539 : vector<8x16xf32>
    %583 = arith.addf %542, %545 : vector<8x16xf32>
    %584 = arith.addf %548, %551 : vector<8x16xf32>
    %585 = arith.addf %554, %557 : vector<8x16xf32>
    %586 = arith.addf %560, %563 : vector<8x16xf32>
    %587 = arith.addf %566, %569 : vector<8x16xf32>
    %588 = arith.addf %572, %575 : vector<8x16xf32>
    %589 = arith.addf %578, %581 : vector<8x16xf32>
    %590 = arith.addf %582, %583 : vector<8x16xf32>
    %591 = arith.addf %584, %585 : vector<8x16xf32>
    %592 = arith.addf %586, %587 : vector<8x16xf32>
    %593 = arith.addf %588, %589 : vector<8x16xf32>
    %594 = arith.addf %590, %591 : vector<8x16xf32>
    %595 = arith.addf %592, %593 : vector<8x16xf32>
    %596 = arith.addf %594, %595 : vector<8x16xf32>
    %597 = vector.extract_strided_slice %22 {offsets = [56, 0], sizes = [8, 16], strides = [1, 1]} : vector<64x16xf32> to vector<8x16xf32>
    %598 = arith.addf %597, %596 : vector<8x16xf32>
    %599 = math.tanh %598 : vector<8x16xf32>
    %600 = tpu.concatenate %137, %203, %269, %335, %401, %467, %533, %599 in 0 : vector<8x16xf32>, vector<8x16xf32>, vector<8x16xf32>, vector<8x16xf32>, vector<8x16xf32>, vector<8x16xf32>, vector<8x16xf32>, vector<8x16xf32> -> vector<64x16xf32>
    %cst_17 = arith.constant dense<0xFF800000> : vector<64xf32>
    %601 = vector.multi_reduction <maximumf>, %600, %cst_17 [1] : vector<64x16xf32> to vector<64xf32>
    %602 = vector.shape_cast %601 : vector<64xf32> to vector<64x1xf32>
    %603 = vector.broadcast %602 : vector<64x1xf32> to vector<64x16xf32>
    %604 = arith.subf %600, %603 : vector<64x16xf32>
    %605 = math.exp %604 : vector<64x16xf32>
    %cst_18 = arith.constant dense<0.000000e+00> : vector<64xf32>
    %606 = vector.multi_reduction <add>, %605, %cst_18 [1] : vector<64x16xf32> to vector<64xf32>
    %607 = vector.shape_cast %606 : vector<64xf32> to vector<64x1xf32>
    %608 = math.log %607 : vector<64x1xf32>
    %609 = vector.broadcast %608 : vector<64x1xf32> to vector<64x16xf32>
    %610 = arith.subf %604, %609 : vector<64x16xf32>
    %c0_19 = arith.constant 0 : index
    %c0_20 = arith.constant 0 : index
    %611 = vector.load %arg6[%c0_19, %c0_20] : memref<64x16xf32, #tpu.memory_space<vmem>>, vector<64x16xf32>
    tpu.vector_store %arg6[%c0_19, %c0_20], %610 {strides = array<i32>} : memref<64x16xf32, #tpu.memory_space<vmem>>, vector<64x16xf32>,
    return
  }
  func.func @transform_0(%arg0: i32) -> (i32, i32) {
    %c0_i32 = arith.constant 0 : i32
    %c0_i32_0 = arith.constant 0 : i32
    return %arg0, %c0_i32 : i32, i32
  }
  func.func @transform_1(%arg0: i32) -> (i32, i32) {
    %c0_i32 = arith.constant 0 : i32
    %c0_i32_0 = arith.constant 0 : i32
    %c0_i32_1 = arith.constant 0 : i32
    return %c0_i32, %c0_i32_0 : i32, i32
  }
  func.func @transform_2(%arg0: i32) -> (i32, i32) {
    %c0_i32 = arith.constant 0 : i32
    %c0_i32_0 = arith.constant 0 : i32
    %c0_i32_1 = arith.constant 0 : i32
    return %c0_i32, %c0_i32_0 : i32, i32
  }
  func.func @transform_3(%arg0: i32) -> (i32, i32) {
    %c0_i32 = arith.constant 0 : i32
    %c0_i32_0 = arith.constant 0 : i32
    %c0_i32_1 = arith.constant 0 : i32
    return %c0_i32, %c0_i32_0 : i32, i32
  }
  func.func @transform_4(%arg0: i32) -> (i32, i32) {
    %c0_i32 = arith.constant 0 : i32
    %c0_i32_0 = arith.constant 0 : i32
    %c0_i32_1 = arith.constant 0 : i32
    return %c0_i32, %c0_i32_0 : i32, i32
  }
  func.func @transform_5(%arg0: i32) -> (i32, i32) {
    %c0_i32 = arith.constant 0 : i32
    %c0_i32_0 = arith.constant 0 : i32
    return %arg0, %c0_i32 : i32, i32
  }
}

</mosaic_0001>

<llo_original>
// kernel: tpu_custom_call.1
$region0: #{tpu_custom_call.1}
  #allocation0 [shape = 'u32[]', space=smem, size = 0x4, offset = 0x4, fixed_abs, tag = 'smem constant byte address 0x4 - core index']
  #allocation1 [shape = 'u32[144,128]{1,0:T(1,128)}', space=vmem, size = 0x12000, scoped, tag = 'internal scratch']
  %s0 = inlined_call_operand.hbm [shape: bf16[128,768], index: 0, kind: input, shape index: {}]
  %s1 = inlined_call_operand.hbm [shape: bf16[768,256], index: 1, kind: input, shape index: {}]
  %s2 = inlined_call_operand.hbm [shape: bf16[256,128], index: 2, kind: input, shape index: {}]
  %s3 = inlined_call_operand.vmem [shape: bf16[128,16], index: 3, kind: input, shape index: {}]
  %s4 = inlined_call_operand.vmem [shape: f32[24,256], index: 4, kind: input, shape index: {}]
  %s5 = inlined_call_operand.vmem [shape: f32[128,16], index: 5, kind: output, shape index: {}]
  %s6 = sld [smem:[#allocation0]]
  $region65: #{tpu_custom_call.1} parent=0
    _
  %s8 = ssub.s32 1, %s6
  %s9 = scalar_select 0, %s8, %s6
  $region1: #{tpu_custom_call.1} parent=0
    #allocation2 [shape = 'u8[196608]{0}', space=vmem, size = 0x30000, scoped, tag = 'input window, operand 0']
    #allocation3 [shape = 's32[2]{0}', space=sflag, size = 0x8, scoped, tag = 'scoped memory for tpu_custom_call.1']
    #allocation4 [shape = 'u8[393216]{0}', space=vmem, size = 0x60000, scoped, tag = 'input window, operand 1, single buffered']
    #allocation5 [shape = 's32[1]{0}', space=sflag, size = 0x4, scoped, tag = 'scoped memory for tpu_custom_call.1']
    #allocation6 [shape = 'u8[65536]{0}', space=vmem, size = 0x10000, scoped, tag = 'input window, operand 2, single buffered']
    %10 = vsyncpa [#allocation3], 0
    %s11 = scalar_lea.sflag [#allocation3], 1
    %12 = vsyncpa %s11, 0
    %13 = vsyncpa [#allocation5], 0
    loop: start=0, step=1, limit=4
    $region2: #{tpu_custom_call.1} parent=1 // loop_pre_header
      _
    $region3: #{tpu_custom_call.1} parent=1 // loop_header
      %s15 = sphi 0, %s19
      %p16 = scmp.ge.s32.totalorder %s15, 4
      %s25 = sphi 0, %s27
      %s28 = sphi 0, %s25
      %s29 = sphi 0, %s28
      %s45 = sphi 0, %s29
      %s49 = sphi 0, %s49
      %s51 = sphi 0, %s49
      %s52 = sphi 0, %s51
      %s66 = sphi 0, %s52
      %s70 = sphi 0, %s70
      %s72 = sphi 0, %s70
      %s73 = sphi 0, %s72
      %s87 = sphi 0, %s73
      %s91 = sphi 0, %s91
      %s93 = sphi 0, %s91
      %s94 = sphi 0, %s93
      %s108 = sphi 0, %s94
      %s112 = sphi 0, %s112
      %s114 = sphi 0, %s112
      %s115 = sphi 0, %s114
      %s129 = sphi 0, %s115
      %s135 = sphi 0, %s137
      %s138 = sphi 0, %s135
      %s139 = sphi 0, %s138
      %s155 = sphi 0, %s139
    $region4: #{tpu_custom_call.1} parent=1 // loop_header_branch
      %18 = sbr.rel (%p16) target = $region8
    $region5: #{tpu_custom_call.1} parent=1 // loop_body
      %s20 = ssub.s32 %s15, 1
      %s21 = ssub.s32 %s15, 2
      %s22 = sadd.s32 %s15, 1
      %s23 = ssub.s32 %s15, %s22
      %p24 = scmp.eq.s32.totalorder %s23, 0
      %s26 = sadd.s32 %s25, 1
      %s27 = scalar_select %p24, %s25, %s26
      %p30 = pneg %p24
      %p31 = scmp.eq.s32.totalorder %s15, 1
      %p32 = por %p30, %p31
      %p33 = scmp.ne.s32.totalorder %s25, %s28
      %p34 = scmp.eq.s32.totalorder %s15, 0
      %p35 = por %p33, %p34
      %p36 = scmp.ne.s32.totalorder %s25, %s28
      %p37 = scmp.eq.s32.totalorder %s20, 1
      %p38 = por %p36, %p37
      %p39 = scmp.ne.s32.totalorder %s28, %s29
      %p40 = scmp.eq.s32.totalorder %s20, 0
      %p41 = por %p39, %p40
      %p42 = scmp.ne.s32.totalorder %s28, %s29
      %p43 = scmp.eq.s32.totalorder %s21, 1
      %p44 = por %p42, %p43
      %p46 = scmp.ne.s32.totalorder %s29, %s45
      %p47 = scmp.eq.s32.totalorder %s21, 0
      %p48 = por %p46, %p47
      %s50 = sadd.s32 %s49, 1
      %p53 = scmp.eq.s32.totalorder %s15, 1
      %p54 = scmp.ne.s32.totalorder %s49, %s51
      %p55 = scmp.eq.s32.totalorder %s15, 0
      %p56 = por %p54, %p55
      %p57 = scmp.ne.s32.totalorder %s49, %s51
      %p58 = scmp.eq.s32.totalorder %s20, 1
      %p59 = por %p57, %p58
      %p60 = scmp.ne.s32.totalorder %s51, %s52
      %p61 = scmp.eq.s32.totalorder %s20, 0
      %p62 = por %p60, %p61
      %p63 = scmp.ne.s32.totalorder %s51, %s52
      %p64 = scmp.eq.s32.totalorder %s21, 1
      %p65 = por %p63, %p64
      %p67 = scmp.ne.s32.totalorder %s52, %s66
      %p68 = scmp.eq.s32.totalorder %s21, 0
      %p69 = por %p67, %p68
      %s71 = sadd.s32 %s70, 1
      %p74 = scmp.eq.s32.totalorder %s15, 1
      %p75 = scmp.ne.s32.totalorder %s70, %s72
      %p76 = scmp.eq.s32.totalorder %s15, 0
      %p77 = por %p75, %p76
      %p78 = scmp.ne.s32.totalorder %s70, %s72
      %p79 = scmp.eq.s32.totalorder %s20, 1
      %p80 = por %p78, %p79
      %p81 = scmp.ne.s32.totalorder %s72, %s73
      %p82 = scmp.eq.s32.totalorder %s20, 0
      %p83 = por %p81, %p82
      %p84 = scmp.ne.s32.totalorder %s72, %s73
      %p85 = scmp.eq.s32.totalorder %s21, 1
      %p86 = por %p84, %p85
      %p88 = scmp.ne.s32.totalorder %s73, %s87
      %p89 = scmp.eq.s32.totalorder %s21, 0
      %p90 = por %p88, %p89
      %s92 = sadd.s32 %s91, 1
      %p95 = scmp.eq.s32.totalorder %s15, 1
      %p96 = scmp.ne.s32.totalorder %s91, %s93
      %p97 = scmp.eq.s32.totalorder %s15, 0
      %p98 = por %p96, %p97
      %p99 = scmp.ne.s32.totalorder %s91, %s93
      %p100 = scmp.eq.s32.totalorder %s20, 1
      %p101 = por %p99, %p100
      %p102 = scmp.ne.s32.totalorder %s93, %s94
      %p103 = scmp.eq.s32.totalorder %s20, 0
      %p104 = por %p102, %p103
      %p105 = scmp.ne.s32.totalorder %s93, %s94
      %p106 = scmp.eq.s32.totalorder %s21, 1
      %p107 = por %p105, %p106
      %p109 = scmp.ne.s32.totalorder %s94, %s108
      %p110 = scmp.eq.s32.totalorder %s21, 0
      %p111 = por %p109, %p110
      %s113 = sadd.s32 %s112, 1
      %p116 = scmp.eq.s32.totalorder %s15, 1
      %p117 = scmp.ne.s32.totalorder %s112, %s114
      %p118 = scmp.eq.s32.totalorder %s15, 0
      %p119 = por %p117, %p118
      %p120 = scmp.ne.s32.totalorder %s112, %s114
      %p121 = scmp.eq.s32.totalorder %s20, 1
      %p122 = por %p120, %p121
      %p123 = scmp.ne.s32.totalorder %s114, %s115
      %p124 = scmp.eq.s32.totalorder %s20, 0
      %p125 = por %p123, %p124
      %p126 = scmp.ne.s32.totalorder %s114, %s115
      %p127 = scmp.eq.s32.totalorder %s21, 1
      %p128 = por %p126, %p127
      %p130 = scmp.ne.s32.totalorder %s115, %s129
      %p131 = scmp.eq.s32.totalorder %s21, 0
      %p132 = por %p130, %p131
      %s133 = ssub.s32 %s15, %s22
      %p134 = scmp.eq.s32.totalorder %s133, 0
      %s136 = sadd.s32 %s135, 1
      %s137 = scalar_select %p134, %s135, %s136
      %p140 = pneg %p134
      %p141 = scmp.eq.s32.totalorder %s15, 1
      %p142 = por %p140, %p141
      %p143 = scmp.ne.s32.totalorder %s135, %s138
      %p144 = scmp.eq.s32.totalorder %s15, 0
      %p145 = por %p143, %p144
      %p146 = scmp.ne.s32.totalorder %s135, %s138
      %p147 = scmp.eq.s32.totalorder %s20, 1
      %p148 = por %p146, %p147
      %p149 = scmp.ne.s32.totalorder %s138, %s139
      %p150 = scmp.eq.s32.totalorder %s20, 0
      %p151 = por %p149, %p150
      %p152 = scmp.ne.s32.totalorder %s138, %s139
      %p153 = scmp.eq.s32.totalorder %s21, 1
      %p154 = por %p152, %p153
      %p156 = scmp.ne.s32.totalorder %s139, %s155
      %p157 = scmp.eq.s32.totalorder %s21, 0
      %p158 = por %p156, %p157
      %p159 = scmp.le.s32.totalorder 1, %s15
      %p160 = scmp.lt.s32.totalorder %s15, 3
      %p161 = pnand %p159, %p160
      %p162 = pneg %p161
      // Predicated region
      $region9: #{tpu_custom_call.1} parent=5 // pred_check
        _
      $region10: #{tpu_custom_call.1} parent=5 // pred_check_branch
        %164 = sbr.rel (%p161) target = $region12
      $region11: #{tpu_custom_call.1} parent=5 // pred_region
        %s165 = ssub.s32 %s15, 1
        // Predicated region
        $region13: #{tpu_custom_call.1} parent=11 // pred_check
          %p166 = pneg %p62
        $region14: #{tpu_custom_call.1} parent=11 // pred_check_branch
          %168 = sbr.rel (%p166) target = $region16
        $region15: #{tpu_custom_call.1} parent=11 // pred_region
          %s170 = ssub.s32 12288, 12288
          %171 = vsyncadd [#allocation5], %s170
          %s172 = sshll.u32 [#allocation4], 4
          %s173 = int_to_ptr.vmem [resolvable:$true] %s172
          %178 = dma.hbm_to_vmem [thread:$0]  %s1, 12288, %s173, [#allocation5], 128, 128, 8
        $region16: #{tpu_custom_call.1} parent=11 // pred_fallthru
          _
        // Predicated region
        $region17: #{tpu_custom_call.1} parent=11 // pred_check
          %p179 = pneg %p83
        $region18: #{tpu_custom_call.1} parent=11 // pred_check_branch
          %181 = sbr.rel (%p179) target = $region20
        $region19: #{tpu_custom_call.1} parent=11 // pred_region
          %s183 = ssub.s32 2048, 2048
          %184 = vsyncadd [#allocation5], %s183
          %s185 = sshll.u32 [#allocation6], 4
          %s186 = int_to_ptr.vmem [resolvable:$true] %s185
          %191 = dma.hbm_to_vmem [thread:$0]  %s2, 2048, %s186, [#allocation5], 64, 64, 4
        $region20: #{tpu_custom_call.1} parent=11 // pred_fallthru
          _
        // Predicated region
        $region21: #{tpu_custom_call.1} parent=11 // pred_check
          %p192 = pneg %p104
        $region22: #{tpu_custom_call.1} parent=11 // pred_check_branch
          %194 = sbr.rel (%p192) target = $region24
        $region23: #{tpu_custom_call.1} parent=11 // pred_region
          _
        $region24: #{tpu_custom_call.1} parent=11 // pred_fallthru
          _
        // Predicated region
        $region25: #{tpu_custom_call.1} parent=11 // pred_check
          %p195 = pneg %p125
        $region26: #{tpu_custom_call.1} parent=11 // pred_check_branch
          %197 = sbr.rel (%p195) target = $region28
        $region27: #{tpu_custom_call.1} parent=11 // pred_region
          _
        $region28: #{tpu_custom_call.1} parent=11 // pred_fallthru
          _
      $region12: #{tpu_custom_call.1} parent=5 // pred_fallthru
        _
      %p198 = scmp.lt.s32.totalorder %s15, 2
      // Predicated region
      $region29: #{tpu_custom_call.1} parent=5 // pred_check
        %p199 = pneg %p198
      $region30: #{tpu_custom_call.1} parent=5 // pred_check_branch
        %201 = sbr.rel (%p199) target = $region32
      $region31: #{tpu_custom_call.1} parent=5 // pred_region
        // Predicated region
        $region33: #{tpu_custom_call.1} parent=31 // pred_check
          %p202 = pneg %p35
        $region34: #{tpu_custom_call.1} parent=31 // pred_check_branch
          %204 = sbr.rel (%p202) target = $region36
        $region35: #{tpu_custom_call.1} parent=31 // pred_region
          %s205 = sand.u32 %s25, 1
          %s206 = scalar_lea.sflag [#allocation3], %s205
          %s207 = sand.u32 %s25, 1
          %s208 = smul.addr %s207, 192
          %s209 = scalar_lea.vmem [#allocation2], %s208
          %s210 = smul.u32 8, %s15
          %s212 = ssub.s32 3072, 3072
          %213 = vsyncadd %s206, %s212
          %s214 = smul.addr %s210, 6
          %s215 = smul.addr %s214, 64
          %s216 = scalar_lea.hbm %s0, %s215
          %s217 = sshll.u32 %s209, 4
          %s218 = int_to_ptr.vmem [resolvable:$true] %s217
          %223 = dma.hbm_to_vmem [thread:$0]  %s216, 3072, %s218, %s206, 384, 384, 24
        $region36: #{tpu_custom_call.1} parent=31 // pred_fallthru
          _
      $region32: #{tpu_custom_call.1} parent=5 // pred_fallthru
        _
      %p224 = scmp.le.s32.totalorder 1, %s15
      %p225 = scmp.lt.s32.totalorder %s15, 3
      %p226 = pnand %p224, %p225
      %p227 = pneg %p226
      // Predicated region
      $region37: #{tpu_custom_call.1} parent=5 // pred_check
        _
      $region38: #{tpu_custom_call.1} parent=5 // pred_check_branch
        %229 = sbr.rel (%p226) target = $region40
      $region39: #{tpu_custom_call.1} parent=5 // pred_region
        %s230 = ssub.s32 %s15, 1
        %s231 = sand.u32 %s28, 1
        %s232 = scalar_lea.sflag [#allocation3], %s231
        %s233 = sand.u32 %s28, 1
        %s234 = smul.addr %s233, 192
        %s235 = scalar_lea.vmem [#allocation2], %s234
        // Predicated region
        $region41: #{tpu_custom_call.1} parent=39 // pred_check
          %p236 = pneg %p41
        $region42: #{tpu_custom_call.1} parent=39 // pred_check_branch
          %238 = sbr.rel (%p236) target = $region44
        $region43: #{tpu_custom_call.1} parent=39 // pred_region
          %239 = dma.done %s232, 3072
        $region44: #{tpu_custom_call.1} parent=39 // pred_fallthru
          _
        // Predicated region
        $region45: #{tpu_custom_call.1} parent=39 // pred_check
          %p240 = pneg %p62
        $region46: #{tpu_custom_call.1} parent=39 // pred_check_branch
          %242 = sbr.rel (%p240) target = $region48
        $region47: #{tpu_custom_call.1} parent=39 // pred_region
          %243 = dma.done [#allocation5], 12288
        $region48: #{tpu_custom_call.1} parent=39 // pred_fallthru
          _
        // Predicated region
        $region49: #{tpu_custom_call.1} parent=39 // pred_check
          %p244 = pneg %p83
        $region50: #{tpu_custom_call.1} parent=39 // pred_check_branch
          %246 = sbr.rel (%p244) target = $region52
        $region51: #{tpu_custom_call.1} parent=39 // pred_region
          %247 = dma.done [#allocation5], 2048
        $region52: #{tpu_custom_call.1} parent=39 // pred_fallthru
          _
        %s248 = sand.u32 %s28, 1
        %s249 = scalar_lea.sflag [#allocation3], %s248
        %s250 = sand.u32 %s28, 1
        %s251 = smul.addr %s250, 192
        %s252 = scalar_lea.vmem [#allocation2], %s251
        %p253 = pneg %p41
        %p254 = pneg %p38
        %p255 = pneg %p62
        %p256 = pneg %p59
        %p257 = pneg %p83
        %p258 = pneg %p80
        %p259 = pneg %p104
        %p260 = pneg %p101
        %p261 = pneg %p125
        %p262 = pneg %p122
        %p263 = pneg %p151
        %p264 = pneg %p148
        %s265 = smul.u32 8, %s20
        %p266 = scmp.lt.s32.totalorder %s265, 15
        %s267 = scalar_select %p266, %s265, 15
        %s268 = smul.addr %s267, 8
        %s269 = scalar_lea.vmem %s5, %s268
        %s270 = smul.u32 8, %s20
        %s271 = smul.u32 8, %s20
        %p272 = scmp.lt.s32.totalorder %s271, 15
        %s273 = scalar_select %p272, %s271, 15
        %s274 = smul.addr %s273, 8
        %s275 = scalar_lea.vmem %s5, %s274
        %s276 = smul.u32 8, %s20
        %v278 = vld [vmem:[%s4] ss:$8 sm:$0x3]
        %v279 = vld [vmem:[%s4 + $0x1] ss:$0 sm:$0xff]
        %v280 = vld [vmem:[%s4 + $0x2] ss:$0 sm:$0xff]
        %v281 = vld [vmem:[%s4 + $0x10] sm:$0xff]
        %v282 = vld [vmem:[%s4 + $0x20] sm:$0xff]
        %v283 = vld [vmem:[%s235] sm:$0xff]
        %v284 = vld [vmem:[%s235 + $0x8] sm:$0xff]
        %v285 = vld [vmem:[%s235 + $0x10] sm:$0xff]
        %v286 = vld [vmem:[%s235 + $0x18] sm:$0xff]
        %v287 = vld [vmem:[%s235 + $0x20] sm:$0xff]
        %v288 = vld [vmem:[%s235 + $0x28] sm:$0xff]
        %v289 = vld [vmem:[%s235 + $0x30] sm:$0xff]
        %v290 = vld [vmem:[%s235 + $0x38] sm:$0xff]
        %v291 = vld [vmem:[%s235 + $0x40] sm:$0xff]
        %v292 = vld [vmem:[%s235 + $0x48] sm:$0xff]
        %v293 = vld [vmem:[%s235 + $0x50] sm:$0xff]
        %v294 = vld [vmem:[%s235 + $0x58] sm:$0xff]
        %v295 = vld [vmem:[%s235 + $0x60] sm:$0xff]
        %v296 = vld [vmem:[%s235 + $0x68] sm:$0xff]
        %v297 = vld [vmem:[%s235 + $0x70] sm:$0xff]
        %v298 = vld [vmem:[%s235 + $0x78] sm:$0xff]
        %v299 = vld [vmem:[%s235 + $0x80] sm:$0xff]
        %v300 = vld [vmem:[%s235 + $0x88] sm:$0xff]
        %v301 = vld [vmem:[%s235 + $0x90] sm:$0xff]
        %v302 = vld [vmem:[%s235 + $0x98] sm:$0xff]
        %v303 = vld [vmem:[%s235 + $0xa0] sm:$0xff]
        %v304 = vld [vmem:[%s235 + $0xa8] sm:$0xff]
        %v305 = vld [vmem:[%s235 + $0xb0] sm:$0xff]
        %v306 = vld [vmem:[%s235 + $0xb8] sm:$0xff]
        %v307 = vld [vmem:[#allocation4] sm:$0xff]
        %v308 = vld [vmem:[#allocation4 + $0x8] sm:$0xff]
        %v309 = vld [vmem:[#allocation4 + $0x10] sm:$0xff]
        %v310 = vld [vmem:[#allocation4 + $0x18] sm:$0xff]
        %v311 = vld [vmem:[#allocation4 + $0x20] sm:$0xff]
        %v312 = vld [vmem:[#allocation4 + $0x28] sm:$0xff]
        %v313 = vld [vmem:[#allocation4 + $0x30] sm:$0xff]
        %v314 = vld [vmem:[#allocation4 + $0x38] sm:$0xff]
        %v315 = vld [vmem:[#allocation4 + $0x40] sm:$0xff]
        %v316 = vld [vmem:[#allocation4 + $0x48] sm:$0xff]
        %v317 = vld [vmem:[#allocation4 + $0x50] sm:$0xff]
        %v318 = vld [vmem:[#allocation4 + $0x58] sm:$0xff]
        %v319 = vld [vmem:[#allocation4 + $0x60] sm:$0xff]
        %v320 = vld [vmem:[#allocation4 + $0x68] sm:$0xff]
        %v321 = vld [vmem:[#allocation4 + $0x70] sm:$0xff]
        %v322 = vld [vmem:[#allocation4 + $0x78] sm:$0xff]
        %v323 = vld [vmem:[#allocation4 + $0x80] sm:$0xff]
        %v324 = vld [vmem:[#allocation4 + $0x88] sm:$0xff]
        %v325 = vld [vmem:[#allocation4 + $0x90] sm:$0xff]
        %v326 = vld [vmem:[#allocation4 + $0x98] sm:$0xff]
        %v327 = vld [vmem:[#allocation4 + $0xa0] sm:$0xff]
        %v328 = vld [vmem:[#allocation4 + $0xa8] sm:$0xff]
        %v329 = vld [vmem:[#allocation4 + $0xb0] sm:$0xff]
        %v330 = vld [vmem:[#allocation4 + $0xb8] sm:$0xff]
        %v331 = vld [vmem:[#allocation4 + $0xc0] sm:$0xff]
        %v332 = vld [vmem:[#allocation4 + $0xc8] sm:$0xff]
        %v333 = vld [vmem:[#allocation4 + $0xd0] sm:$0xff]
        %v334 = vld [vmem:[#allocation4 + $0xd8] sm:$0xff]
        %v335 = vld [vmem:[#allocation4 + $0xe0] sm:$0xff]
        %v336 = vld [vmem:[#allocation4 + $0xe8] sm:$0xff]
        %v337 = vld [vmem:[#allocation4 + $0xf0] sm:$0xff]
        %v338 = vld [vmem:[#allocation4 + $0xf8] sm:$0xff]
        %v339 = vld [vmem:[#allocation4 + $0x100] sm:$0xff]
        %v340 = vld [vmem:[#allocation4 + $0x108] sm:$0xff]
        %v341 = vld [vmem:[#allocation4 + $0x110] sm:$0xff]
        %v342 = vld [vmem:[#allocation4 + $0x118] sm:$0xff]
        %v343 = vld [vmem:[#allocation4 + $0x120] sm:$0xff]
        %v344 = vld [vmem:[#allocation4 + $0x128] sm:$0xff]
        %v345 = vld [vmem:[#allocation4 + $0x130] sm:$0xff]
        %v346 = vld [vmem:[#allocation4 + $0x138] sm:$0xff]
        %v347 = vld [vmem:[#allocation4 + $0x140] sm:$0xff]
        %v348 = vld [vmem:[#allocation4 + $0x148] sm:$0xff]
        %v349 = vld [vmem:[#allocation4 + $0x150] sm:$0xff]
        %v350 = vld [vmem:[#allocation4 + $0x158] sm:$0xff]
        %v351 = vld [vmem:[#allocation4 + $0x160] sm:$0xff]
        %v352 = vld [vmem:[#allocation4 + $0x168] sm:$0xff]
        %v353 = vld [vmem:[#allocation4 + $0x170] sm:$0xff]
        %v354 = vld [vmem:[#allocation4 + $0x178] sm:$0xff]
        %v355 = vld [vmem:[#allocation4 + $0x180] sm:$0xff]
        %v356 = vld [vmem:[#allocation4 + $0x188] sm:$0xff]
        %v357 = vld [vmem:[#allocation4 + $0x190] sm:$0xff]
        %v358 = vld [vmem:[#allocation4 + $0x198] sm:$0xff]
        %v359 = vld [vmem:[#allocation4 + $0x1a0] sm:$0xff]
        %v360 = vld [vmem:[#allocation4 + $0x1a8] sm:$0xff]
        %v361 = vld [vmem:[#allocation4 + $0x1b0] sm:$0xff]
        %v362 = vld [vmem:[#allocation4 + $0x1b8] sm:$0xff]
        %v363 = vld [vmem:[#allocation4 + $0x1c0] sm:$0xff]
        %v364 = vld [vmem:[#allocation4 + $0x1c8] sm:$0xff]
        %v365 = vld [vmem:[#allocation4 + $0x1d0] sm:$0xff]
        %v366 = vld [vmem:[#allocation4 + $0x1d8] sm:$0xff]
        %v367 = vld [vmem:[#allocation4 + $0x1e0] sm:$0xff]
        %v368 = vld [vmem:[#allocation4 + $0x1e8] sm:$0xff]
        %v369 = vld [vmem:[#allocation4 + $0x1f0] sm:$0xff]
        %v370 = vld [vmem:[#allocation4 + $0x1f8] sm:$0xff]
        %v371 = vld [vmem:[#allocation4 + $0x200] sm:$0xff]
        %v372 = vld [vmem:[#allocation4 + $0x208] sm:$0xff]
        %v373 = vld [vmem:[#allocation4 + $0x210] sm:$0xff]
        %v374 = vld [vmem:[#allocation4 + $0x218] sm:$0xff]
        %v375 = vld [vmem:[#allocation4 + $0x220] sm:$0xff]
        %v376 = vld [vmem:[#allocation4 + $0x228] sm:$0xff]
        %v377 = vld [vmem:[#allocation4 + $0x230] sm:$0xff]
        %v378 = vld [vmem:[#allocation4 + $0x238] sm:$0xff]
        %v379 = vld [vmem:[#allocation4 + $0x240] sm:$0xff]
        %v380 = vld [vmem:[#allocation4 + $0x248] sm:$0xff]
        %v381 = vld [vmem:[#allocation4 + $0x250] sm:$0xff]
        %v382 = vld [vmem:[#allocation4 + $0x258] sm:$0xff]
        %v383 = vld [vmem:[#allocation4 + $0x260] sm:$0xff]
        %v384 = vld [vmem:[#allocation4 + $0x268] sm:$0xff]
        %v385 = vld [vmem:[#allocation4 + $0x270] sm:$0xff]
        %v386 = vld [vmem:[#allocation4 + $0x278] sm:$0xff]
        %v387 = vld [vmem:[#allocation4 + $0x280] sm:$0xff]
        %v388 = vld [vmem:[#allocation4 + $0x288] sm:$0xff]
        %v389 = vld [vmem:[#allocation4 + $0x290] sm:$0xff]
        %v390 = vld [vmem:[#allocation4 + $0x298] sm:$0xff]
        %v391 = vld [vmem:[#allocation4 + $0x2a0] sm:$0xff]
        %v392 = vld [vmem:[#allocation4 + $0x2a8] sm:$0xff]
        %v393 = vld [vmem:[#allocation4 + $0x2b0] sm:$0xff]
        %v394 = vld [vmem:[#allocation4 + $0x2b8] sm:$0xff]
        %v395 = vld [vmem:[#allocation4 + $0x2c0] sm:$0xff]
        %v396 = vld [vmem:[#allocation4 + $0x2c8] sm:$0xff]
        %v397 = vld [vmem:[#allocation4 + $0x2d0] sm:$0xff]
        %v398 = vld [vmem:[#allocation4 + $0x2d8] sm:$0xff]
        %v399 = vld [vmem:[#allocation4 + $0x2e0] sm:$0xff]
        %v400 = vld [vmem:[#allocation4 + $0x2e8] sm:$0xff]
        %v401 = vld [vmem:[#allocation4 + $0x2f0] sm:$0xff]
        %v402 = vld [vmem:[#allocation4 + $0x2f8] sm:$0xff]
        %v404 = vlaneseq
        %v405 = vshrl.u32 %v404, 7
        %v406 = vsub.s32 0, %v405
        %v407 = vrot.slane %v278, %v406
        %v408 = vlaneseq
        %v409 = vshrl.u32 %v408, 7
        %v410 = vsub.s32 1, %v409
        %v411 = vrot.slane %v278, %v410
        %v438 = vunpack.c.l.b16 %v283
        %v439 = vunpack.c.h.b16 %v283
        %v440 = vunpack.c.l.b16 %v284
        %v441 = vunpack.c.h.b16 %v284
        %v442 = vunpack.c.l.b16 %v285
        %v443 = vunpack.c.h.b16 %v285
        %v444 = vunpack.c.l.b16 %v286
        %v445 = vunpack.c.h.b16 %v286
        %v446 = vunpack.c.l.b16 %v287
        %v447 = vunpack.c.h.b16 %v287
        %v448 = vunpack.c.l.b16 %v288
        %v449 = vunpack.c.h.b16 %v288
        %v450 = vunpack.c.l.b16 %v289
        %v451 = vunpack.c.h.b16 %v289
        %v452 = vunpack.c.l.b16 %v290
        %v453 = vunpack.c.h.b16 %v290
        %v454 = vunpack.c.l.b16 %v291
        %v455 = vunpack.c.h.b16 %v291
        %v456 = vunpack.c.l.b16 %v292
        %v457 = vunpack.c.h.b16 %v292
        %v458 = vunpack.c.l.b16 %v293
        %v459 = vunpack.c.h.b16 %v293
        %v460 = vunpack.c.l.b16 %v294
        %v461 = vunpack.c.h.b16 %v294
        %v462 = vunpack.c.l.b16 %v295
        %v463 = vunpack.c.h.b16 %v295
        %v464 = vunpack.c.l.b16 %v296
        %v465 = vunpack.c.h.b16 %v296
        %v466 = vunpack.c.l.b16 %v297
        %v467 = vunpack.c.h.b16 %v297
        %v468 = vunpack.c.l.b16 %v298
        %v469 = vunpack.c.h.b16 %v298
        %v470 = vunpack.c.l.b16 %v299
        %v471 = vunpack.c.h.b16 %v299
        %v472 = vunpack.c.l.b16 %v300
        %v473 = vunpack.c.h.b16 %v300
        %v474 = vunpack.c.l.b16 %v301
        %v475 = vunpack.c.h.b16 %v301
        %v476 = vunpack.c.l.b16 %v302
        %v477 = vunpack.c.h.b16 %v302
        %v478 = vunpack.c.l.b16 %v303
        %v479 = vunpack.c.h.b16 %v303
        %v480 = vunpack.c.l.b16 %v304
        %v481 = vunpack.c.h.b16 %v304
        %v482 = vunpack.c.l.b16 %v305
        %v483 = vunpack.c.h.b16 %v305
        %v484 = vunpack.c.l.b16 %v306
        %v485 = vunpack.c.h.b16 %v306
        %v486 = vpack.c.b16 %v444, %v438
        %v487 = vpack.c.b16 %v445, %v439
        %v488 = vpack.c.b16 %v446, %v440
        %v489 = vpack.c.b16 %v447, %v441
        %v490 = vpack.c.b16 %v448, %v442
        %v491 = vpack.c.b16 %v449, %v443
        %v492 = vpack.c.b16 %v456, %v450
        %v493 = vpack.c.b16 %v457, %v451
        %v494 = vpack.c.b16 %v458, %v452
        %v495 = vpack.c.b16 %v459, %v453
        %v496 = vpack.c.b16 %v460, %v454
        %v497 = vpack.c.b16 %v461, %v455
        %v498 = vpack.c.b16 %v468, %v462
        %v499 = vpack.c.b16 %v469, %v463
        %v500 = vpack.c.b16 %v470, %v464
        %v501 = vpack.c.b16 %v471, %v465
        %v502 = vpack.c.b16 %v472, %v466
        %v503 = vpack.c.b16 %v473, %v467
        %v504 = vpack.c.b16 %v480, %v474
        %v505 = vpack.c.b16 %v481, %v475
        %v506 = vpack.c.b16 %v482, %v476
        %v507 = vpack.c.b16 %v483, %v477
        %v508 = vpack.c.b16 %v484, %v478
        %v509 = vpack.c.b16 %v485, %v479
        %v630 = vunpack.c.l.b16 %v307
        %v631 = vunpack.c.h.b16 %v307
        %v632 = vunpack.c.l.b16 %v308
        %v633 = vunpack.c.h.b16 %v308
        %v634 = vunpack.c.l.b16 %v309
        %v635 = vunpack.c.h.b16 %v309
        %v636 = vunpack.c.l.b16 %v310
        %v637 = vunpack.c.h.b16 %v310
        %v638 = vunpack.c.l.b16 %v311
        %v639 = vunpack.c.h.b16 %v311
        %v640 = vunpack.c.l.b16 %v312
        %v641 = vunpack.c.h.b16 %v312
        %v642 = vunpack.c.l.b16 %v313
        %v643 = vunpack.c.h.b16 %v313
        %v644 = vunpack.c.l.b16 %v314
        %v645 = vunpack.c.h.b16 %v314
        %v646 = vunpack.c.l.b16 %v315
        %v647 = vunpack.c.h.b16 %v315
        %v648 = vunpack.c.l.b16 %v316
        %v649 = vunpack.c.h.b16 %v316
        %v650 = vunpack.c.l.b16 %v317
        %v651 = vunpack.c.h.b16 %v317
        %v652 = vunpack.c.l.b16 %v318
        %v653 = vunpack.c.h.b16 %v318
        %v654 = vunpack.c.l.b16 %v319
        %v655 = vunpack.c.h.b16 %v319
        %v656 = vunpack.c.l.b16 %v320
        %v657 = vunpack.c.h.b16 %v320
        %v658 = vunpack.c.l.b16 %v321
        %v659 = vunpack.c.h.b16 %v321
        %v660 = vunpack.c.l.b16 %v322
        %v661 = vunpack.c.h.b16 %v322
        %v662 = vunpack.c.l.b16 %v323
        %v663 = vunpack.c.h.b16 %v323
        %v664 = vunpack.c.l.b16 %v324
        %v665 = vunpack.c.h.b16 %v324
        %v666 = vunpack.c.l.b16 %v325
        %v667 = vunpack.c.h.b16 %v325
        %v668 = vunpack.c.l.b16 %v326
        %v669 = vunpack.c.h.b16 %v326
        %v670 = vunpack.c.l.b16 %v327
        %v671 = vunpack.c.h.b16 %v327
        %v672 = vunpack.c.l.b16 %v328
        %v673 = vunpack.c.h.b16 %v328
        %v674 = vunpack.c.l.b16 %v329
        %v675 = vunpack.c.h.b16 %v329
        %v676 = vunpack.c.l.b16 %v330
        %v677 = vunpack.c.h.b16 %v330
        %v678 = vunpack.c.l.b16 %v331
        %v679 = vunpack.c.h.b16 %v331
        %v680 = vunpack.c.l.b16 %v332
        %v681 = vunpack.c.h.b16 %v332
        %v682 = vunpack.c.l.b16 %v333
        %v683 = vunpack.c.h.b16 %v333
        %v684 = vunpack.c.l.b16 %v334
        %v685 = vunpack.c.h.b16 %v334
        %v686 = vunpack.c.l.b16 %v335
        %v687 = vunpack.c.h.b16 %v335
        %v688 = vunpack.c.l.b16 %v336
        %v689 = vunpack.c.h.b16 %v336
        %v690 = vunpack.c.l.b16 %v337
        %v691 = vunpack.c.h.b16 %v337
        %v692 = vunpack.c.l.b16 %v338
        %v693 = vunpack.c.h.b16 %v338
        %v694 = vunpack.c.l.b16 %v339
        %v695 = vunpack.c.h.b16 %v339
        %v696 = vunpack.c.l.b16 %v340
        %v697 = vunpack.c.h.b16 %v340
        %v698 = vunpack.c.l.b16 %v341
        %v699 = vunpack.c.h.b16 %v341
        %v700 = vunpack.c.l.b16 %v342
        %v701 = vunpack.c.h.b16 %v342
        %v702 = vunpack.c.l.b16 %v343
        %v703 = vunpack.c.h.b16 %v343
        %v704 = vunpack.c.l.b16 %v344
        %v705 = vunpack.c.h.b16 %v344
        %v706 = vunpack.c.l.b16 %v345
        %v707 = vunpack.c.h.b16 %v345
        %v708 = vunpack.c.l.b16 %v346
        %v709 = vunpack.c.h.b16 %v346
        %v710 = vunpack.c.l.b16 %v347
        %v711 = vunpack.c.h.b16 %v347
        %v712 = vunpack.c.l.b16 %v348
        %v713 = vunpack.c.h.b16 %v348
        %v714 = vunpack.c.l.b16 %v349
        %v715 = vunpack.c.h.b16 %v349
        %v716 = vunpack.c.l.b16 %v350
        %v717 = vunpack.c.h.b16 %v350
        %v718 = vunpack.c.l.b16 %v351
        %v719 = vunpack.c.h.b16 %v351
        %v720 = vunpack.c.l.b16 %v352
        %v721 = vunpack.c.h.b16 %v352
        %v722 = vunpack.c.l.b16 %v353
        %v723 = vunpack.c.h.b16 %v353
        %v724 = vunpack.c.l.b16 %v354
        %v725 = vunpack.c.h.b16 %v354
        %v726 = vunpack.c.l.b16 %v355
        %v727 = vunpack.c.h.b16 %v355
        %v728 = vunpack.c.l.b16 %v356
        %v729 = vunpack.c.h.b16 %v356
        %v730 = vunpack.c.l.b16 %v357
        %v731 = vunpack.c.h.b16 %v357
        %v732 = vunpack.c.l.b16 %v358
        %v733 = vunpack.c.h.b16 %v358
        %v734 = vunpack.c.l.b16 %v359
        %v735 = vunpack.c.h.b16 %v359
        %v736 = vunpack.c.l.b16 %v360
        %v737 = vunpack.c.h.b16 %v360
        %v738 = vunpack.c.l.b16 %v361
        %v739 = vunpack.c.h.b16 %v361
        %v740 = vunpack.c.l.b16 %v362
        %v741 = vunpack.c.h.b16 %v362
        %v742 = vunpack.c.l.b16 %v363
        %v743 = vunpack.c.h.b16 %v363
        %v744 = vunpack.c.l.b16 %v364
        %v745 = vunpack.c.h.b16 %v364
        %v746 = vunpack.c.l.b16 %v365
        %v747 = vunpack.c.h.b16 %v365
        %v748 = vunpack.c.l.b16 %v366
        %v749 = vunpack.c.h.b16 %v366
        %v750 = vunpack.c.l.b16 %v367
        %v751 = vunpack.c.h.b16 %v367
        %v752 = vunpack.c.l.b16 %v368
        %v753 = vunpack.c.h.b16 %v368
        %v754 = vunpack.c.l.b16 %v369
        %v755 = vunpack.c.h.b16 %v369
        %v756 = vunpack.c.l.b16 %v370
        %v757 = vunpack.c.h.b16 %v370
        %v758 = vunpack.c.l.b16 %v371
        %v759 = vunpack.c.h.b16 %v371
        %v760 = vunpack.c.l.b16 %v372
        %v761 = vunpack.c.h.b16 %v372
        %v762 = vunpack.c.l.b16 %v373
        %v763 = vunpack.c.h.b16 %v373
        %v764 = vunpack.c.l.b16 %v374
        %v765 = vunpack.c.h.b16 %v374
        %v766 = vunpack.c.l.b16 %v375
        %v767 = vunpack.c.h.b16 %v375
        %v768 = vunpack.c.l.b16 %v376
        %v769 = vunpack.c.h.b16 %v376
        %v770 = vunpack.c.l.b16 %v377
        %v771 = vunpack.c.h.b16 %v377
        %v772 = vunpack.c.l.b16 %v378
        %v773 = vunpack.c.h.b16 %v378
        %v774 = vunpack.c.l.b16 %v379
        %v775 = vunpack.c.h.b16 %v379
        %v776 = vunpack.c.l.b16 %v380
        %v777 = vunpack.c.h.b16 %v380
        %v778 = vunpack.c.l.b16 %v381
        %v779 = vunpack.c.h.b16 %v381
        %v780 = vunpack.c.l.b16 %v382
        %v781 = vunpack.c.h.b16 %v382
        %v782 = vunpack.c.l.b16 %v383
        %v783 = vunpack.c.h.b16 %v383
        %v784 = vunpack.c.l.b16 %v384
        %v785 = vunpack.c.h.b16 %v384
        %v786 = vunpack.c.l.b16 %v385
        %v787 = vunpack.c.h.b16 %v385
        %v788 = vunpack.c.l.b16 %v386
        %v789 = vunpack.c.h.b16 %v386
        %v790 = vunpack.c.l.b16 %v387
        %v791 = vunpack.c.h.b16 %v387
        %v792 = vunpack.c.l.b16 %v388
        %v793 = vunpack.c.h.b16 %v388
        %v794 = vunpack.c.l.b16 %v389
        %v795 = vunpack.c.h.b16 %v389
        %v796 = vunpack.c.l.b16 %v390
        %v797 = vunpack.c.h.b16 %v390
        %v798 = vunpack.c.l.b16 %v391
        %v799 = vunpack.c.h.b16 %v391
        %v800 = vunpack.c.l.b16 %v392
        %v801 = vunpack.c.h.b16 %v392
        %v802 = vunpack.c.l.b16 %v393
        %v803 = vunpack.c.h.b16 %v393
        %v804 = vunpack.c.l.b16 %v394
        %v805 = vunpack.c.h.b16 %v394
        %v806 = vunpack.c.l.b16 %v395
        %v807 = vunpack.c.h.b16 %v395
        %v808 = vunpack.c.l.b16 %v396
        %v809 = vunpack.c.h.b16 %v396
        %v810 = vunpack.c.l.b16 %v397
        %v811 = vunpack.c.h.b16 %v397
        %v812 = vunpack.c.l.b16 %v398
        %v813 = vunpack.c.h.b16 %v398
        %v814 = vunpack.c.l.b16 %v399
        %v815 = vunpack.c.h.b16 %v399
        %v816 = vunpack.c.l.b16 %v400
        %v817 = vunpack.c.h.b16 %v400
        %v818 = vunpack.c.l.b16 %v401
        %v819 = vunpack.c.h.b16 %v401
        %v820 = vunpack.c.l.b16 %v402
        %v821 = vunpack.c.h.b16 %v402
        %v822 = vpack.c.b16 %v632, %v630
        %v823 = vpack.c.b16 %v633, %v631
        %v824 = vpack.c.b16 %v636, %v634
        %v825 = vpack.c.b16 %v637, %v635
        %v826 = vpack.c.b16 %v640, %v638
        %v827 = vpack.c.b16 %v641, %v639
        %v828 = vpack.c.b16 %v644, %v642
        %v829 = vpack.c.b16 %v645, %v643
        %v830 = vpack.c.b16 %v648, %v646
        %v831 = vpack.c.b16 %v649, %v647
        %v832 = vpack.c.b16 %v652, %v650
        %v833 = vpack.c.b16 %v653, %v651
        %v834 = vpack.c.b16 %v656, %v654
        %v835 = vpack.c.b16 %v657, %v655
        %v836 = vpack.c.b16 %v660, %v658
        %v837 = vpack.c.b16 %v661, %v659
        %v838 = vpack.c.b16 %v664, %v662
        %v839 = vpack.c.b16 %v665, %v663
        %v840 = vpack.c.b16 %v668, %v666
        %v841 = vpack.c.b16 %v669, %v667
        %v842 = vpack.c.b16 %v672, %v670
        %v843 = vpack.c.b16 %v673, %v671
        %v844 = vpack.c.b16 %v676, %v674
        %v845 = vpack.c.b16 %v677, %v675
        %v846 = vpack.c.b16 %v680, %v678
        %v847 = vpack.c.b16 %v681, %v679
        %v848 = vpack.c.b16 %v684, %v682
        %v849 = vpack.c.b16 %v685, %v683
        %v850 = vpack.c.b16 %v688, %v686
        %v851 = vpack.c.b16 %v689, %v687
        %v852 = vpack.c.b16 %v692, %v690
        %v853 = vpack.c.b16 %v693, %v691
        %v854 = vpack.c.b16 %v696, %v694
        %v855 = vpack.c.b16 %v697, %v695
        %v856 = vpack.c.b16 %v700, %v698
        %v857 = vpack.c.b16 %v701, %v699
        %v858 = vpack.c.b16 %v704, %v702
        %v859 = vpack.c.b16 %v705, %v703
        %v860 = vpack.c.b16 %v708, %v706
        %v861 = vpack.c.b16 %v709, %v707
        %v862 = vpack.c.b16 %v712, %v710
        %v863 = vpack.c.b16 %v713, %v711
        %v864 = vpack.c.b16 %v716, %v714
        %v865 = vpack.c.b16 %v717, %v715
        %v866 = vpack.c.b16 %v720, %v718
        %v867 = vpack.c.b16 %v721, %v719
        %v868 = vpack.c.b16 %v724, %v722
        %v869 = vpack.c.b16 %v725, %v723
        %v870 = vpack.c.b16 %v728, %v726
        %v871 = vpack.c.b16 %v729, %v727
        %v872 = vpack.c.b16 %v732, %v730
        %v873 = vpack.c.b16 %v733, %v731
        %v874 = vpack.c.b16 %v736, %v734
        %v875 = vpack.c.b16 %v737, %v735
        %v876 = vpack.c.b16 %v740, %v738
        %v877 = vpack.c.b16 %v741, %v739
        %v878 = vpack.c.b16 %v744, %v742
        %v879 = vpack.c.b16 %v745, %v743
        %v880 = vpack.c.b16 %v748, %v746
        %v881 = vpack.c.b16 %v749, %v747
        %v882 = vpack.c.b16 %v752, %v750
        %v883 = vpack.c.b16 %v753, %v751
        %v884 = vpack.c.b16 %v756, %v754
        %v885 = vpack.c.b16 %v757, %v755
        %v886 = vpack.c.b16 %v760, %v758
        %v887 = vpack.c.b16 %v761, %v759
        %v888 = vpack.c.b16 %v764, %v762
        %v889 = vpack.c.b16 %v765, %v763
        %v890 = vpack.c.b16 %v768, %v766
        %v891 = vpack.c.b16 %v769, %v767
        %v892 = vpack.c.b16 %v772, %v770
        %v893 = vpack.c.b16 %v773, %v771
        %v894 = vpack.c.b16 %v776, %v774
        %v895 = vpack.c.b16 %v777, %v775
        %v896 = vpack.c.b16 %v780, %v778
        %v897 = vpack.c.b16 %v781, %v779
        %v898 = vpack.c.b16 %v784, %v782
        %v899 = vpack.c.b16 %v785, %v783
        %v900 = vpack.c.b16 %v788, %v786
        %v901 = vpack.c.b16 %v789, %v787
        %v902 = vpack.c.b16 %v792, %v790
        %v903 = vpack.c.b16 %v793, %v791
        %v904 = vpack.c.b16 %v796, %v794
        %v905 = vpack.c.b16 %v797, %v795
        %v906 = vpack.c.b16 %v800, %v798
        %v907 = vpack.c.b16 %v801, %v799
        %v908 = vpack.c.b16 %v804, %v802
        %v909 = vpack.c.b16 %v805, %v803
        %v910 = vpack.c.b16 %v808, %v806
        %v911 = vpack.c.b16 %v809, %v807
        %v912 = vpack.c.b16 %v812, %v810
        %v913 = vpack.c.b16 %v813, %v811
        %v914 = vpack.c.b16 %v816, %v814
        %v915 = vpack.c.b16 %v817, %v815
        %v916 = vpack.c.b16 %v820, %v818
        %v917 = vpack.c.b16 %v821, %v819
        %1014 = vmatprep.subr.bf16.mxu0 %v823
        %1015 = vmatpush1.bf16.msra.mxu0 %v822
        %1016 = vmatprep.subr.bf16.mxu0 %v825
        %1017 = vmatpush1.bf16.msra.mxu0 %v824
        %1018 = vmatprep.subr.bf16.mxu0 %v827
        %1019 = vmatpush1.bf16.msra.mxu0 %v826
        %1020 = vmatprep.subr.bf16.mxu0 %v829
        %1021 = vmatpush1.bf16.msra.mxu0 %v828
        %1022 = vmatprep.subr.bf16.mxu0 %v831
        %1023 = vmatpush1.bf16.msra.mxu0 %v830
        %1024 = vmatprep.subr.bf16.mxu0 %v833
        %1025 = vmatpush1.bf16.msra.mxu0 %v832
        %1026 = vmatprep.subr.bf16.mxu0 %v835
        %1027 = vmatpush1.bf16.msra.mxu0 %v834
        %1028 = vmatprep.subr.bf16.mxu0 %v837
        %1029 = vmatpush1.bf16.msra.mxu0 %v836
        %1030 = vmatprep.subr.bf16.mxu0 %v839
        %1031 = vmatpush1.bf16.msra.mxu0 %v838
        %1032 = vmatprep.subr.bf16.mxu0 %v841
        %1033 = vmatpush1.bf16.msra.mxu0 %v840
        %1034 = vmatprep.subr.bf16.mxu0 %v843
        %1035 = vmatpush1.bf16.msra.mxu0 %v842
        %1036 = vmatprep.subr.bf16.mxu0 %v845
        %1037 = vmatpush1.bf16.msra.mxu0 %v844
        %1038 = vmatprep.subr.bf16.mxu0 %v847
        %1039 = vmatpush1.bf16.msra.mxu0 %v846
        %1040 = vmatprep.subr.bf16.mxu0 %v849
        %1041 = vmatpush1.bf16.msra.mxu0 %v848
        %1042 = vmatprep.subr.bf16.mxu0 %v851
        %1043 = vmatpush1.bf16.msra.mxu0 %v850
        %1044 = vmatprep.subr.bf16.mxu0 %v853
        %1045 = vmatpush1.bf16.msra.mxu0 %v852
        %1046 = vmatprep.mubr.bf16.mxu0 %v487
        %1047 = vmatmul.mubr.bf16.gmra.mrb[0].mxu0 %v486
        %v1048 = vpop.f32.mrb[0].mxu0
        %v1049 = vadd.f32 %v407, %v1048
        %v1050 = vpop.f32.mrb[0].mxu0
        %v1051 = vadd.f32 %v411, %v1050
        %v1052 = vpop.f32.mrb[0].mxu0
        %v1053 = vadd.f32 %v407, %v1052
        %v1054 = vpop.f32.mrb[0].mxu0
        %v1055 = vadd.f32 %v411, %v1054
        %1056 = vmatprep.mubr.bf16.mxu0 %v493
        %1057 = vmatmul.mubr.bf16.gmra.mrb[0].mxu0 %v492
        %v1058 = vpop.f32.mrb[0].mxu0
        %v1059 = vadd.f32 %v407, %v1058
        %v1060 = vpop.f32.mrb[0].mxu0
        %v1061 = vadd.f32 %v411, %v1060
        %v1062 = vpop.f32.mrb[0].mxu0
        %v1063 = vadd.f32 %v407, %v1062
        %v1064 = vpop.f32.mrb[0].mxu0
        %v1065 = vadd.f32 %v411, %v1064
        %1066 = vmatprep.mubr.bf16.mxu0 %v499
        %1067 = vmatmul.mubr.bf16.gmra.mrb[0].mxu0 %v498
        %v1068 = vpop.f32.mrb[0].mxu0
        %v1069 = vadd.f32 %v407, %v1068
        %v1070 = vpop.f32.mrb[0].mxu0
        %v1071 = vadd.f32 %v411, %v1070
        %v1072 = vpop.f32.mrb[0].mxu0
        %v1073 = vadd.f32 %v407, %v1072
        %v1074 = vpop.f32.mrb[0].mxu0
        %v1075 = vadd.f32 %v411, %v1074
        %1076 = vmatprep.mubr.bf16.mxu0 %v505
        %1077 = vmatmul.mubr.bf16.gmra.mrb[0].mxu0 %v504
        %v1078 = vpop.f32.mrb[0].mxu0
        %v1079 = vadd.f32 %v407, %v1078
        %v1080 = vpop.f32.mrb[0].mxu0
        %v1081 = vadd.f32 %v411, %v1080
        %v1082 = vpop.f32.mrb[0].mxu0
        %v1083 = vadd.f32 %v407, %v1082
        %v1084 = vpop.f32.mrb[0].mxu0
        %v1085 = vadd.f32 %v411, %v1084
        %1086 = vdwg.mxu0
        %1087 = vmatprep.subr.bf16.mxu0 %v855
        %1088 = vmatpush1.bf16.msra.mxu0 %v854
        %1089 = vmatprep.subr.bf16.mxu0 %v857
        %1090 = vmatpush1.bf16.msra.mxu0 %v856
        %1091 = vmatprep.subr.bf16.mxu0 %v859
        %1092 = vmatpush1.bf16.msra.mxu0 %v858
        %1093 = vmatprep.subr.bf16.mxu0 %v861
        %1094 = vmatpush1.bf16.msra.mxu0 %v860
        %1095 = vmatprep.subr.bf16.mxu0 %v863
        %1096 = vmatpush1.bf16.msra.mxu0 %v862
        %1097 = vmatprep.subr.bf16.mxu0 %v865
        %1098 = vmatpush1.bf16.msra.mxu0 %v864
        %1099 = vmatprep.subr.bf16.mxu0 %v867
        %1100 = vmatpush1.bf16.msra.mxu0 %v866
        %1101 = vmatprep.subr.bf16.mxu0 %v869
        %1102 = vmatpush1.bf16.msra.mxu0 %v868
        %1103 = vmatprep.subr.bf16.mxu0 %v871
        %1104 = vmatpush1.bf16.msra.mxu0 %v870
        %1105 = vmatprep.subr.bf16.mxu0 %v873
        %1106 = vmatpush1.bf16.msra.mxu0 %v872
        %1107 = vmatprep.subr.bf16.mxu0 %v875
        %1108 = vmatpush1.bf16.msra.mxu0 %v874
        %1109 = vmatprep.subr.bf16.mxu0 %v877
        %1110 = vmatpush1.bf16.msra.mxu0 %v876
        %1111 = vmatprep.subr.bf16.mxu0 %v879
        %1112 = vmatpush1.bf16.msra.mxu0 %v878
        %1113 = vmatprep.subr.bf16.mxu0 %v881
        %1114 = vmatpush1.bf16.msra.mxu0 %v880
        %1115 = vmatprep.subr.bf16.mxu0 %v883
        %1116 = vmatpush1.bf16.msra.mxu0 %v882
        %1117 = vmatprep.subr.bf16.mxu0 %v885
        %1118 = vmatpush1.bf16.msra.mxu0 %v884
        %1119 = vmatprep.mubr.bf16.mxu0 %v489
        %1120 = vmatmul.mubr.bf16.gmra.mrb[0].mxu0 %v488
        %v1121 = vpop.f32.mrb[0].mxu0
        %v1122 = vadd.f32 %v1049, %v1121
        %v1123 = vpop.f32.mrb[0].mxu0
        %v1124 = vadd.f32 %v1051, %v1123
        %v1125 = vpop.f32.mrb[0].mxu0
        %v1126 = vadd.f32 %v1053, %v1125
        %v1127 = vpop.f32.mrb[0].mxu0
        %v1128 = vadd.f32 %v1055, %v1127
        %1129 = vmatprep.mubr.bf16.mxu0 %v495
        %1130 = vmatmul.mubr.bf16.gmra.mrb[0].mxu0 %v494
        %v1131 = vpop.f32.mrb[0].mxu0
        %v1132 = vadd.f32 %v1059, %v1131
        %v1133 = vpop.f32.mrb[0].mxu0
        %v1134 = vadd.f32 %v1061, %v1133
        %v1135 = vpop.f32.mrb[0].mxu0
        %v1136 = vadd.f32 %v1063, %v1135
        %v1137 = vpop.f32.mrb[0].mxu0
        %v1138 = vadd.f32 %v1065, %v1137
        %1139 = vmatprep.mubr.bf16.mxu0 %v501
        %1140 = vmatmul.mubr.bf16.gmra.mrb[0].mxu0 %v500
        %v1141 = vpop.f32.mrb[0].mxu0
        %v1142 = vadd.f32 %v1069, %v1141
        %v1143 = vpop.f32.mrb[0].mxu0
        %v1144 = vadd.f32 %v1071, %v1143
        %v1145 = vpop.f32.mrb[0].mxu0
        %v1146 = vadd.f32 %v1073, %v1145
        %v1147 = vpop.f32.mrb[0].mxu0
        %v1148 = vadd.f32 %v1075, %v1147
        %1149 = vmatprep.mubr.bf16.mxu0 %v507
        %1150 = vmatmul.mubr.bf16.gmra.mrb[0].mxu0 %v506
        %v1151 = vpop.f32.mrb[0].mxu0
        %v1152 = vadd.f32 %v1079, %v1151
        %v1153 = vpop.f32.mrb[0].mxu0
        %v1154 = vadd.f32 %v1081, %v1153
        %v1155 = vpop.f32.mrb[0].mxu0
        %v1156 = vadd.f32 %v1083, %v1155
        %v1157 = vpop.f32.mrb[0].mxu0
        %v1158 = vadd.f32 %v1085, %v1157
        %1159 = vdwg.mxu0
        %1160 = vmatprep.subr.bf16.mxu0 %v887
        %1161 = vmatpush1.bf16.msra.mxu0 %v886
        %1162 = vmatprep.subr.bf16.mxu0 %v889
        %1163 = vmatpush1.bf16.msra.mxu0 %v888
        %1164 = vmatprep.subr.bf16.mxu0 %v891
        %1165 = vmatpush1.bf16.msra.mxu0 %v890
        %1166 = vmatprep.subr.bf16.mxu0 %v893
        %1167 = vmatpush1.bf16.msra.mxu0 %v892
        %1168 = vmatprep.subr.bf16.mxu0 %v895
        %1169 = vmatpush1.bf16.msra.mxu0 %v894
        %1170 = vmatprep.subr.bf16.mxu0 %v897
        %1171 = vmatpush1.bf16.msra.mxu0 %v896
        %1172 = vmatprep.subr.bf16.mxu0 %v899
        %1173 = vmatpush1.bf16.msra.mxu0 %v898
        %1174 = vmatprep.subr.bf16.mxu0 %v901
        %1175 = vmatpush1.bf16.msra.mxu0 %v900
        %1176 = vmatprep.subr.bf16.mxu0 %v903
        %1177 = vmatpush1.bf16.msra.mxu0 %v902
        %1178 = vmatprep.subr.bf16.mxu0 %v905
        %1179 = vmatpush1.bf16.msra.mxu0 %v904
        %1180 = vmatprep.subr.bf16.mxu0 %v907
        %1181 = vmatpush1.bf16.msra.mxu0 %v906
        %1182 = vmatprep.subr.bf16.mxu0 %v909
        %1183 = vmatpush1.bf16.msra.mxu0 %v908
        %1184 = vmatprep.subr.bf16.mxu0 %v911
        %1185 = vmatpush1.bf16.msra.mxu0 %v910
        %1186 = vmatprep.subr.bf16.mxu0 %v913
        %1187 = vmatpush1.bf16.msra.mxu0 %v912
        %1188 = vmatprep.subr.bf16.mxu0 %v915
        %1189 = vmatpush1.bf16.msra.mxu0 %v914
        %1190 = vmatprep.subr.bf16.mxu0 %v917
        %1191 = vmatpush1.bf16.msra.mxu0 %v916
        %1192 = vmatprep.mubr.bf16.mxu0 %v491
        %1193 = vmatmul.mubr.bf16.gmra.mrb[0].mxu0 %v490
        %v1194 = vpop.f32.mrb[0].mxu0
        %v1195 = vadd.f32 %v1122, %v1194
        %v1196 = vpop.f32.mrb[0].mxu0
        %v1197 = vadd.f32 %v1124, %v1196
        %v1198 = vpop.f32.mrb[0].mxu0
        %v1199 = vadd.f32 %v1126, %v1198
        %v1200 = vpop.f32.mrb[0].mxu0
        %v1201 = vadd.f32 %v1128, %v1200
        %1202 = vmatprep.mubr.bf16.mxu0 %v497
        %1203 = vmatmul.mubr.bf16.gmra.mrb[0].mxu0 %v496
        %v1204 = vpop.f32.mrb[0].mxu0
        %v1205 = vadd.f32 %v1132, %v1204
        %v1206 = vpop.f32.mrb[0].mxu0
        %v1207 = vadd.f32 %v1134, %v1206
        %v1208 = vpop.f32.mrb[0].mxu0
        %v1209 = vadd.f32 %v1136, %v1208
        %v1210 = vpop.f32.mrb[0].mxu0
        %v1211 = vadd.f32 %v1138, %v1210
        %1212 = vmatprep.mubr.bf16.mxu0 %v503
        %1213 = vmatmul.mubr.bf16.gmra.mrb[0].mxu0 %v502
        %v1214 = vpop.f32.mrb[0].mxu0
        %v1215 = vadd.f32 %v1142, %v1214
        %v1216 = vpop.f32.mrb[0].mxu0
        %v1217 = vadd.f32 %v1144, %v1216
        %v1218 = vpop.f32.mrb[0].mxu0
        %v1219 = vadd.f32 %v1146, %v1218
        %v1220 = vpop.f32.mrb[0].mxu0
        %v1221 = vadd.f32 %v1148, %v1220
        %1222 = vmatprep.mubr.bf16.mxu0 %v509
        %1223 = vmatmul.mubr.bf16.gmra.mrb[0].mxu0 %v508
        %v1224 = vpop.f32.mrb[0].mxu0
        %v1225 = vadd.f32 %v1152, %v1224
        %v1226 = vpop.f32.mrb[0].mxu0
        %v1227 = vadd.f32 %v1154, %v1226
        %v1228 = vpop.f32.mrb[0].mxu0
        %v1229 = vadd.f32 %v1156, %v1228
        %v1230 = vpop.f32.mrb[0].mxu0
        %v1231 = vadd.f32 %v1158, %v1230
        %1232 = vdwg.mxu0
        %v1233 = vmax.f32 %v1195, 0.0
        %v1234 = vmax.f32 %v1197, 0.0
        %v1235 = vmax.f32 %v1199, 0.0
        %v1236 = vmax.f32 %v1201, 0.0
        %v1237 = vmax.f32 %v1205, 0.0
        %v1238 = vmax.f32 %v1207, 0.0
        %v1239 = vmax.f32 %v1209, 0.0
        %v1240 = vmax.f32 %v1211, 0.0
        %v1241 = vmax.f32 %v1215, 0.0
        %v1242 = vmax.f32 %v1217, 0.0
        %v1243 = vmax.f32 %v1219, 0.0
        %v1244 = vmax.f32 %v1221, 0.0
        %v1245 = vmax.f32 %v1225, 0.0
        %v1246 = vmax.f32 %v1227, 0.0
        %v1247 = vmax.f32 %v1229, 0.0
        %v1248 = vmax.f32 %v1231, 0.0
        %v1249 = vpack.c.bf16 %v1235, %v1233
        %v1250 = vpack.c.bf16 %v1236, %v1234
        %v1251 = vpack.c.bf16 %v1239, %v1237
        %v1252 = vpack.c.bf16 %v1240, %v1238
        %v1253 = vpack.c.bf16 %v1243, %v1241
        %v1254 = vpack.c.bf16 %v1244, %v1242
        %v1255 = vpack.c.bf16 %v1247, %v1245
        %v1256 = vpack.c.bf16 %v1248, %v1246
        %v1257 = vld [vmem:[#allocation6] sm:$0xf]
        %v1258 = vld [vmem:[#allocation6 + $0x4] sm:$0xf]
        %v1259 = vld [vmem:[#allocation6 + $0x8] sm:$0xf]
        %v1260 = vld [vmem:[#allocation6 + $0xc] sm:$0xf]
        %v1261 = vld [vmem:[#allocation6 + $0x10] sm:$0xf]
        %v1262 = vld [vmem:[#allocation6 + $0x14] sm:$0xf]
        %v1263 = vld [vmem:[#allocation6 + $0x18] sm:$0xf]
        %v1264 = vld [vmem:[#allocation6 + $0x1c] sm:$0xf]
        %v1265 = vld [vmem:[#allocation6 + $0x20] sm:$0xf]
        %v1266 = vld [vmem:[#allocation6 + $0x24] sm:$0xf]
        %v1267 = vld [vmem:[#allocation6 + $0x28] sm:$0xf]
        %v1268 = vld [vmem:[#allocation6 + $0x2c] sm:$0xf]
        %v1269 = vld [vmem:[#allocation6 + $0x30] sm:$0xf]
        %v1270 = vld [vmem:[#allocation6 + $0x34] sm:$0xf]
        %v1271 = vld [vmem:[#allocation6 + $0x38] sm:$0xf]
        %v1272 = vld [vmem:[#allocation6 + $0x3c] sm:$0xf]
        %v1273 = vld [vmem:[#allocation6 + $0x40] sm:$0xf]
        %v1274 = vld [vmem:[#allocation6 + $0x44] sm:$0xf]
        %v1275 = vld [vmem:[#allocation6 + $0x48] sm:$0xf]
        %v1276 = vld [vmem:[#allocation6 + $0x4c] sm:$0xf]
        %v1277 = vld [vmem:[#allocation6 + $0x50] sm:$0xf]
        %v1278 = vld [vmem:[#allocation6 + $0x54] sm:$0xf]
        %v1279 = vld [vmem:[#allocation6 + $0x58] sm:$0xf]
        %v1280 = vld [vmem:[#allocation6 + $0x5c] sm:$0xf]
        %v1281 = vld [vmem:[#allocation6 + $0x60] sm:$0xf]
        %v1282 = vld [vmem:[#allocation6 + $0x64] sm:$0xf]
        %v1283 = vld [vmem:[#allocation6 + $0x68] sm:$0xf]
        %v1284 = vld [vmem:[#allocation6 + $0x6c] sm:$0xf]
        %v1285 = vld [vmem:[#allocation6 + $0x70] sm:$0xf]
        %v1286 = vld [vmem:[#allocation6 + $0x74] sm:$0xf]
        %v1287 = vld [vmem:[#allocation6 + $0x78] sm:$0xf]
        %v1288 = vld [vmem:[#allocation6 + $0x7c] sm:$0xf]
        %v1321 = vunpack.c.l.b16 %v1257
        %v1322 = vunpack.c.l.b16 %v1258
        %v1323 = vunpack.c.l.b16 %v1259
        %v1324 = vunpack.c.l.b16 %v1260
        %v1325 = vunpack.c.l.b16 %v1261
        %v1326 = vunpack.c.l.b16 %v1262
        %v1327 = vunpack.c.l.b16 %v1263
        %v1328 = vunpack.c.l.b16 %v1264
        %v1329 = vunpack.c.l.b16 %v1265
        %v1330 = vunpack.c.l.b16 %v1266
        %v1331 = vunpack.c.l.b16 %v1267
        %v1332 = vunpack.c.l.b16 %v1268
        %v1333 = vunpack.c.l.b16 %v1269
        %v1334 = vunpack.c.l.b16 %v1270
        %v1335 = vunpack.c.l.b16 %v1271
        %v1336 = vunpack.c.l.b16 %v1272
        %v1337 = vunpack.c.l.b16 %v1273
        %v1338 = vunpack.c.l.b16 %v1274
        %v1339 = vunpack.c.l.b16 %v1275
        %v1340 = vunpack.c.l.b16 %v1276
        %v1341 = vunpack.c.l.b16 %v1277
        %v1342 = vunpack.c.l.b16 %v1278
        %v1343 = vunpack.c.l.b16 %v1279
        %v1344 = vunpack.c.l.b16 %v1280
        %v1345 = vunpack.c.l.b16 %v1281
        %v1346 = vunpack.c.l.b16 %v1282
        %v1347 = vunpack.c.l.b16 %v1283
        %v1348 = vunpack.c.l.b16 %v1284
        %v1349 = vunpack.c.l.b16 %v1285
        %v1350 = vunpack.c.l.b16 %v1286
        %v1351 = vunpack.c.l.b16 %v1287
        %v1352 = vunpack.c.l.b16 %v1288
        %v1353 = vpack.c.b16 %v1322, %v1321
        %v1354 = vpack.c.b16 %v1324, %v1323
        %v1355 = vpack.c.b16 %v1326, %v1325
        %v1356 = vpack.c.b16 %v1328, %v1327
        %v1357 = vpack.c.b16 %v1330, %v1329
        %v1358 = vpack.c.b16 %v1332, %v1331
        %v1359 = vpack.c.b16 %v1334, %v1333
        %v1360 = vpack.c.b16 %v1336, %v1335
        %v1361 = vpack.c.b16 %v1338, %v1337
        %v1362 = vpack.c.b16 %v1340, %v1339
        %v1363 = vpack.c.b16 %v1342, %v1341
        %v1364 = vpack.c.b16 %v1344, %v1343
        %v1365 = vpack.c.b16 %v1346, %v1345
        %v1366 = vpack.c.b16 %v1348, %v1347
        %v1367 = vpack.c.b16 %v1350, %v1349
        %v1368 = vpack.c.b16 %v1352, %v1351
        %1385 = vmatprep.subr.bf16.mxu0 0
        %1386 = vmatpush1.bf16.msra.mxu0 %v1353
        %1387 = vmatprep.subr.bf16.mxu0 0
        %1388 = vmatpush1.bf16.msra.mxu0 %v1354
        %1389 = vmatprep.subr.bf16.mxu0 0
        %1390 = vmatpush1.bf16.msra.mxu0 %v1355
        %1391 = vmatprep.subr.bf16.mxu0 0
        %1392 = vmatpush1.bf16.msra.mxu0 %v1356
        %1393 = vmatprep.subr.bf16.mxu0 0
        %1394 = vmatpush1.bf16.msra.mxu0 %v1357
        %1395 = vmatprep.subr.bf16.mxu0 0
        %1396 = vmatpush1.bf16.msra.mxu0 %v1358
        %1397 = vmatprep.subr.bf16.mxu0 0
        %1398 = vmatpush1.bf16.msra.mxu0 %v1359
        %1399 = vmatprep.subr.bf16.mxu0 0
        %1400 = vmatpush1.bf16.msra.mxu0 %v1360
        %1401 = vmatprep.subr.bf16.mxu0 0
        %1402 = vmatpush1.bf16.msra.mxu0 %v1361
        %1403 = vmatprep.subr.bf16.mxu0 0
        %1404 = vmatpush1.bf16.msra.mxu0 %v1362
        %1405 = vmatprep.subr.bf16.mxu0 0
        %1406 = vmatpush1.bf16.msra.mxu0 %v1363
        %1407 = vmatprep.subr.bf16.mxu0 0
        %1408 = vmatpush1.bf16.msra.mxu0 %v1364
        %1409 = vmatprep.subr.bf16.mxu0 0
        %1410 = vmatpush1.bf16.msra.mxu0 %v1365
        %1411 = vmatprep.subr.bf16.mxu0 0
        %1412 = vmatpush1.bf16.msra.mxu0 %v1366
        %1413 = vmatprep.subr.bf16.mxu0 0
        %1414 = vmatpush1.bf16.msra.mxu0 %v1367
        %1415 = vmatprep.subr.bf16.mxu0 0
        %1416 = vmatpush1.bf16.msra.mxu0 %v1368
        %1417 = vmatprep.mubr.bf16.mxu0 %v1250
        %1418 = vmatmul.mubr.bf16.gmra.mrb[0].mxu0 %v1249
        %v1419 = vpop.f32.mrb[0].mxu0
        %v1420 = vadd.f32 %v279, %v1419
        %v1421 = vpop.f32.mrb[0].mxu0
        %v1422 = vpop.f32.mrb[0].mxu0
        %v1423 = vadd.f32 %v279, %v1422
        %v1424 = vpop.f32.mrb[0].mxu0
        %1425 = vmatprep.mubr.bf16.mxu0 %v1252
        %1426 = vmatmul.mubr.bf16.gmra.mrb[0].mxu0 %v1251
        %v1427 = vpop.f32.mrb[0].mxu0
        %v1428 = vadd.f32 %v279, %v1427
        %v1429 = vpop.f32.mrb[0].mxu0
        %v1430 = vpop.f32.mrb[0].mxu0
        %v1431 = vadd.f32 %v279, %v1430
        %v1432 = vpop.f32.mrb[0].mxu0
        %1433 = vmatprep.mubr.bf16.mxu0 %v1254
        %1434 = vmatmul.mubr.bf16.gmra.mrb[0].mxu0 %v1253
        %v1435 = vpop.f32.mrb[0].mxu0
        %v1436 = vadd.f32 %v279, %v1435
        %v1437 = vpop.f32.mrb[0].mxu0
        %v1438 = vpop.f32.mrb[0].mxu0
        %v1439 = vadd.f32 %v279, %v1438
        %v1440 = vpop.f32.mrb[0].mxu0
        %1441 = vmatprep.mubr.bf16.mxu0 %v1256
        %1442 = vmatmul.mubr.bf16.gmra.mrb[0].mxu0 %v1255
        %v1443 = vpop.f32.mrb[0].mxu0
        %v1444 = vadd.f32 %v279, %v1443
        %v1445 = vpop.f32.mrb[0].mxu0
        %v1446 = vpop.f32.mrb[0].mxu0
        %v1447 = vadd.f32 %v279, %v1446
        %v1448 = vpop.f32.mrb[0].mxu0
        %1449 = vdwg.mxu0
        %v1450 = vmax.f32 %v1420, 0.0
        %v1451 = vmax.f32 %v1423, 0.0
        %v1452 = vmax.f32 %v1428, 0.0
        %v1453 = vmax.f32 %v1431, 0.0
        %v1454 = vmax.f32 %v1436, 0.0
        %v1455 = vmax.f32 %v1439, 0.0
        %v1456 = vmax.f32 %v1444, 0.0
        %v1457 = vmax.f32 %v1447, 0.0
        %v1458 = vpack.c.bf16 %v1451, %v1450
        %v1459 = vpack.c.bf16 %v1453, %v1452
        %v1460 = vpack.c.bf16 %v1455, %v1454
        %v1461 = vpack.c.bf16 %v1457, %v1456
        %v1462 = vld [vmem:[%s3] sm:$0xf]
        %v1463 = vld [vmem:[%s3 + $0x4] sm:$0xf]
        %v1464 = vld [vmem:[%s3 + $0x8] sm:$0xf]
        %v1465 = vld [vmem:[%s3 + $0xc] sm:$0xf]
        %v1466 = vld [vmem:[%s3 + $0x10] sm:$0xf]
        %v1467 = vld [vmem:[%s3 + $0x14] sm:$0xf]
        %v1468 = vld [vmem:[%s3 + $0x18] sm:$0xf]
        %v1469 = vld [vmem:[%s3 + $0x1c] sm:$0xf]
        %v1470 = vld [vmem:[%s3 + $0x20] sm:$0xf]
        %v1471 = vld [vmem:[%s3 + $0x24] sm:$0xf]
        %v1472 = vld [vmem:[%s3 + $0x28] sm:$0xf]
        %v1473 = vld [vmem:[%s3 + $0x2c] sm:$0xf]
        %v1474 = vld [vmem:[%s3 + $0x30] sm:$0xf]
        %v1475 = vld [vmem:[%s3 + $0x34] sm:$0xf]
        %v1476 = vld [vmem:[%s3 + $0x38] sm:$0xf]
        %v1477 = vld [vmem:[%s3 + $0x3c] sm:$0xf]
        %v1494 = vunpack.c.l.b16 %v1462
        %v1495 = vunpack.c.l.b16 %v1463
        %v1496 = vunpack.c.l.b16 %v1464
        %v1497 = vunpack.c.l.b16 %v1465
        %v1498 = vunpack.c.l.b16 %v1466
        %v1499 = vunpack.c.l.b16 %v1467
        %v1500 = vunpack.c.l.b16 %v1468
        %v1501 = vunpack.c.l.b16 %v1469
        %v1502 = vunpack.c.l.b16 %v1470
        %v1503 = vunpack.c.l.b16 %v1471
        %v1504 = vunpack.c.l.b16 %v1472
        %v1505 = vunpack.c.l.b16 %v1473
        %v1506 = vunpack.c.l.b16 %v1474
        %v1507 = vunpack.c.l.b16 %v1475
        %v1508 = vunpack.c.l.b16 %v1476
        %v1509 = vunpack.c.l.b16 %v1477
        %v1510 = vpack.c.b16 %v1495, %v1494
        %v1511 = vpack.c.b16 %v1497, %v1496
        %v1512 = vpack.c.b16 %v1499, %v1498
        %v1513 = vpack.c.b16 %v1501, %v1500
        %v1514 = vpack.c.b16 %v1503, %v1502
        %v1515 = vpack.c.b16 %v1505, %v1504
        %v1516 = vpack.c.b16 %v1507, %v1506
        %v1517 = vpack.c.b16 %v1509, %v1508
        %1526 = vmatprep.subr.bf16.mxu0 0
        %1527 = vmatpush1.bf16.msra.mxu0 %v1510
        %1528 = vmatprep.subr.bf16.mxu0 0
        %1529 = vmatpush1.bf16.msra.mxu0 %v1511
        %1530 = vmatprep.subr.bf16.mxu0 0
        %1531 = vmatpush1.bf16.msra.mxu0 %v1512
        %1532 = vmatprep.subr.bf16.mxu0 0
        %1533 = vmatpush1.bf16.msra.mxu0 %v1513
        %1534 = vmatprep.subr.bf16.mxu0 0
        %1535 = vmatpush1.bf16.msra.mxu0 %v1514
        %1536 = vmatprep.subr.bf16.mxu0 0
        %1537 = vmatpush1.bf16.msra.mxu0 %v1515
        %1538 = vmatprep.subr.bf16.mxu0 0
        %1539 = vmatpush1.bf16.msra.mxu0 %v1516
        %1540 = vmatprep.subr.bf16.mxu0 0
        %1541 = vmatpush1.bf16.msra.mxu0 %v1517
        %1542 = vmatprep.subr.bf16.mxu0 0
        %1543 = vmatpush1.bf16.msra.mxu0 0
        %1544 = vmatprep.subr.bf16.mxu0 0
        %1545 = vmatpush1.bf16.msra.mxu0 0
        %1546 = vmatprep.subr.bf16.mxu0 0
        %1547 = vmatpush1.bf16.msra.mxu0 0
        %1548 = vmatprep.subr.bf16.mxu0 0
        %1549 = vmatpush1.bf16.msra.mxu0 0
        %1550 = vmatprep.subr.bf16.mxu0 0
        %1551 = vmatpush1.bf16.msra.mxu0 0
        %1552 = vmatprep.subr.bf16.mxu0 0
        %1553 = vmatpush1.bf16.msra.mxu0 0
        %1554 = vmatprep.subr.bf16.mxu0 0
        %1555 = vmatpush1.bf16.msra.mxu0 0
        %1556 = vmatprep.subr.bf16.mxu0 0
        %1557 = vmatpush1.bf16.msra.mxu0 0
        %1558 = vmatprep.mubr.bf16.mxu0 0
        %1559 = vmatmul.mubr.bf16.gmra.mrb[0].mxu0 %v1458
        %v1560 = vpop.f32.mrb[0].mxu0
        %v1561 = vadd.f32 %v280, %v1560
        %v1562 = vpop.f32.mrb[0].mxu0
        %v1563 = vpop.f32.mrb[0].mxu0
        %v1564 = vadd.f32 %v280, %v1563
        %v1565 = vpop.f32.mrb[0].mxu0
        %1566 = vmatprep.mubr.bf16.mxu0 0
        %1567 = vmatmul.mubr.bf16.gmra.mrb[0].mxu0 %v1459
        %v1568 = vpop.f32.mrb[0].mxu0
        %v1569 = vadd.f32 %v280, %v1568
        %v1570 = vpop.f32.mrb[0].mxu0
        %v1571 = vpop.f32.mrb[0].mxu0
        %v1572 = vadd.f32 %v280, %v1571
        %v1573 = vpop.f32.mrb[0].mxu0
        %1574 = vmatprep.mubr.bf16.mxu0 0
        %1575 = vmatmul.mubr.bf16.gmra.mrb[0].mxu0 %v1460
        %v1576 = vpop.f32.mrb[0].mxu0
        %v1577 = vadd.f32 %v280, %v1576
        %v1578 = vpop.f32.mrb[0].mxu0
        %v1579 = vpop.f32.mrb[0].mxu0
        %v1580 = vadd.f32 %v280, %v1579
        %v1581 = vpop.f32.mrb[0].mxu0
        %1582 = vmatprep.mubr.bf16.mxu0 0
        %1583 = vmatmul.mubr.bf16.gmra.mrb[0].mxu0 %v1461
        %v1584 = vpop.f32.mrb[0].mxu0
        %v1585 = vadd.f32 %v280, %v1584
        %v1586 = vpop.f32.mrb[0].mxu0
        %v1587 = vpop.f32.mrb[0].mxu0
        %v1588 = vadd.f32 %v280, %v1587
        %v1589 = vpop.f32.mrb[0].mxu0
        %1590 = vdwg.mxu0
        %v1591 = vlaneseq
        %v1592 = vshrl.u32 %v1591, 7
        %v1593 = vsub.s32 0, %v1592
        %v1594 = vrot.slane %v281, %v1593
        %v1595 = vlaneseq
        %v1596 = vshrl.u32 %v1595, 7
        %v1597 = vsub.s32 1, %v1596
        %v1598 = vrot.slane %v281, %v1597
        %v1599 = vlaneseq
        %v1600 = vshrl.u32 %v1599, 7
        %v1601 = vsub.s32 2, %v1600
        %v1602 = vrot.slane %v281, %v1601
        %v1603 = vlaneseq
        %v1604 = vshrl.u32 %v1603, 7
        %v1605 = vsub.s32 3, %v1604
        %v1606 = vrot.slane %v281, %v1605
        %v1607 = vlaneseq
        %v1608 = vshrl.u32 %v1607, 7
        %v1609 = vsub.s32 4, %v1608
        %v1610 = vrot.slane %v281, %v1609
        %v1611 = vlaneseq
        %v1612 = vshrl.u32 %v1611, 7
        %v1613 = vsub.s32 5, %v1612
        %v1614 = vrot.slane %v281, %v1613
        %v1615 = vlaneseq
        %v1616 = vshrl.u32 %v1615, 7
        %v1617 = vsub.s32 6, %v1616
        %v1618 = vrot.slane %v281, %v1617
        %v1619 = vlaneseq
        %v1620 = vshrl.u32 %v1619, 7
        %v1621 = vsub.s32 7, %v1620
        %v1622 = vrot.slane %v281, %v1621
        %v1623 = vlaneseq
        %v1624 = vshrl.u32 %v1623, 7
        %v1625 = vsub.s32 0, %v1624
        %v1626 = vrot.slane %v282, %v1625
        %v1627 = vlaneseq
        %v1628 = vshrl.u32 %v1627, 7
        %v1629 = vsub.s32 1, %v1628
        %v1630 = vrot.slane %v282, %v1629
        %v1631 = vlaneseq
        %v1632 = vshrl.u32 %v1631, 7
        %v1633 = vsub.s32 2, %v1632
        %v1634 = vrot.slane %v282, %v1633
        %v1635 = vlaneseq
        %v1636 = vshrl.u32 %v1635, 7
        %v1637 = vsub.s32 3, %v1636
        %v1638 = vrot.slane %v282, %v1637
        %v1639 = vlaneseq
        %v1640 = vshrl.u32 %v1639, 7
        %v1641 = vsub.s32 4, %v1640
        %v1642 = vrot.slane %v282, %v1641
        %v1643 = vlaneseq
        %v1644 = vshrl.u32 %v1643, 7
        %v1645 = vsub.s32 5, %v1644
        %v1646 = vrot.slane %v282, %v1645
        %v1647 = vlaneseq
        %v1648 = vshrl.u32 %v1647, 7
        %v1649 = vsub.s32 6, %v1648
        %v1650 = vrot.slane %v282, %v1649
        %v1651 = vlaneseq
        %v1652 = vshrl.u32 %v1651, 7
        %v1653 = vsub.s32 7, %v1652
        %v1654 = vrot.slane %v282, %v1653
        %v1655 = vmul.f32 %v1594, 0.0
        %v1656 = vmul.f32 %v1598, 0.0
        %v1657 = vmul.f32 %v1602, 0.0
        %v1658 = vmul.f32 %v1606, 0.0
        %v1659 = vmul.f32 %v1610, 0.0
        %v1660 = vmul.f32 %v1614, 0.0
        %v1661 = vmul.f32 %v1618, 0.0
        %v1662 = vmul.f32 %v1622, 0.0
        %v1663 = vmul.f32 %v1626, 0.0
        %v1664 = vmul.f32 %v1630, 0.0
        %v1665 = vmul.f32 %v1634, 0.0
        %v1666 = vmul.f32 %v1638, 0.0
        %v1667 = vmul.f32 %v1642, 0.0
        %v1668 = vmul.f32 %v1646, 0.0
        %v1669 = vmul.f32 %v1650, 0.0
        %v1670 = vmul.f32 %v1654, 0.0
        %v1671 = vadd.f32 %v1655, %v1656
        %v1672 = vadd.f32 %v1657, %v1658
        %v1673 = vadd.f32 %v1659, %v1660
        %v1674 = vadd.f32 %v1661, %v1662
        %v1675 = vadd.f32 %v1663, %v1664
        %v1676 = vadd.f32 %v1665, %v1666
        %v1677 = vadd.f32 %v1667, %v1668
        %v1678 = vadd.f32 %v1669, %v1670
        %v1679 = vadd.f32 %v1671, %v1672
        %v1680 = vadd.f32 %v1673, %v1674
        %v1681 = vadd.f32 %v1675, %v1676
        %v1682 = vadd.f32 %v1677, %v1678
        %v1683 = vadd.f32 %v1679, %v1680
        %v1684 = vadd.f32 %v1681, %v1682
        %v1685 = vadd.f32 %v1683, %v1684
        %v1686 = vadd.f32 %v1561, %v1685
        %v1687 = vtanh.pop %v1686
        %1689 = vset.pattern.permute.xlu0 0
        %1690 = vperm.xlu0 %1689, %v1687
        %v1691 = vpop.permute.xlu0 %1690
        %v1693 = vmul.f32 %v1691, %v1594
        %1694 = vset.pattern.permute.xlu0 1
        %1695 = vperm.xlu0 %1694, %v1687
        %v1696 = vpop.permute.xlu0 %1695
        %v1698 = vmul.f32 %v1696, %v1598
        %1699 = vset.pattern.permute.xlu0 2
        %1700 = vperm.xlu0 %1699, %v1687
        %v1701 = vpop.permute.xlu0 %1700
        %v1703 = vmul.f32 %v1701, %v1602
        %1704 = vset.pattern.permute.xlu0 3
        %1705 = vperm.xlu0 %1704, %v1687
        %v1706 = vpop.permute.xlu0 %1705
        %v1708 = vmul.f32 %v1706, %v1606
        %1709 = vset.pattern.permute.xlu0 4
        %1710 = vperm.xlu0 %1709, %v1687
        %v1711 = vpop.permute.xlu0 %1710
        %v1713 = vmul.f32 %v1711, %v1610
        %1714 = vset.pattern.permute.xlu0 5
        %1715 = vperm.xlu0 %1714, %v1687
        %v1716 = vpop.permute.xlu0 %1715
        %v1718 = vmul.f32 %v1716, %v1614
        %1719 = vset.pattern.permute.xlu0 6
        %1720 = vperm.xlu0 %1719, %v1687
        %v1721 = vpop.permute.xlu0 %1720
        %v1723 = vmul.f32 %v1721, %v1618
        %1724 = vset.pattern.permute.xlu0 7
        %1725 = vperm.xlu0 %1724, %v1687
        %v1726 = vpop.permute.xlu0 %1725
        %v1728 = vmul.f32 %v1726, %v1622
        %1729 = vset.pattern.permute.xlu0 8
        %1730 = vperm.xlu0 %1729, %v1687
        %v1731 = vpop.permute.xlu0 %1730
        %v1733 = vmul.f32 %v1731, %v1626
        %1734 = vset.pattern.permute.xlu0 9
        %1735 = vperm.xlu0 %1734, %v1687
        %v1736 = vpop.permute.xlu0 %1735
        %v1738 = vmul.f32 %v1736, %v1630
        %1739 = vset.pattern.permute.xlu0 10
        %1740 = vperm.xlu0 %1739, %v1687
        %v1741 = vpop.permute.xlu0 %1740
        %v1743 = vmul.f32 %v1741, %v1634
        %1744 = vset.pattern.permute.xlu0 11
        %1745 = vperm.xlu0 %1744, %v1687
        %v1746 = vpop.permute.xlu0 %1745
        %v1748 = vmul.f32 %v1746, %v1638
        %1749 = vset.pattern.permute.xlu0 12
        %1750 = vperm.xlu0 %1749, %v1687
        %v1751 = vpop.permute.xlu0 %1750
        %v1753 = vmul.f32 %v1751, %v1642
        %1754 = vset.pattern.permute.xlu0 13
        %1755 = vperm.xlu0 %1754, %v1687
        %v1756 = vpop.permute.xlu0 %1755
        %v1758 = vmul.f32 %v1756, %v1646
        %1759 = vset.pattern.permute.xlu0 14
        %1760 = vperm.xlu0 %1759, %v1687
        %v1761 = vpop.permute.xlu0 %1760
        %v1763 = vmul.f32 %v1761, %v1650
        %1764 = vset.pattern.permute.xlu0 15
        %1765 = vperm.xlu0 %1764, %v1687
        %v1766 = vpop.permute.xlu0 %1765
        %v1768 = vmul.f32 %v1766, %v1654
        %v1769 = vadd.f32 %v1693, %v1698
        %v1770 = vadd.f32 %v1703, %v1708
        %v1771 = vadd.f32 %v1713, %v1718
        %v1772 = vadd.f32 %v1723, %v1728
        %v1773 = vadd.f32 %v1733, %v1738
        %v1774 = vadd.f32 %v1743, %v1748
        %v1775 = vadd.f32 %v1753, %v1758
        %v1776 = vadd.f32 %v1763, %v1768
        %v1777 = vadd.f32 %v1769, %v1770
        %v1778 = vadd.f32 %v1771, %v1772
        %v1779 = vadd.f32 %v1773, %v1774
        %v1780 = vadd.f32 %v1775, %v1776
        %v1781 = vadd.f32 %v1777, %v1778
        %v1782 = vadd.f32 %v1779, %v1780
        %v1783 = vadd.f32 %v1781, %v1782
        %v1784 = vadd.f32 %v1564, %v1783
        %v1785 = vtanh.pop %v1784
        %1787 = vset.pattern.permute.xlu0 0
        %1788 = vperm.xlu0 %1787, %v1785
        %v1789 = vpop.permute.xlu0 %1788
        %v1791 = vmul.f32 %v1789, %v1594
        %1792 = vset.pattern.permute.xlu0 1
        %1793 = vperm.xlu0 %1792, %v1785
        %v1794 = vpop.permute.xlu0 %1793
        %v1796 = vmul.f32 %v1794, %v1598
        %1797 = vset.pattern.permute.xlu0 2
        %1798 = vperm.xlu0 %1797, %v1785
        %v1799 = vpop.permute.xlu0 %1798
        %v1801 = vmul.f32 %v1799, %v1602
        %1802 = vset.pattern.permute.xlu0 3
        %1803 = vperm.xlu0 %1802, %v1785
        %v1804 = vpop.permute.xlu0 %1803
        %v1806 = vmul.f32 %v1804, %v1606
        %1807 = vset.pattern.permute.xlu0 4
        %1808 = vperm.xlu0 %1807, %v1785
        %v1809 = vpop.permute.xlu0 %1808
        %v1811 = vmul.f32 %v1809, %v1610
        %1812 = vset.pattern.permute.xlu0 5
        %1813 = vperm.xlu0 %1812, %v1785
        %v1814 = vpop.permute.xlu0 %1813
        %v1816 = vmul.f32 %v1814, %v1614
        %1817 = vset.pattern.permute.xlu0 6
        %1818 = vperm.xlu0 %1817, %v1785
        %v1819 = vpop.permute.xlu0 %1818
        %v1821 = vmul.f32 %v1819, %v1618
        %1822 = vset.pattern.permute.xlu0 7
        %1823 = vperm.xlu0 %1822, %v1785
        %v1824 = vpop.permute.xlu0 %1823
        %v1826 = vmul.f32 %v1824, %v1622
        %1827 = vset.pattern.permute.xlu0 8
        %1828 = vperm.xlu0 %1827, %v1785
        %v1829 = vpop.permute.xlu0 %1828
        %v1831 = vmul.f32 %v1829, %v1626
        %1832 = vset.pattern.permute.xlu0 9
        %1833 = vperm.xlu0 %1832, %v1785
        %v1834 = vpop.permute.xlu0 %1833
        %v1836 = vmul.f32 %v1834, %v1630
        %1837 = vset.pattern.permute.xlu0 10
        %1838 = vperm.xlu0 %1837, %v1785
        %v1839 = vpop.permute.xlu0 %1838
        %v1841 = vmul.f32 %v1839, %v1634
        %1842 = vset.pattern.permute.xlu0 11
        %1843 = vperm.xlu0 %1842, %v1785
        %v1844 = vpop.permute.xlu0 %1843
        %v1846 = vmul.f32 %v1844, %v1638
        %1847 = vset.pattern.permute.xlu0 12
        %1848 = vperm.xlu0 %1847, %v1785
        %v1849 = vpop.permute.xlu0 %1848
        %v1851 = vmul.f32 %v1849, %v1642
        %1852 = vset.pattern.permute.xlu0 13
        %1853 = vperm.xlu0 %1852, %v1785
        %v1854 = vpop.permute.xlu0 %1853
        %v1856 = vmul.f32 %v1854, %v1646
        %1857 = vset.pattern.permute.xlu0 14
        %1858 = vperm.xlu0 %1857, %v1785
        %v1859 = vpop.permute.xlu0 %1858
        %v1861 = vmul.f32 %v1859, %v1650
        %1862 = vset.pattern.permute.xlu0 15
        %1863 = vperm.xlu0 %1862, %v1785
        %v1864 = vpop.permute.xlu0 %1863
        %v1866 = vmul.f32 %v1864, %v1654
        %v1867 = vadd.f32 %v1791, %v1796
        %v1868 = vadd.f32 %v1801, %v1806
        %v1869 = vadd.f32 %v1811, %v1816
        %v1870 = vadd.f32 %v1821, %v1826
        %v1871 = vadd.f32 %v1831, %v1836
        %v1872 = vadd.f32 %v1841, %v1846
        %v1873 = vadd.f32 %v1851, %v1856
        %v1874 = vadd.f32 %v1861, %v1866
        %v1875 = vadd.f32 %v1867, %v1868
        %v1876 = vadd.f32 %v1869, %v1870
        %v1877 = vadd.f32 %v1871, %v1872
        %v1878 = vadd.f32 %v1873, %v1874
        %v1879 = vadd.f32 %v1875, %v1876
        %v1880 = vadd.f32 %v1877, %v1878
        %v1881 = vadd.f32 %v1879, %v1880
        %v1882 = vadd.f32 %v1569, %v1881
        %v1883 = vtanh.pop %v1882
        %1885 = vset.pattern.permute.xlu0 0
        %1886 = vperm.xlu0 %1885, %v1883
        %v1887 = vpop.permute.xlu0 %1886
        %v1889 = vmul.f32 %v1887, %v1594
        %1890 = vset.pattern.permute.xlu0 1
        %1891 = vperm.xlu0 %1890, %v1883
        %v1892 = vpop.permute.xlu0 %1891
        %v1894 = vmul.f32 %v1892, %v1598
        %1895 = vset.pattern.permute.xlu0 2
        %1896 = vperm.xlu0 %1895, %v1883
        %v1897 = vpop.permute.xlu0 %1896
        %v1899 = vmul.f32 %v1897, %v1602
        %1900 = vset.pattern.permute.xlu0 3
        %1901 = vperm.xlu0 %1900, %v1883
        %v1902 = vpop.permute.xlu0 %1901
        %v1904 = vmul.f32 %v1902, %v1606
        %1905 = vset.pattern.permute.xlu0 4
        %1906 = vperm.xlu0 %1905, %v1883
        %v1907 = vpop.permute.xlu0 %1906
        %v1909 = vmul.f32 %v1907, %v1610
        %1910 = vset.pattern.permute.xlu0 5
        %1911 = vperm.xlu0 %1910, %v1883
        %v1912 = vpop.permute.xlu0 %1911
        %v1914 = vmul.f32 %v1912, %v1614
        %1915 = vset.pattern.permute.xlu0 6
        %1916 = vperm.xlu0 %1915, %v1883
        %v1917 = vpop.permute.xlu0 %1916
        %v1919 = vmul.f32 %v1917, %v1618
        %1920 = vset.pattern.permute.xlu0 7
        %1921 = vperm.xlu0 %1920, %v1883
        %v1922 = vpop.permute.xlu0 %1921
        %v1924 = vmul.f32 %v1922, %v1622
        %1925 = vset.pattern.permute.xlu0 8
        %1926 = vperm.xlu0 %1925, %v1883
        %v1927 = vpop.permute.xlu0 %1926
        %v1929 = vmul.f32 %v1927, %v1626
        %1930 = vset.pattern.permute.xlu0 9
        %1931 = vperm.xlu0 %1930, %v1883
        %v1932 = vpop.permute.xlu0 %1931
        %v1934 = vmul.f32 %v1932, %v1630
        %1935 = vset.pattern.permute.xlu0 10
        %1936 = vperm.xlu0 %1935, %v1883
        %v1937 = vpop.permute.xlu0 %1936
        %v1939 = vmul.f32 %v1937, %v1634
        %1940 = vset.pattern.permute.xlu0 11
        %1941 = vperm.xlu0 %1940, %v1883
        %v1942 = vpop.permute.xlu0 %1941
        %v1944 = vmul.f32 %v1942, %v1638
        %1945 = vset.pattern.permute.xlu0 12
        %1946 = vperm.xlu0 %1945, %v1883
        %v1947 = vpop.permute.xlu0 %1946
        %v1949 = vmul.f32 %v1947, %v1642
        %1950 = vset.pattern.permute.xlu0 13
        %1951 = vperm.xlu0 %1950, %v1883
        %v1952 = vpop.permute.xlu0 %1951
        %v1954 = vmul.f32 %v1952, %v1646
        %1955 = vset.pattern.permute.xlu0 14
        %1956 = vperm.xlu0 %1955, %v1883
        %v1957 = vpop.permute.xlu0 %1956
        %v1959 = vmul.f32 %v1957, %v1650
        %1960 = vset.pattern.permute.xlu0 15
        %1961 = vperm.xlu0 %1960, %v1883
        %v1962 = vpop.permute.xlu0 %1961
        %v1964 = vmul.f32 %v1962, %v1654
        %v1965 = vadd.f32 %v1889, %v1894
        %v1966 = vadd.f32 %v1899, %v1904
        %v1967 = vadd.f32 %v1909, %v1914
        %v1968 = vadd.f32 %v1919, %v1924
        %v1969 = vadd.f32 %v1929, %v1934
        %v1970 = vadd.f32 %v1939, %v1944
        %v1971 = vadd.f32 %v1949, %v1954
        %v1972 = vadd.f32 %v1959, %v1964
        %v1973 = vadd.f32 %v1965, %v1966
        %v1974 = vadd.f32 %v1967, %v1968
        %v1975 = vadd.f32 %v1969, %v1970
        %v1976 = vadd.f32 %v1971, %v1972
        %v1977 = vadd.f32 %v1973, %v1974
        %v1978 = vadd.f32 %v1975, %v1976
        %v1979 = vadd.f32 %v1977, %v1978
        %v1980 = vadd.f32 %v1572, %v1979
        %v1981 = vtanh.pop %v1980
        %1983 = vset.pattern.permute.xlu0 0
        %1984 = vperm.xlu0 %1983, %v1981
        %v1985 = vpop.permute.xlu0 %1984
        %v1987 = vmul.f32 %v1985, %v1594
        %1988 = vset.pattern.permute.xlu0 1
        %1989 = vperm.xlu0 %1988, %v1981
        %v1990 = vpop.permute.xlu0 %1989
        %v1992 = vmul.f32 %v1990, %v1598
        %1993 = vset.pattern.permute.xlu0 2
        %1994 = vperm.xlu0 %1993, %v1981
        %v1995 = vpop.permute.xlu0 %1994
        %v1997 = vmul.f32 %v1995, %v1602
        %1998 = vset.pattern.permute.xlu0 3
        %1999 = vperm.xlu0 %1998, %v1981
        %v2000 = vpop.permute.xlu0 %1999
        %v2002 = vmul.f32 %v2000, %v1606
        %2003 = vset.pattern.permute.xlu0 4
        %2004 = vperm.xlu0 %2003, %v1981
        %v2005 = vpop.permute.xlu0 %2004
        %v2007 = vmul.f32 %v2005, %v1610
        %2008 = vset.pattern.permute.xlu0 5
        %2009 = vperm.xlu0 %2008, %v1981
        %v2010 = vpop.permute.xlu0 %2009
        %v2012 = vmul.f32 %v2010, %v1614
        %2013 = vset.pattern.permute.xlu0 6
        %2014 = vperm.xlu0 %2013, %v1981
        %v2015 = vpop.permute.xlu0 %2014
        %v2017 = vmul.f32 %v2015, %v1618
        %2018 = vset.pattern.permute.xlu0 7
        %2019 = vperm.xlu0 %2018, %v1981
        %v2020 = vpop.permute.xlu0 %2019
        %v2022 = vmul.f32 %v2020, %v1622
        %2023 = vset.pattern.permute.xlu0 8
        %2024 = vperm.xlu0 %2023, %v1981
        %v2025 = vpop.permute.xlu0 %2024
        %v2027 = vmul.f32 %v2025, %v1626
        %2028 = vset.pattern.permute.xlu0 9
        %2029 = vperm.xlu0 %2028, %v1981
        %v2030 = vpop.permute.xlu0 %2029
        %v2032 = vmul.f32 %v2030, %v1630
        %2033 = vset.pattern.permute.xlu0 10
        %2034 = vperm.xlu0 %2033, %v1981
        %v2035 = vpop.permute.xlu0 %2034
        %v2037 = vmul.f32 %v2035, %v1634
        %2038 = vset.pattern.permute.xlu0 11
        %2039 = vperm.xlu0 %2038, %v1981
        %v2040 = vpop.permute.xlu0 %2039
        %v2042 = vmul.f32 %v2040, %v1638
        %2043 = vset.pattern.permute.xlu0 12
        %2044 = vperm.xlu0 %2043, %v1981
        %v2045 = vpop.permute.xlu0 %2044
        %v2047 = vmul.f32 %v2045, %v1642
        %2048 = vset.pattern.permute.xlu0 13
        %2049 = vperm.xlu0 %2048, %v1981
        %v2050 = vpop.permute.xlu0 %2049
        %v2052 = vmul.f32 %v2050, %v1646
        %2053 = vset.pattern.permute.xlu0 14
        %2054 = vperm.xlu0 %2053, %v1981
        %v2055 = vpop.permute.xlu0 %2054
        %v2057 = vmul.f32 %v2055, %v1650
        %2058 = vset.pattern.permute.xlu0 15
        %2059 = vperm.xlu0 %2058, %v1981
        %v2060 = vpop.permute.xlu0 %2059
        %v2062 = vmul.f32 %v2060, %v1654
        %v2063 = vadd.f32 %v1987, %v1992
        %v2064 = vadd.f32 %v1997, %v2002
        %v2065 = vadd.f32 %v2007, %v2012
        %v2066 = vadd.f32 %v2017, %v2022
        %v2067 = vadd.f32 %v2027, %v2032
        %v2068 = vadd.f32 %v2037, %v2042
        %v2069 = vadd.f32 %v2047, %v2052
        %v2070 = vadd.f32 %v2057, %v2062
        %v2071 = vadd.f32 %v2063, %v2064
        %v2072 = vadd.f32 %v2065, %v2066
        %v2073 = vadd.f32 %v2067, %v2068
        %v2074 = vadd.f32 %v2069, %v2070
        %v2075 = vadd.f32 %v2071, %v2072
        %v2076 = vadd.f32 %v2073, %v2074
        %v2077 = vadd.f32 %v2075, %v2076
        %v2078 = vadd.f32 %v1577, %v2077
        %v2079 = vtanh.pop %v2078
        %2081 = vset.pattern.permute.xlu0 0
        %2082 = vperm.xlu0 %2081, %v2079
        %v2083 = vpop.permute.xlu0 %2082
        %v2085 = vmul.f32 %v2083, %v1594
        %2086 = vset.pattern.permute.xlu0 1
        %2087 = vperm.xlu0 %2086, %v2079
        %v2088 = vpop.permute.xlu0 %2087
        %v2090 = vmul.f32 %v2088, %v1598
        %2091 = vset.pattern.permute.xlu0 2
        %2092 = vperm.xlu0 %2091, %v2079
        %v2093 = vpop.permute.xlu0 %2092
        %v2095 = vmul.f32 %v2093, %v1602
        %2096 = vset.pattern.permute.xlu0 3
        %2097 = vperm.xlu0 %2096, %v2079
        %v2098 = vpop.permute.xlu0 %2097
        %v2100 = vmul.f32 %v2098, %v1606
        %2101 = vset.pattern.permute.xlu0 4
        %2102 = vperm.xlu0 %2101, %v2079
        %v2103 = vpop.permute.xlu0 %2102
        %v2105 = vmul.f32 %v2103, %v1610
        %2106 = vset.pattern.permute.xlu0 5
        %2107 = vperm.xlu0 %2106, %v2079
        %v2108 = vpop.permute.xlu0 %2107
        %v2110 = vmul.f32 %v2108, %v1614
        %2111 = vset.pattern.permute.xlu0 6
        %2112 = vperm.xlu0 %2111, %v2079
        %v2113 = vpop.permute.xlu0 %2112
        %v2115 = vmul.f32 %v2113, %v1618
        %2116 = vset.pattern.permute.xlu0 7
        %2117 = vperm.xlu0 %2116, %v2079
        %v2118 = vpop.permute.xlu0 %2117
        %v2120 = vmul.f32 %v2118, %v1622
        %2121 = vset.pattern.permute.xlu0 8
        %2122 = vperm.xlu0 %2121, %v2079
        %v2123 = vpop.permute.xlu0 %2122
        %v2125 = vmul.f32 %v2123, %v1626
        %2126 = vset.pattern.permute.xlu0 9
        %2127 = vperm.xlu0 %2126, %v2079
        %v2128 = vpop.permute.xlu0 %2127
        %v2130 = vmul.f32 %v2128, %v1630
        %2131 = vset.pattern.permute.xlu0 10
        %2132 = vperm.xlu0 %2131, %v2079
        %v2133 = vpop.permute.xlu0 %2132
        %v2135 = vmul.f32 %v2133, %v1634
        %2136 = vset.pattern.permute.xlu0 11
        %2137 = vperm.xlu0 %2136, %v2079
        %v2138 = vpop.permute.xlu0 %2137
        %v2140 = vmul.f32 %v2138, %v1638
        %2141 = vset.pattern.permute.xlu0 12
        %2142 = vperm.xlu0 %2141, %v2079
        %v2143 = vpop.permute.xlu0 %2142
        %v2145 = vmul.f32 %v2143, %v1642
        %2146 = vset.pattern.permute.xlu0 13
        %2147 = vperm.xlu0 %2146, %v2079
        %v2148 = vpop.permute.xlu0 %2147
        %v2150 = vmul.f32 %v2148, %v1646
        %2151 = vset.pattern.permute.xlu0 14
        %2152 = vperm.xlu0 %2151, %v2079
        %v2153 = vpop.permute.xlu0 %2152
        %v2155 = vmul.f32 %v2153, %v1650
        %2156 = vset.pattern.permute.xlu0 15
        %2157 = vperm.xlu0 %2156, %v2079
        %v2158 = vpop.permute.xlu0 %2157
        %v2160 = vmul.f32 %v2158, %v1654
        %v2161 = vadd.f32 %v2085, %v2090
        %v2162 = vadd.f32 %v2095, %v2100
        %v2163 = vadd.f32 %v2105, %v2110
        %v2164 = vadd.f32 %v2115, %v2120
        %v2165 = vadd.f32 %v2125, %v2130
        %v2166 = vadd.f32 %v2135, %v2140
        %v2167 = vadd.f32 %v2145, %v2150
        %v2168 = vadd.f32 %v2155, %v2160
        %v2169 = vadd.f32 %v2161, %v2162
        %v2170 = vadd.f32 %v2163, %v2164
        %v2171 = vadd.f32 %v2165, %v2166
        %v2172 = vadd.f32 %v2167, %v2168
        %v2173 = vadd.f32 %v2169, %v2170
        %v2174 = vadd.f32 %v2171, %v2172
        %v2175 = vadd.f32 %v2173, %v2174
        %v2176 = vadd.f32 %v1580, %v2175
        %v2177 = vtanh.pop %v2176
        %2179 = vset.pattern.permute.xlu0 0
        %2180 = vperm.xlu0 %2179, %v2177
        %v2181 = vpop.permute.xlu0 %2180
        %v2183 = vmul.f32 %v2181, %v1594
        %2184 = vset.pattern.permute.xlu0 1
        %2185 = vperm.xlu0 %2184, %v2177
        %v2186 = vpop.permute.xlu0 %2185
        %v2188 = vmul.f32 %v2186, %v1598
        %2189 = vset.pattern.permute.xlu0 2
        %2190 = vperm.xlu0 %2189, %v2177
        %v2191 = vpop.permute.xlu0 %2190
        %v2193 = vmul.f32 %v2191, %v1602
        %2194 = vset.pattern.permute.xlu0 3
        %2195 = vperm.xlu0 %2194, %v2177
        %v2196 = vpop.permute.xlu0 %2195
        %v2198 = vmul.f32 %v2196, %v1606
        %2199 = vset.pattern.permute.xlu0 4
        %2200 = vperm.xlu0 %2199, %v2177
        %v2201 = vpop.permute.xlu0 %2200
        %v2203 = vmul.f32 %v2201, %v1610
        %2204 = vset.pattern.permute.xlu0 5
        %2205 = vperm.xlu0 %2204, %v2177
        %v2206 = vpop.permute.xlu0 %2205
        %v2208 = vmul.f32 %v2206, %v1614
        %2209 = vset.pattern.permute.xlu0 6
        %2210 = vperm.xlu0 %2209, %v2177
        %v2211 = vpop.permute.xlu0 %2210
        %v2213 = vmul.f32 %v2211, %v1618
        %2214 = vset.pattern.permute.xlu0 7
        %2215 = vperm.xlu0 %2214, %v2177
        %v2216 = vpop.permute.xlu0 %2215
        %v2218 = vmul.f32 %v2216, %v1622
        %2219 = vset.pattern.permute.xlu0 8
        %2220 = vperm.xlu0 %2219, %v2177
        %v2221 = vpop.permute.xlu0 %2220
        %v2223 = vmul.f32 %v2221, %v1626
        %2224 = vset.pattern.permute.xlu0 9
        %2225 = vperm.xlu0 %2224, %v2177
        %v2226 = vpop.permute.xlu0 %2225
        %v2228 = vmul.f32 %v2226, %v1630
        %2229 = vset.pattern.permute.xlu0 10
        %2230 = vperm.xlu0 %2229, %v2177
        %v2231 = vpop.permute.xlu0 %2230
        %v2233 = vmul.f32 %v2231, %v1634
        %2234 = vset.pattern.permute.xlu0 11
        %2235 = vperm.xlu0 %2234, %v2177
        %v2236 = vpop.permute.xlu0 %2235
        %v2238 = vmul.f32 %v2236, %v1638
        %2239 = vset.pattern.permute.xlu0 12
        %2240 = vperm.xlu0 %2239, %v2177
        %v2241 = vpop.permute.xlu0 %2240
        %v2243 = vmul.f32 %v2241, %v1642
        %2244 = vset.pattern.permute.xlu0 13
        %2245 = vperm.xlu0 %2244, %v2177
        %v2246 = vpop.permute.xlu0 %2245
        %v2248 = vmul.f32 %v2246, %v1646
        %2249 = vset.pattern.permute.xlu0 14
        %2250 = vperm.xlu0 %2249, %v2177
        %v2251 = vpop.permute.xlu0 %2250
        %v2253 = vmul.f32 %v2251, %v1650
        %2254 = vset.pattern.permute.xlu0 15
        %2255 = vperm.xlu0 %2254, %v2177
        %v2256 = vpop.permute.xlu0 %2255
        %v2258 = vmul.f32 %v2256, %v1654
        %v2259 = vadd.f32 %v2183, %v2188
        %v2260 = vadd.f32 %v2193, %v2198
        %v2261 = vadd.f32 %v2203, %v2208
        %v2262 = vadd.f32 %v2213, %v2218
        %v2263 = vadd.f32 %v2223, %v2228
        %v2264 = vadd.f32 %v2233, %v2238
        %v2265 = vadd.f32 %v2243, %v2248
        %v2266 = vadd.f32 %v2253, %v2258
        %v2267 = vadd.f32 %v2259, %v2260
        %v2268 = vadd.f32 %v2261, %v2262
        %v2269 = vadd.f32 %v2263, %v2264
        %v2270 = vadd.f32 %v2265, %v2266
        %v2271 = vadd.f32 %v2267, %v2268
        %v2272 = vadd.f32 %v2269, %v2270
        %v2273 = vadd.f32 %v2271, %v2272
        %v2274 = vadd.f32 %v1585, %v2273
        %v2275 = vtanh.pop %v2274
        %2277 = vset.pattern.permute.xlu0 0
        %2278 = vperm.xlu0 %2277, %v2275
        %v2279 = vpop.permute.xlu0 %2278
        %v2281 = vmul.f32 %v2279, %v1594
        %2282 = vset.pattern.permute.xlu0 1
        %2283 = vperm.xlu0 %2282, %v2275
        %v2284 = vpop.permute.xlu0 %2283
        %v2286 = vmul.f32 %v2284, %v1598
        %2287 = vset.pattern.permute.xlu0 2
        %2288 = vperm.xlu0 %2287, %v2275
        %v2289 = vpop.permute.xlu0 %2288
        %v2291 = vmul.f32 %v2289, %v1602
        %2292 = vset.pattern.permute.xlu0 3
        %2293 = vperm.xlu0 %2292, %v2275
        %v2294 = vpop.permute.xlu0 %2293
        %v2296 = vmul.f32 %v2294, %v1606
        %2297 = vset.pattern.permute.xlu0 4
        %2298 = vperm.xlu0 %2297, %v2275
        %v2299 = vpop.permute.xlu0 %2298
        %v2301 = vmul.f32 %v2299, %v1610
        %2302 = vset.pattern.permute.xlu0 5
        %2303 = vperm.xlu0 %2302, %v2275
        %v2304 = vpop.permute.xlu0 %2303
        %v2306 = vmul.f32 %v2304, %v1614
        %2307 = vset.pattern.permute.xlu0 6
        %2308 = vperm.xlu0 %2307, %v2275
        %v2309 = vpop.permute.xlu0 %2308
        %v2311 = vmul.f32 %v2309, %v1618
        %2312 = vset.pattern.permute.xlu0 7
        %2313 = vperm.xlu0 %2312, %v2275
        %v2314 = vpop.permute.xlu0 %2313
        %v2316 = vmul.f32 %v2314, %v1622
        %2317 = vset.pattern.permute.xlu0 8
        %2318 = vperm.xlu0 %2317, %v2275
        %v2319 = vpop.permute.xlu0 %2318
        %v2321 = vmul.f32 %v2319, %v1626
        %2322 = vset.pattern.permute.xlu0 9
        %2323 = vperm.xlu0 %2322, %v2275
        %v2324 = vpop.permute.xlu0 %2323
        %v2326 = vmul.f32 %v2324, %v1630
        %2327 = vset.pattern.permute.xlu0 10
        %2328 = vperm.xlu0 %2327, %v2275
        %v2329 = vpop.permute.xlu0 %2328
        %v2331 = vmul.f32 %v2329, %v1634
        %2332 = vset.pattern.permute.xlu0 11
        %2333 = vperm.xlu0 %2332, %v2275
        %v2334 = vpop.permute.xlu0 %2333
        %v2336 = vmul.f32 %v2334, %v1638
        %2337 = vset.pattern.permute.xlu0 12
        %2338 = vperm.xlu0 %2337, %v2275
        %v2339 = vpop.permute.xlu0 %2338
        %v2341 = vmul.f32 %v2339, %v1642
        %2342 = vset.pattern.permute.xlu0 13
        %2343 = vperm.xlu0 %2342, %v2275
        %v2344 = vpop.permute.xlu0 %2343
        %v2346 = vmul.f32 %v2344, %v1646
        %2347 = vset.pattern.permute.xlu0 14
        %2348 = vperm.xlu0 %2347, %v2275
        %v2349 = vpop.permute.xlu0 %2348
        %v2351 = vmul.f32 %v2349, %v1650
        %2352 = vset.pattern.permute.xlu0 15
        %2353 = vperm.xlu0 %2352, %v2275
        %v2354 = vpop.permute.xlu0 %2353
        %v2356 = vmul.f32 %v2354, %v1654
        %v2357 = vadd.f32 %v2281, %v2286
        %v2358 = vadd.f32 %v2291, %v2296
        %v2359 = vadd.f32 %v2301, %v2306
        %v2360 = vadd.f32 %v2311, %v2316
        %v2361 = vadd.f32 %v2321, %v2326
        %v2362 = vadd.f32 %v2331, %v2336
        %v2363 = vadd.f32 %v2341, %v2346
        %v2364 = vadd.f32 %v2351, %v2356
        %v2365 = vadd.f32 %v2357, %v2358
        %v2366 = vadd.f32 %v2359, %v2360
        %v2367 = vadd.f32 %v2361, %v2362
        %v2368 = vadd.f32 %v2363, %v2364
        %v2369 = vadd.f32 %v2365, %v2366
        %v2370 = vadd.f32 %v2367, %v2368
        %v2371 = vadd.f32 %v2369, %v2370
        %v2372 = vadd.f32 %v1588, %v2371
        %v2373 = vtanh.pop %v2372
        %vm2374 = vcmask 130048
        %v2375 = vsel %vm2374, %v1687, -inf
        %2376 = vmax.xlane.f32.xlu0 %v2375
        %v2377 = vpop.xlane.xlu0 %2376
        %v2378 = vsel %vm2374, %v1785, -inf
        %2379 = vmax.xlane.f32.xlu0 %v2378
        %v2380 = vpop.xlane.xlu0 %2379
        %v2381 = vsel %vm2374, %v1883, -inf
        %2382 = vmax.xlane.f32.xlu0 %v2381
        %v2383 = vpop.xlane.xlu0 %2382
        %v2384 = vsel %vm2374, %v1981, -inf
        %2385 = vmax.xlane.f32.xlu0 %v2384
        %v2386 = vpop.xlane.xlu0 %2385
        %v2387 = vsel %vm2374, %v2079, -inf
        %2388 = vmax.xlane.f32.xlu0 %v2387
        %v2389 = vpop.xlane.xlu0 %2388
        %v2390 = vsel %vm2374, %v2177, -inf
        %2391 = vmax.xlane.f32.xlu0 %v2390
        %v2392 = vpop.xlane.xlu0 %2391
        %v2393 = vsel %vm2374, %v2275, -inf
        %2394 = vmax.xlane.f32.xlu0 %v2393
        %v2395 = vpop.xlane.xlu0 %2394
        %v2396 = vsel %vm2374, %v2373, -inf
        %2397 = vmax.xlane.f32.xlu0 %v2396
        %v2398 = vpop.xlane.xlu0 %2397
        %v2399 = vsub.f32 %v1687, %v2377
        %v2400 = vsub.f32 %v1785, %v2380
        %v2401 = vsub.f32 %v1883, %v2383
        %v2402 = vsub.f32 %v1981, %v2386
        %v2403 = vsub.f32 %v2079, %v2389
        %v2404 = vsub.f32 %v2177, %v2392
        %v2405 = vsub.f32 %v2275, %v2395
        %v2406 = vsub.f32 %v2373, %v2398
        %v2407 = vmul.f32 %v2399, 1.442695
        %v2408 = vpow.pop %v2407
        %v2409 = vmul.f32 %v2400, 1.442695
        %v2410 = vpow.pop %v2409
        %v2411 = vmul.f32 %v2401, 1.442695
        %v2412 = vpow.pop %v2411
        %v2413 = vmul.f32 %v2402, 1.442695
        %v2414 = vpow.pop %v2413
        %v2415 = vmul.f32 %v2403, 1.442695
        %v2416 = vpow.pop %v2415
        %v2417 = vmul.f32 %v2404, 1.442695
        %v2418 = vpow.pop %v2417
        %v2419 = vmul.f32 %v2405, 1.442695
        %v2420 = vpow.pop %v2419
        %v2421 = vmul.f32 %v2406, 1.442695
        %v2422 = vpow.pop %v2421
        %v2423 = vsel %vm2374, %v2408, 0.0
        %2424 = vadd.xlane.f32.xlu0 %v2423
        %v2425 = vpop.xlane.xlu0 %2424
        %v2426 = vsel %vm2374, %v2410, 0.0
        %2427 = vadd.xlane.f32.xlu0 %v2426
        %v2428 = vpop.xlane.xlu0 %2427
        %v2429 = vsel %vm2374, %v2412, 0.0
        %2430 = vadd.xlane.f32.xlu0 %v2429
        %v2431 = vpop.xlane.xlu0 %2430
        %v2432 = vsel %vm2374, %v2414, 0.0
        %2433 = vadd.xlane.f32.xlu0 %v2432
        %v2434 = vpop.xlane.xlu0 %2433
        %v2435 = vsel %vm2374, %v2416, 0.0
        %2436 = vadd.xlane.f32.xlu0 %v2435
        %v2437 = vpop.xlane.xlu0 %2436
        %v2438 = vsel %vm2374, %v2418, 0.0
        %2439 = vadd.xlane.f32.xlu0 %v2438
        %v2440 = vpop.xlane.xlu0 %2439
        %v2441 = vsel %vm2374, %v2420, 0.0
        %2442 = vadd.xlane.f32.xlu0 %v2441
        %v2443 = vpop.xlane.xlu0 %2442
        %v2444 = vsel %vm2374, %v2422, 0.0
        %2445 = vadd.xlane.f32.xlu0 %v2444
        %v2446 = vpop.xlane.xlu0 %2445
        %v2447 = vlog2.pop %v2425
        %v2448 = vmul.f32 %v2447, 0.6931472
        %v2449 = vlog2.pop %v2428
        %v2450 = vmul.f32 %v2449, 0.6931472
        %v2451 = vlog2.pop %v2431
        %v2452 = vmul.f32 %v2451, 0.6931472
        %v2453 = vlog2.pop %v2434
        %v2454 = vmul.f32 %v2453, 0.6931472
        %v2455 = vlog2.pop %v2437
        %v2456 = vmul.f32 %v2455, 0.6931472
        %v2457 = vlog2.pop %v2440
        %v2458 = vmul.f32 %v2457, 0.6931472
        %v2459 = vlog2.pop %v2443
        %v2460 = vmul.f32 %v2459, 0.6931472
        %v2461 = vlog2.pop %v2446
        %v2462 = vmul.f32 %v2461, 0.6931472
        %v2463 = vsub.f32 %v2399, %v2448
        %v2464 = vsub.f32 %v2400, %v2450
        %v2465 = vsub.f32 %v2401, %v2452
        %v2466 = vsub.f32 %v2402, %v2454
        %v2467 = vsub.f32 %v2403, %v2456
        %v2468 = vsub.f32 %v2404, %v2458
        %v2469 = vsub.f32 %v2405, %v2460
        %v2470 = vsub.f32 %v2406, %v2462
        %2471 = vst.msk [vmem:[%s275] sm:$0xff] %vm2374, %v2463
        %2472 = vst.msk [vmem:[%s275 + $0x8] sm:$0xff] %vm2374, %v2464
        %2473 = vst.msk [vmem:[%s275 + $0x10] sm:$0xff] %vm2374, %v2465
        %2474 = vst.msk [vmem:[%s275 + $0x18] sm:$0xff] %vm2374, %v2466
        %2475 = vst.msk [vmem:[%s275 + $0x20] sm:$0xff] %vm2374, %v2467
        %2476 = vst.msk [vmem:[%s275 + $0x28] sm:$0xff] %vm2374, %v2468
        %2477 = vst.msk [vmem:[%s275 + $0x30] sm:$0xff] %vm2374, %v2469
        %2478 = vst.msk [vmem:[%s275 + $0x38] sm:$0xff] %vm2374, %v2470
        %s2479 = smul.u32 8, %s20
        %p2480 = scmp.lt.s32.totalorder %s2479, 15
        %s2481 = scalar_select %p2480, %s2479, 15
        %s2482 = smul.addr %s2481, 8
        %s2483 = scalar_lea.vmem %s5, %s2482
        // Predicated region
        $region53: #{tpu_custom_call.1} parent=39 // pred_check
          %p2484 = pneg %p148
        $region54: #{tpu_custom_call.1} parent=39 // pred_check_branch
          %2486 = sbr.rel (%p2484) target = $region56
        $region55: #{tpu_custom_call.1} parent=39 // pred_region
          %s2487 = smul.u32 8, %s20
        $region56: #{tpu_custom_call.1} parent=39 // pred_fallthru
          _
      $region40: #{tpu_custom_call.1} parent=5 // pred_fallthru
        _
      %p2488 = scmp.le.s32.totalorder 2, %s15
      // Predicated region
      $region57: #{tpu_custom_call.1} parent=5 // pred_check
        %p2489 = pneg %p2488
      $region58: #{tpu_custom_call.1} parent=5 // pred_check_branch
        %2491 = sbr.rel (%p2489) target = $region60
      $region59: #{tpu_custom_call.1} parent=5 // pred_region
        %s2492 = ssub.s32 %s15, 2
        // Predicated region
        $region61: #{tpu_custom_call.1} parent=59 // pred_check
          %p2493 = pneg %p154
        $region62: #{tpu_custom_call.1} parent=59 // pred_check_branch
          %2495 = sbr.rel (%p2493) target = $region64
        $region63: #{tpu_custom_call.1} parent=59 // pred_region
          %s2496 = smul.u32 8, %s21
          %p2497 = scmp.lt.s32.totalorder %s2496, 15
          %s2498 = scalar_select %p2497, %s2496, 15
          %s2499 = smul.addr %s2498, 8
          %s2500 = scalar_lea.vmem %s5, %s2499
        $region64: #{tpu_custom_call.1} parent=59 // pred_fallthru
          _
      $region60: #{tpu_custom_call.1} parent=5 // pred_fallthru
        _
    $region6: #{tpu_custom_call.1} parent=1 // loop_footer
      %s19 = sadd.s32 1, %s15
    $region7: #{tpu_custom_call.1} parent=1 // loop_footer_branch
      %14 = sbr.rel target = $region3
    $region8: #{tpu_custom_call.1} parent=1 // loop_exit
      _
    %2501 = vsyncpa [#allocation3], 1
    %s2502 = scalar_lea.sflag [#allocation3], 1
    %2503 = vsyncpa %s2502, 1
    %2504 = vsyncpa [#allocation5], 1

</llo_original>
